<compile_context>
chip_gen: v6e
topology: v6e:2x2x1
jax: 0.10.0
libtpu: 0.0.40
codegen_flags: <defaults>
</compile_context>

<pallas_src>
import functools
import math

import jax
import jax.numpy as jnp
from jax.experimental import pallas as pl
from jax.experimental.pallas import tpu as pltpu

BN_EPS = 1e-5
NORM_EPS = 1e-12
LANE = 128
N_CLASSES = 26 + 1          # hardcoded in the PyTorch module


def _round_up(x, m):
    return ((x + m - 1) // m) * m


# ----------------------------------------------------------------------------
# In-kernel helpers
# ----------------------------------------------------------------------------
def _bn_train(h, gamma, beta):
    """BatchNorm1d (training mode): biased batch stats, clamped one-pass var."""
    mean = jnp.mean(h, axis=0, keepdims=True)
    var = jnp.maximum(jnp.mean(h * h, axis=0, keepdims=True) - mean * mean, 0.0)
    out = (h - mean) * jax.lax.rsqrt(var + BN_EPS)
    if gamma is not None:
        out = out * gamma + beta
    return out


def _l2norm(v):
    # F.normalize semantics: v / max(||v||, eps)
    ss = jnp.sum(v * v, axis=-1, keepdims=True)
    return v * jax.lax.rsqrt(jnp.maximum(ss, NORM_EPS * NORM_EPS))


def _mxu_dot(x, w_ref):
    """bf16 MXU operands (weights stored bf16), f32 accumulation."""
    return jnp.dot(x.astype(jnp.bfloat16), w_ref[...],
                   preferred_element_type=jnp.float32)


# ----------------------------------------------------------------------------
# Single fused kernel: branch 0 = drug SimSiam, branch 1 = prot MLM xent
# ----------------------------------------------------------------------------
def _ssl_fused_kernel(
        # prot_mlm branch inputs
        xp_ref, labels_ref, mw_ref, mb_ref,
        # drug_simsiam branch inputs
        d1_ref, d2_ref,
        nw1, nw2, nw3, nbn,          # net     (SimSiamMLP): w1,w2,w3 + packed BN
        lw1, lw2, lw3, lbn,          # llm_net (SimSiamMLP)
        pw1, pw2, paux,              # predictor: w1,w2 + packed [b1,g,bb,b2]
        o_ref, *, n_rows):

    branch = pl.program_id(0)

    # ---------------- branch 0: drug SimSiam (projectors + predictor + loss) --
    @pl.when(branch == 0)
    def _drug():
        def simsiam_proj(x, w1, w2, w3, bn):
            g1, b1 = bn[0:1, :], bn[1:2, :]
            g2, b2 = bn[2:3, :], bn[3:4, :]
            h = _mxu_dot(x, w1)
            h = jnp.maximum(_bn_train(h, g1, b1), 0.0)
            h = _mxu_dot(h, w2)
            h = jnp.maximum(_bn_train(h, g2, b2), 0.0)
            h = _mxu_dot(h, w3)
            return _bn_train(h, None, None)        # final BN, affine=False

        proj_one = simsiam_proj(d1_ref[...], nw1, nw2, nw3, nbn[...])
        proj_two = simsiam_proj(d2_ref[...], lw1, lw2, lw3, lbn[...])

        aux = paux[...]
        pb1, pg, pbb = aux[0:1, :], aux[1:2, :], aux[2:3, :]
        pb2 = aux[3:4, :pw2.shape[1]]

        # Shared predictor, batched over both projections (one weight load,
        # double MXU fill).  BN stats per-half so numerics equal two
        # independent predictor() calls.
        proj_cat = jnp.concatenate([proj_one, proj_two], axis=0)      # (2N, H)
        h = _mxu_dot(proj_cat, pw1) + pb1                             # (2N, 4H)
        h1 = jnp.maximum(_bn_train(h[:n_rows], pg, pbb), 0.0)
        h2 = jnp.maximum(_bn_train(h[n_rows:], pg, pbb), 0.0)
        pred = _mxu_dot(jnp.concatenate([h1, h2], axis=0), pw2) + pb2
        pred_one, pred_two = pred[:n_rows], pred[n_rows:]

        # loss = mean( (2 - 2*cos(pred1, proj2)) + (2 - 2*cos(pred2, proj1)) )
        # (no_grad target projections == online projections in pure forward)
        l1 = 2.0 - 2.0 * jnp.sum(_l2norm(pred_one) * _l2norm(proj_two),
                                 axis=-1, keepdims=True)
        l2 = 2.0 - 2.0 * jnp.sum(_l2norm(pred_two) * _l2norm(proj_one),
                                 axis=-1, keepdims=True)
        loss = jnp.mean(l1 + l2)
        o_ref[...] = jnp.full(o_ref.shape, loss, dtype=jnp.float32)

    # ---------------- branch 1: llm_to_logits + cross-entropy(ignore=0) ------
    @pl.when(branch == 1)
    def _mlm():
        # Padded-class mask is baked into the bias (-1e30 on lanes >= 27).
        logits = _mxu_dot(xp_ref[...], mw_ref) + mb_ref[...]          # (N, 128)
        n, c_pad = logits.shape
        labels = labels_ref[...]                                      # (N, 1)

        m = jnp.max(logits, axis=-1, keepdims=True)
        lse = m + jnp.log(jnp.sum(jnp.exp(logits - m), axis=-1, keepdims=True))
        classes = jax.lax.broadcasted_iota(jnp.int32, (n, c_pad), 1)
        onehot = (classes == labels).astype(jnp.float32)              # labels < 27
        picked = jnp.sum(onehot * logits, axis=-1, keepdims=True)
        per_tok = lse - picked                                        # (N, 1)

        valid = (labels != 0).astype(jnp.float32)                     # ignore_index=0
        num = jnp.sum(per_tok * valid)
        den = jnp.sum(valid)
        # NOTE: PyTorch CE(mean) returns NaN when every label is ignored; we
        # clamp the denominator and return 0 instead (intentional divergence).
        loss = num / jnp.maximum(den, 1.0)
        o_ref[...] = jnp.full(o_ref.shape, loss, dtype=jnp.float32)


def fused_ssl_losses(params, xp_flat, labels_flat, drug_one, drug_two):
    n = drug_one.shape[0]
    assert drug_two.shape[0] == n
    # TODO(synk): masked BN stats + row padding for batches not divisible by 8.
    assert n % 8 == 0, "flattened drug row count must be a multiple of 8"

    net, llm, prd = params["net"], params["llm_net"], params["predictor"]
    inputs = (xp_flat, labels_flat,
              params["llm_to_logits_w"], params["llm_to_logits_b"],
              drug_one, drug_two,
              net["w1"], net["w2"], net["w3"], net["bn"],
              llm["w1"], llm["w2"], llm["w3"], llm["bn"],
              prd["w1"], prd["w2"], prd["aux"])

    def _full_spec(a):
        nd = a.ndim
        return pl.BlockSpec(a.shape, lambda i, _nd=nd: (0,) * _nd)

    kernel = functools.partial(_ssl_fused_kernel, n_rows=n)
    out = pl.pallas_call(
        kernel,
        out_shape=jax.ShapeDtypeStruct((2, 8, LANE), jnp.float32),
        grid_spec=pltpu.PrefetchScalarGridSpec(
            num_scalar_prefetch=0,
            grid=(2,),                                   # branch axis
            in_specs=[_full_spec(a) for a in inputs],
            out_specs=pl.BlockSpec((1, 8, LANE), lambda i: (i, 0, 0))),
        compiler_params=pltpu.CompilerParams(
            dimension_semantics=("parallel",)),          # both TCs on v7x
    )(*inputs)
    return {"drug_ssl": out[0, 0, 0], "prot_ssl": out[1, 0, 0]}


# ----------------------------------------------------------------------------
# MLM masking glue (random subset selection, plain JAX, jit-friendly)
# ----------------------------------------------------------------------------
def get_mask_subset_with_prob(mask, prob, key):
    batch, seq_len = mask.shape
    max_masked = math.ceil(prob * seq_len)
    num_tokens = jnp.sum(mask, axis=-1, keepdims=True)
    mask_excess = jnp.cumsum(mask.astype(jnp.int32), axis=-1) > jnp.ceil(num_tokens * prob)
    mask_excess = mask_excess[:, :max_masked]
    rand = jax.random.uniform(key, (batch, seq_len))
    rand = jnp.where(mask, rand, -1e9)
    sampled_indices = jax.lax.top_k(rand, max_masked)[1]
    sampled_indices = jnp.where(mask_excess, 0, sampled_indices + 1)
    new_mask = jnp.zeros((batch, seq_len + 1), dtype=bool)
    new_mask = new_mask.at[jnp.arange(batch)[:, None], sampled_indices].set(True)
    return new_mask[:, 1:]


# ----------------------------------------------------------------------------
# Parameter initialization (deterministic, synthetic).  Matmul weights are
# stored bf16; BN/bias params are packed into one (4, hidden) f32 slab each.
# ----------------------------------------------------------------------------
def _w(key, shape, fan_in):
    return (jax.random.normal(key, shape, jnp.float32)
            / math.sqrt(fan_in)).astype(jnp.bfloat16)


def init_simsiam_mlp(key, dim, proj_out, hidden=512):
    k1, k2, k3 = jax.random.split(key, 3)
    bn = jnp.concatenate([jnp.ones((1, hidden), jnp.float32),    # g1
                          jnp.zeros((1, hidden), jnp.float32),   # b1
                          jnp.ones((1, hidden), jnp.float32),    # g2
                          jnp.zeros((1, hidden), jnp.float32)],  # b2
                         axis=0)
    return {"w1": _w(k1, (dim, hidden), dim),
            "w2": _w(k2, (hidden, hidden), hidden),
            "w3": _w(k3, (hidden, proj_out), hidden),
            "bn": bn}


def init_predictor_mlp(key, dim, proj_out, hidden):
    assert hidden >= proj_out
    k1, k2 = jax.random.split(key, 2)
    aux = jnp.concatenate([jnp.zeros((1, hidden), jnp.float32),   # b1
                           jnp.ones((1, hidden), jnp.float32),    # gamma
                           jnp.zeros((1, hidden), jnp.float32),   # beta
                           jnp.zeros((1, hidden), jnp.float32)],  # b2 (first proj_out lanes)
                          axis=0)
    return {"w1": _w(k1, (dim, hidden), dim),
            "w2": _w(k2, (hidden, proj_out), hidden),
            "aux": aux}


def init_ssl_params(key, *, n_prot_feature, vd_dim, xd_dim, n_hidden=128):
    k_llm, k_net, k_llm_net, k_pred = jax.random.split(key, 4)
    k_in = n_prot_feature + 1                        # 33 (K left unpadded)
    c_pad = _round_up(max(N_CLASSES, LANE), LANE)    # 27 -> 128
    w = jax.random.normal(k_llm, (k_in, N_CLASSES), jnp.float32) / math.sqrt(k_in)
    w_padded = jnp.zeros((k_in, c_pad), jnp.float32).at[:, :N_CLASSES].set(w)
    # Padded-class mask baked into the bias: lanes >= 27 get -1e30.
    b = jnp.full((1, c_pad), -1e30, jnp.float32).at[:, :N_CLASSES].set(0.0)
    return {
        "llm_to_logits_w": w_padded.astype(jnp.bfloat16),
        "llm_to_logits_b": b,
        "net": init_simsiam_mlp(k_net, vd_dim, n_hidden, 512),
        "llm_net": init_simsiam_mlp(k_llm_net, xd_dim, n_hidden, 512),
        "predictor": init_predictor_mlp(k_pred, n_hidden, n_hidden, n_hidden * 4),
    }


# ----------------------------------------------------------------------------
# SSL forward: mask glue in plain JAX, losses in ONE fused pallas_call
# ----------------------------------------------------------------------------
def ssl_forward(params, vp, xp, fill_bit_p, vd, xd, mask_key, p_mode="xp"):
    del fill_bit_p  # only used by the external extractor (p_mode != 'xp')
    assert p_mode == "xp"  # TODO(synk): other modes require prot_extractor

    # ---- prot_mlm (mode='xp') label construction ----
    no_mask = (vp == 0)                                   # mask_with_tokens({0})
    mask = get_mask_subset_with_prob(~no_mask, 0.15, mask_key)
    labels = jnp.where(mask, vp, 0).astype(jnp.int32)     # masked_fill(~mask, pad)
    b, l = vp.shape
    k_in = xp.shape[-1]
    xp_flat = xp.reshape(b * l, k_in).astype(jnp.bfloat16)   # pre-cast, no K pad
    labels_flat = labels.reshape(b * l, 1)

    # ---- drug_simsiam inputs ----
    drug_one = vd.reshape(-1, vd.shape[-1]).astype(jnp.bfloat16)
    drug_two = xd.reshape(-1, xd.shape[-1]).astype(jnp.bfloat16)

    return fused_ssl_losses(params, xp_flat, labels_flat, drug_one, drug_two)


# ----------------------------------------------------------------------------
if __name__ == "__main__":
    key = jax.random.PRNGKey(0)
    k_vp, k_xp, k_vd, k_xd, k_params, k_mask = jax.random.split(key, 6)

    B, L = 2, 16                # protein batch / sequence length
    N_PROT_FEATURE = 32         # -> llm_to_logits input dim 33, output 27
    VD_DIM, XD_DIM = 64, 96     # drug feature dims
    N_HIDDEN = 128

    vp = jax.random.randint(k_vp, (B, L), 0, 27, dtype=jnp.int32)        # tokens, 0 = pad
    xp = jax.random.normal(k_xp, (B, L, N_PROT_FEATURE + 1), jnp.float32)
    fill_bit_p = jnp.zeros((B, L), jnp.int32)                            # unused (p_mode='xp')
    vd = jax.random.normal(k_vd, (2, 4, VD_DIM), jnp.float32)            # '... d -> (...) d' => (8, 64)
    xd = jax.random.normal(k_xd, (2, 4, XD_DIM), jnp.float32)            # => (8, 96)

    params = init_ssl_params(k_params, n_prot_feature=N_PROT_FEATURE,
                             vd_dim=VD_DIM, xd_dim=XD_DIM, n_hidden=N_HIDDEN)

    fwd = jax.jit(ssl_forward, static_argnames=("p_mode",))
    out = fwd(params, vp, xp, fill_bit_p, vd, xd, k_mask, p_mode="xp")
    out = jax.block_until_ready(out)

    assert jnp.isfinite(out["prot_ssl"]) and jnp.isfinite(out["drug_ssl"])
    print("KERNEL_OK")
</pallas_src>

<mosaic_0001>
module attributes {stable_mosaic.version = 11 : i64} {
  func.func @_ssl_fused_kernel(%arg0: i32, %arg1: memref<32x33xbf16, #tpu.memory_space<vmem>>, %arg2: memref<32x1xi32, #tpu.memory_space<vmem>>, %arg3: memref<33x128xbf16, #tpu.memory_space<vmem>>, %arg4: memref<1x128xf32, #tpu.memory_space<vmem>>, %arg5: memref<8x64xbf16, #tpu.memory_space<vmem>>, %arg6: memref<8x96xbf16, #tpu.memory_space<vmem>>, %arg7: memref<64x512xbf16, #tpu.memory_space<vmem>>, %arg8: memref<512x512xbf16, #tpu.memory_space<vmem>>, %arg9: memref<512x128xbf16, #tpu.memory_space<vmem>>, %arg10: memref<4x512xf32, #tpu.memory_space<vmem>>, %arg11: memref<96x512xbf16, #tpu.memory_space<vmem>>, %arg12: memref<512x512xbf16, #tpu.memory_space<vmem>>, %arg13: memref<512x128xbf16, #tpu.memory_space<vmem>>, %arg14: memref<4x512xf32, #tpu.memory_space<vmem>>, %arg15: memref<128x512xbf16, #tpu.memory_space<vmem>>, %arg16: memref<512x128xbf16, #tpu.memory_space<vmem>>, %arg17: memref<4x512xf32, #tpu.memory_space<vmem>>, %arg18: memref<1x8x128xf32, #tpu.memory_space<vmem>>) attributes {dimension_semantics = [#tpu.dimension_semantics<parallel>], iteration_bounds = array<i64: 2>, scalar_prefetch = 0 : i64, scratch_operands = 0 : i64, tpu.core_type = #tpu.core_type<tc>, window_params = [{pipeline_mode = #tpu.pipeline_mode<synchronous>, transform_indices = @transform_0, window_bounds = array<i64: 32, 33>}, {pipeline_mode = #tpu.pipeline_mode<synchronous>, transform_indices = @transform_1, window_bounds = array<i64: 32, 1>}, {pipeline_mode = #tpu.pipeline_mode<synchronous>, transform_indices = @transform_2, window_bounds = array<i64: 33, 128>}, {pipeline_mode = #tpu.pipeline_mode<synchronous>, transform_indices = @transform_3, window_bounds = array<i64: 1, 128>}, {pipeline_mode = #tpu.pipeline_mode<synchronous>, transform_indices = @transform_4, window_bounds = array<i64: 8, 64>}, {pipeline_mode = #tpu.pipeline_mode<synchronous>, transform_indices = @transform_5, window_bounds = array<i64: 8, 96>}, {pipeline_mode = #tpu.pipeline_mode<synchronous>, transform_indices = @transform_6, window_bounds = array<i64: 64, 512>}, {pipeline_mode = #tpu.pipeline_mode<synchronous>, transform_indices = @transform_7, window_bounds = array<i64: 512, 512>}, {pipeline_mode = #tpu.pipeline_mode<synchronous>, transform_indices = @transform_8, window_bounds = array<i64: 512, 128>}, {pipeline_mode = #tpu.pipeline_mode<synchronous>, transform_indices = @transform_9, window_bounds = array<i64: 4, 512>}, {pipeline_mode = #tpu.pipeline_mode<synchronous>, transform_indices = @transform_10, window_bounds = array<i64: 96, 512>}, {pipeline_mode = #tpu.pipeline_mode<synchronous>, transform_indices = @transform_11, window_bounds = array<i64: 512, 512>}, {pipeline_mode = #tpu.pipeline_mode<synchronous>, transform_indices = @transform_12, window_bounds = array<i64: 512, 128>}, {pipeline_mode = #tpu.pipeline_mode<synchronous>, transform_indices = @transform_13, window_bounds = array<i64: 4, 512>}, {pipeline_mode = #tpu.pipeline_mode<synchronous>, transform_indices = @transform_14, window_bounds = array<i64: 128, 512>}, {pipeline_mode = #tpu.pipeline_mode<synchronous>, transform_indices = @transform_15, window_bounds = array<i64: 512, 128>}, {pipeline_mode = #tpu.pipeline_mode<synchronous>, transform_indices = @transform_16, window_bounds = array<i64: 4, 512>}, {transform_indices = @transform_17, window_bounds = array<i64: 1, 8, 128>}]} {
    %c0_i32 = arith.constant 0 : i32
    %0 = arith.cmpi eq, %arg0, %c0_i32 : i32
    %1 = arith.extui %0 : i1 to i32
    %c0_i32_0 = arith.constant 0 : i32
    %2 = arith.cmpi ne, %1, %c0_i32_0 : i32
    scf.if %2 {
      %c0 = arith.constant 0 : index
      %c0_2 = arith.constant 0 : index
      %6 = vector.load %arg5[%c0, %c0_2] : memref<8x64xbf16, #tpu.memory_space<vmem>>, vector<8x64xbf16>
      %c0_3 = arith.constant 0 : index
      %c0_4 = arith.constant 0 : index
      %7 = vector.load %arg10[%c0_3, %c0_4] : memref<4x512xf32, #tpu.memory_space<vmem>>, vector<4x512xf32>
      %8 = vector.extract_strided_slice %7 {offsets = [0, 0], sizes = [1, 512], strides = [1, 1]} : vector<4x512xf32> to vector<1x512xf32>
      %9 = vector.extract_strided_slice %7 {offsets = [1, 0], sizes = [1, 512], strides = [1, 1]} : vector<4x512xf32> to vector<1x512xf32>
      %10 = vector.extract_strided_slice %7 {offsets = [2, 0], sizes = [1, 512], strides = [1, 1]} : vector<4x512xf32> to vector<1x512xf32>
      %11 = vector.extract_strided_slice %7 {offsets = [3, 0], sizes = [1, 512], strides = [1, 1]} : vector<4x512xf32> to vector<1x512xf32>
      %c0_5 = arith.constant 0 : index
      %c0_6 = arith.constant 0 : index
      %12 = vector.load %arg7[%c0_5, %c0_6] : memref<64x512xbf16, #tpu.memory_space<vmem>>, vector<64x512xbf16>
      %cst = arith.constant dense<0.000000e+00> : vector<8x512xf32>
      %13 = tpu.matmul %6, %12, %cst {dimension_numbers = #tpu.dot_dimension_numbers<[1], [0], [0], [1], [0, 0, 1, 1], [], []>} : vector<8x64xbf16>, vector<64x512xbf16>, vector<8x512xf32> -> vector<8x512xf32>
      %cst_7 = arith.constant dense<0.000000e+00> : vector<512xf32>
      %14 = vector.multi_reduction <add>, %13, %cst_7 [0] : vector<8x512xf32> to vector<512xf32>
      %15 = vector.shape_cast %14 : vector<512xf32> to vector<1x512xf32>
      %cst_8 = arith.constant 8.000000e+00 : f32
      %16 = vector.broadcast %cst_8 : f32 to vector<1x512xf32>
      %17 = arith.divf %15, %16 : vector<1x512xf32>
      %18 = arith.mulf %13, %13 : vector<8x512xf32>
      %cst_9 = arith.constant dense<0.000000e+00> : vector<512xf32>
      %19 = vector.multi_reduction <add>, %18, %cst_9 [0] : vector<8x512xf32> to vector<512xf32>
      %20 = vector.shape_cast %19 : vector<512xf32> to vector<1x512xf32>
      %cst_10 = arith.constant 8.000000e+00 : f32
      %21 = vector.broadcast %cst_10 : f32 to vector<1x512xf32>
      %22 = arith.divf %20, %21 : vector<1x512xf32>
      %23 = arith.mulf %17, %17 : vector<1x512xf32>
      %24 = arith.subf %22, %23 : vector<1x512xf32>
      %cst_11 = arith.constant 0.000000e+00 : f32
      %25 = vector.broadcast %cst_11 : f32 to vector<1x512xf32>
      %26 = arith.maximumf %24, %25 : vector<1x512xf32>
      %27 = vector.broadcast %17 : vector<1x512xf32> to vector<8x512xf32>
      %28 = arith.subf %13, %27 : vector<8x512xf32>
      %cst_12 = arith.constant 9.99999974E-6 : f32
      %29 = vector.broadcast %cst_12 : f32 to vector<1x512xf32>
      %30 = arith.addf %26, %29 : vector<1x512xf32>
      %31 = math.rsqrt %30 : vector<1x512xf32>
      %32 = vector.broadcast %31 : vector<1x512xf32> to vector<8x512xf32>
      %33 = arith.mulf %28, %32 : vector<8x512xf32>
      %34 = vector.broadcast %8 : vector<1x512xf32> to vector<8x512xf32>
      %35 = arith.mulf %33, %34 : vector<8x512xf32>
      %36 = vector.broadcast %9 : vector<1x512xf32> to vector<8x512xf32>
      %37 = arith.addf %35, %36 : vector<8x512xf32>
      %cst_13 = arith.constant 0.000000e+00 : f32
      %38 = vector.broadcast %cst_13 : f32 to vector<8x512xf32>
      %39 = arith.maximumf %37, %38 : vector<8x512xf32>
      %40 = arith.truncf %39 : vector<8x512xf32> to vector<8x512xbf16>
      %c0_14 = arith.constant 0 : index
      %c0_15 = arith.constant 0 : index
      %41 = vector.load %arg8[%c0_14, %c0_15] : memref<512x512xbf16, #tpu.memory_space<vmem>>, vector<512x512xbf16>
      %cst_16 = arith.constant dense<0.000000e+00> : vector<8x512xf32>
      %42 = tpu.matmul %40, %41, %cst_16 {dimension_numbers = #tpu.dot_dimension_numbers<[1], [0], [0], [1], [0, 0, 1, 1], [], []>} : vector<8x512xbf16>, vector<512x512xbf16>, vector<8x512xf32> -> vector<8x512xf32>
      %cst_17 = arith.constant dense<0.000000e+00> : vector<512xf32>
      %43 = vector.multi_reduction <add>, %42, %cst_17 [0] : vector<8x512xf32> to vector<512xf32>
      %44 = vector.shape_cast %43 : vector<512xf32> to vector<1x512xf32>
      %cst_18 = arith.constant 8.000000e+00 : f32
      %45 = vector.broadcast %cst_18 : f32 to vector<1x512xf32>
      %46 = arith.divf %44, %45 : vector<1x512xf32>
      %47 = arith.mulf %42, %42 : vector<8x512xf32>
      %cst_19 = arith.constant dense<0.000000e+00> : vector<512xf32>
      %48 = vector.multi_reduction <add>, %47, %cst_19 [0] : vector<8x512xf32> to vector<512xf32>
      %49 = vector.shape_cast %48 : vector<512xf32> to vector<1x512xf32>
      %cst_20 = arith.constant 8.000000e+00 : f32
      %50 = vector.broadcast %cst_20 : f32 to vector<1x512xf32>
      %51 = arith.divf %49, %50 : vector<1x512xf32>
      %52 = arith.mulf %46, %46 : vector<1x512xf32>
      %53 = arith.subf %51, %52 : vector<1x512xf32>
      %cst_21 = arith.constant 0.000000e+00 : f32
      %54 = vector.broadcast %cst_21 : f32 to vector<1x512xf32>
      %55 = arith.maximumf %53, %54 : vector<1x512xf32>
      %56 = vector.broadcast %46 : vector<1x512xf32> to vector<8x512xf32>
      %57 = arith.subf %42, %56 : vector<8x512xf32>
      %cst_22 = arith.constant 9.99999974E-6 : f32
      %58 = vector.broadcast %cst_22 : f32 to vector<1x512xf32>
      %59 = arith.addf %55, %58 : vector<1x512xf32>
      %60 = math.rsqrt %59 : vector<1x512xf32>
      %61 = vector.broadcast %60 : vector<1x512xf32> to vector<8x512xf32>
      %62 = arith.mulf %57, %61 : vector<8x512xf32>
      %63 = vector.broadcast %10 : vector<1x512xf32> to vector<8x512xf32>
      %64 = arith.mulf %62, %63 : vector<8x512xf32>
      %65 = vector.broadcast %11 : vector<1x512xf32> to vector<8x512xf32>
      %66 = arith.addf %64, %65 : vector<8x512xf32>
      %cst_23 = arith.constant 0.000000e+00 : f32
      %67 = vector.broadcast %cst_23 : f32 to vector<8x512xf32>
      %68 = arith.maximumf %66, %67 : vector<8x512xf32>
      %69 = arith.truncf %68 : vector<8x512xf32> to vector<8x512xbf16>
      %c0_24 = arith.constant 0 : index
      %c0_25 = arith.constant 0 : index
      %70 = vector.load %arg9[%c0_24, %c0_25] : memref<512x128xbf16, #tpu.memory_space<vmem>>, vector<512x128xbf16>
      %cst_26 = arith.constant dense<0.000000e+00> : vector<8x128xf32>
      %71 = tpu.matmul %69, %70, %cst_26 {dimension_numbers = #tpu.dot_dimension_numbers<[1], [0], [0], [1], [0, 0, 1, 1], [], []>} : vector<8x512xbf16>, vector<512x128xbf16>, vector<8x128xf32> -> vector<8x128xf32>
      %cst_27 = arith.constant dense<0.000000e+00> : vector<128xf32>
      %72 = vector.multi_reduction <add>, %71, %cst_27 [0] : vector<8x128xf32> to vector<128xf32>
      %73 = vector.shape_cast %72 : vector<128xf32> to vector<1x128xf32>
      %cst_28 = arith.constant 8.000000e+00 : f32
      %74 = vector.broadcast %cst_28 : f32 to vector<1x128xf32>
      %75 = arith.divf %73, %74 : vector<1x128xf32>
      %76 = arith.mulf %71, %71 : vector<8x128xf32>
      %cst_29 = arith.constant dense<0.000000e+00> : vector<128xf32>
      %77 = vector.multi_reduction <add>, %76, %cst_29 [0] : vector<8x128xf32> to vector<128xf32>
      %78 = vector.shape_cast %77 : vector<128xf32> to vector<1x128xf32>
      %cst_30 = arith.constant 8.000000e+00 : f32
      %79 = vector.broadcast %cst_30 : f32 to vector<1x128xf32>
      %80 = arith.divf %78, %79 : vector<1x128xf32>
      %81 = arith.mulf %75, %75 : vector<1x128xf32>
      %82 = arith.subf %80, %81 : vector<1x128xf32>
      %cst_31 = arith.constant 0.000000e+00 : f32
      %83 = vector.broadcast %cst_31 : f32 to vector<1x128xf32>
      %84 = arith.maximumf %82, %83 : vector<1x128xf32>
      %85 = vector.broadcast %75 : vector<1x128xf32> to vector<8x128xf32>
      %86 = arith.subf %71, %85 : vector<8x128xf32>
      %cst_32 = arith.constant 9.99999974E-6 : f32
      %87 = vector.broadcast %cst_32 : f32 to vector<1x128xf32>
      %88 = arith.addf %84, %87 : vector<1x128xf32>
      %89 = math.rsqrt %88 : vector<1x128xf32>
      %90 = vector.broadcast %89 : vector<1x128xf32> to vector<8x128xf32>
      %91 = arith.mulf %86, %90 : vector<8x128xf32>
      %c0_33 = arith.constant 0 : index
      %c0_34 = arith.constant 0 : index
      %92 = vector.load %arg6[%c0_33, %c0_34] : memref<8x96xbf16, #tpu.memory_space<vmem>>, vector<8x96xbf16>
      %c0_35 = arith.constant 0 : index
      %c0_36 = arith.constant 0 : index
      %93 = vector.load %arg14[%c0_35, %c0_36] : memref<4x512xf32, #tpu.memory_space<vmem>>, vector<4x512xf32>
      %94 = vector.extract_strided_slice %93 {offsets = [0, 0], sizes = [1, 512], strides = [1, 1]} : vector<4x512xf32> to vector<1x512xf32>
      %95 = vector.extract_strided_slice %93 {offsets = [1, 0], sizes = [1, 512], strides = [1, 1]} : vector<4x512xf32> to vector<1x512xf32>
      %96 = vector.extract_strided_slice %93 {offsets = [2, 0], sizes = [1, 512], strides = [1, 1]} : vector<4x512xf32> to vector<1x512xf32>
      %97 = vector.extract_strided_slice %93 {offsets = [3, 0], sizes = [1, 512], strides = [1, 1]} : vector<4x512xf32> to vector<1x512xf32>
      %c0_37 = arith.constant 0 : index
      %c0_38 = arith.constant 0 : index
      %98 = vector.load %arg11[%c0_37, %c0_38] : memref<96x512xbf16, #tpu.memory_space<vmem>>, vector<96x512xbf16>
      %cst_39 = arith.constant dense<0.000000e+00> : vector<8x512xf32>
      %99 = tpu.matmul %92, %98, %cst_39 {dimension_numbers = #tpu.dot_dimension_numbers<[1], [0], [0], [1], [0, 0, 1, 1], [], []>} : vector<8x96xbf16>, vector<96x512xbf16>, vector<8x512xf32> -> vector<8x512xf32>
      %cst_40 = arith.constant dense<0.000000e+00> : vector<512xf32>
      %100 = vector.multi_reduction <add>, %99, %cst_40 [0] : vector<8x512xf32> to vector<512xf32>
      %101 = vector.shape_cast %100 : vector<512xf32> to vector<1x512xf32>
      %cst_41 = arith.constant 8.000000e+00 : f32
      %102 = vector.broadcast %cst_41 : f32 to vector<1x512xf32>
      %103 = arith.divf %101, %102 : vector<1x512xf32>
      %104 = arith.mulf %99, %99 : vector<8x512xf32>
      %cst_42 = arith.constant dense<0.000000e+00> : vector<512xf32>
      %105 = vector.multi_reduction <add>, %104, %cst_42 [0] : vector<8x512xf32> to vector<512xf32>
      %106 = vector.shape_cast %105 : vector<512xf32> to vector<1x512xf32>
      %cst_43 = arith.constant 8.000000e+00 : f32
      %107 = vector.broadcast %cst_43 : f32 to vector<1x512xf32>
      %108 = arith.divf %106, %107 : vector<1x512xf32>
      %109 = arith.mulf %103, %103 : vector<1x512xf32>
      %110 = arith.subf %108, %109 : vector<1x512xf32>
      %cst_44 = arith.constant 0.000000e+00 : f32
      %111 = vector.broadcast %cst_44 : f32 to vector<1x512xf32>
      %112 = arith.maximumf %110, %111 : vector<1x512xf32>
      %113 = vector.broadcast %103 : vector<1x512xf32> to vector<8x512xf32>
      %114 = arith.subf %99, %113 : vector<8x512xf32>
      %cst_45 = arith.constant 9.99999974E-6 : f32
      %115 = vector.broadcast %cst_45 : f32 to vector<1x512xf32>
      %116 = arith.addf %112, %115 : vector<1x512xf32>
      %117 = math.rsqrt %116 : vector<1x512xf32>
      %118 = vector.broadcast %117 : vector<1x512xf32> to vector<8x512xf32>
      %119 = arith.mulf %114, %118 : vector<8x512xf32>
      %120 = vector.broadcast %94 : vector<1x512xf32> to vector<8x512xf32>
      %121 = arith.mulf %119, %120 : vector<8x512xf32>
      %122 = vector.broadcast %95 : vector<1x512xf32> to vector<8x512xf32>
      %123 = arith.addf %121, %122 : vector<8x512xf32>
      %cst_46 = arith.constant 0.000000e+00 : f32
      %124 = vector.broadcast %cst_46 : f32 to vector<8x512xf32>
      %125 = arith.maximumf %123, %124 : vector<8x512xf32>
      %126 = arith.truncf %125 : vector<8x512xf32> to vector<8x512xbf16>
      %c0_47 = arith.constant 0 : index
      %c0_48 = arith.constant 0 : index
      %127 = vector.load %arg12[%c0_47, %c0_48] : memref<512x512xbf16, #tpu.memory_space<vmem>>, vector<512x512xbf16>
      %cst_49 = arith.constant dense<0.000000e+00> : vector<8x512xf32>
      %128 = tpu.matmul %126, %127, %cst_49 {dimension_numbers = #tpu.dot_dimension_numbers<[1], [0], [0], [1], [0, 0, 1, 1], [], []>} : vector<8x512xbf16>, vector<512x512xbf16>, vector<8x512xf32> -> vector<8x512xf32>
      %cst_50 = arith.constant dense<0.000000e+00> : vector<512xf32>
      %129 = vector.multi_reduction <add>, %128, %cst_50 [0] : vector<8x512xf32> to vector<512xf32>
      %130 = vector.shape_cast %129 : vector<512xf32> to vector<1x512xf32>
      %cst_51 = arith.constant 8.000000e+00 : f32
      %131 = vector.broadcast %cst_51 : f32 to vector<1x512xf32>
      %132 = arith.divf %130, %131 : vector<1x512xf32>
      %133 = arith.mulf %128, %128 : vector<8x512xf32>
      %cst_52 = arith.constant dense<0.000000e+00> : vector<512xf32>
      %134 = vector.multi_reduction <add>, %133, %cst_52 [0] : vector<8x512xf32> to vector<512xf32>
      %135 = vector.shape_cast %134 : vector<512xf32> to vector<1x512xf32>
      %cst_53 = arith.constant 8.000000e+00 : f32
      %136 = vector.broadcast %cst_53 : f32 to vector<1x512xf32>
      %137 = arith.divf %135, %136 : vector<1x512xf32>
      %138 = arith.mulf %132, %132 : vector<1x512xf32>
      %139 = arith.subf %137, %138 : vector<1x512xf32>
      %cst_54 = arith.constant 0.000000e+00 : f32
      %140 = vector.broadcast %cst_54 : f32 to vector<1x512xf32>
      %141 = arith.maximumf %139, %140 : vector<1x512xf32>
      %142 = vector.broadcast %132 : vector<1x512xf32> to vector<8x512xf32>
      %143 = arith.subf %128, %142 : vector<8x512xf32>
      %cst_55 = arith.constant 9.99999974E-6 : f32
      %144 = vector.broadcast %cst_55 : f32 to vector<1x512xf32>
      %145 = arith.addf %141, %144 : vector<1x512xf32>
      %146 = math.rsqrt %145 : vector<1x512xf32>
      %147 = vector.broadcast %146 : vector<1x512xf32> to vector<8x512xf32>
      %148 = arith.mulf %143, %147 : vector<8x512xf32>
      %149 = vector.broadcast %96 : vector<1x512xf32> to vector<8x512xf32>
      %150 = arith.mulf %148, %149 : vector<8x512xf32>
      %151 = vector.broadcast %97 : vector<1x512xf32> to vector<8x512xf32>
      %152 = arith.addf %150, %151 : vector<8x512xf32>
      %cst_56 = arith.constant 0.000000e+00 : f32
      %153 = vector.broadcast %cst_56 : f32 to vector<8x512xf32>
      %154 = arith.maximumf %152, %153 : vector<8x512xf32>
      %155 = arith.truncf %154 : vector<8x512xf32> to vector<8x512xbf16>
      %c0_57 = arith.constant 0 : index
      %c0_58 = arith.constant 0 : index
      %156 = vector.load %arg13[%c0_57, %c0_58] : memref<512x128xbf16, #tpu.memory_space<vmem>>, vector<512x128xbf16>
      %cst_59 = arith.constant dense<0.000000e+00> : vector<8x128xf32>
      %157 = tpu.matmul %155, %156, %cst_59 {dimension_numbers = #tpu.dot_dimension_numbers<[1], [0], [0], [1], [0, 0, 1, 1], [], []>} : vector<8x512xbf16>, vector<512x128xbf16>, vector<8x128xf32> -> vector<8x128xf32>
      %cst_60 = arith.constant dense<0.000000e+00> : vector<128xf32>
      %158 = vector.multi_reduction <add>, %157, %cst_60 [0] : vector<8x128xf32> to vector<128xf32>
      %159 = vector.shape_cast %158 : vector<128xf32> to vector<1x128xf32>
      %cst_61 = arith.constant 8.000000e+00 : f32
      %160 = vector.broadcast %cst_61 : f32 to vector<1x128xf32>
      %161 = arith.divf %159, %160 : vector<1x128xf32>
      %162 = arith.mulf %157, %157 : vector<8x128xf32>
      %cst_62 = arith.constant dense<0.000000e+00> : vector<128xf32>
      %163 = vector.multi_reduction <add>, %162, %cst_62 [0] : vector<8x128xf32> to vector<128xf32>
      %164 = vector.shape_cast %163 : vector<128xf32> to vector<1x128xf32>
      %cst_63 = arith.constant 8.000000e+00 : f32
      %165 = vector.broadcast %cst_63 : f32 to vector<1x128xf32>
      %166 = arith.divf %164, %165 : vector<1x128xf32>
      %167 = arith.mulf %161, %161 : vector<1x128xf32>
      %168 = arith.subf %166, %167 : vector<1x128xf32>
      %cst_64 = arith.constant 0.000000e+00 : f32
      %169 = vector.broadcast %cst_64 : f32 to vector<1x128xf32>
      %170 = arith.maximumf %168, %169 : vector<1x128xf32>
      %171 = vector.broadcast %161 : vector<1x128xf32> to vector<8x128xf32>
      %172 = arith.subf %157, %171 : vector<8x128xf32>
      %cst_65 = arith.constant 9.99999974E-6 : f32
      %173 = vector.broadcast %cst_65 : f32 to vector<1x128xf32>
      %174 = arith.addf %170, %173 : vector<1x128xf32>
      %175 = math.rsqrt %174 : vector<1x128xf32>
      %176 = vector.broadcast %175 : vector<1x128xf32> to vector<8x128xf32>
      %177 = arith.mulf %172, %176 : vector<8x128xf32>
      %c0_66 = arith.constant 0 : index
      %c0_67 = arith.constant 0 : index
      %178 = vector.load %arg17[%c0_66, %c0_67] : memref<4x512xf32, #tpu.memory_space<vmem>>, vector<4x512xf32>
      %179 = vector.extract_strided_slice %178 {offsets = [0, 0], sizes = [1, 512], strides = [1, 1]} : vector<4x512xf32> to vector<1x512xf32>
      %180 = vector.extract_strided_slice %178 {offsets = [1, 0], sizes = [1, 512], strides = [1, 1]} : vector<4x512xf32> to vector<1x512xf32>
      %181 = vector.extract_strided_slice %178 {offsets = [2, 0], sizes = [1, 512], strides = [1, 1]} : vector<4x512xf32> to vector<1x512xf32>
      %182 = vector.extract_strided_slice %178 {offsets = [3, 0], sizes = [1, 128], strides = [1, 1]} : vector<4x512xf32> to vector<1x128xf32>
      %183 = tpu.concatenate %91, %177 in 0 : vector<8x128xf32>, vector<8x128xf32> -> vector<16x128xf32>
      %184 = arith.truncf %183 : vector<16x128xf32> to vector<16x128xbf16>
      %c0_68 = arith.constant 0 : index
      %c0_69 = arith.constant 0 : index
      %185 = vector.load %arg15[%c0_68, %c0_69] : memref<128x512xbf16, #tpu.memory_space<vmem>>, vector<128x512xbf16>
      %cst_70 = arith.constant dense<0.000000e+00> : vector<16x512xf32>
      %186 = tpu.matmul %184, %185, %cst_70 {dimension_numbers = #tpu.dot_dimension_numbers<[1], [0], [0], [1], [0, 0, 1, 1], [], []>} : vector<16x128xbf16>, vector<128x512xbf16>, vector<16x512xf32> -> vector<16x512xf32>
      %187 = vector.broadcast %179 : vector<1x512xf32> to vector<16x512xf32>
      %188 = arith.addf %186, %187 : vector<16x512xf32>
      %189 = vector.extract_strided_slice %188 {offsets = [0, 0], sizes = [8, 512], strides = [1, 1]} : vector<16x512xf32> to vector<8x512xf32>
      %cst_71 = arith.constant dense<0.000000e+00> : vector<512xf32>
      %190 = vector.multi_reduction <add>, %189, %cst_71 [0] : vector<8x512xf32> to vector<512xf32>
      %191 = vector.shape_cast %190 : vector<512xf32> to vector<1x512xf32>
      %cst_72 = arith.constant 8.000000e+00 : f32
      %192 = vector.broadcast %cst_72 : f32 to vector<1x512xf32>
      %193 = arith.divf %191, %192 : vector<1x512xf32>
      %194 = arith.mulf %189, %189 : vector<8x512xf32>
      %cst_73 = arith.constant dense<0.000000e+00> : vector<512xf32>
      %195 = vector.multi_reduction <add>, %194, %cst_73 [0] : vector<8x512xf32> to vector<512xf32>
      %196 = vector.shape_cast %195 : vector<512xf32> to vector<1x512xf32>
      %cst_74 = arith.constant 8.000000e+00 : f32
      %197 = vector.broadcast %cst_74 : f32 to vector<1x512xf32>
      %198 = arith.divf %196, %197 : vector<1x512xf32>
      %199 = arith.mulf %193, %193 : vector<1x512xf32>
      %200 = arith.subf %198, %199 : vector<1x512xf32>
      %cst_75 = arith.constant 0.000000e+00 : f32
      %201 = vector.broadcast %cst_75 : f32 to vector<1x512xf32>
      %202 = arith.maximumf %200, %201 : vector<1x512xf32>
      %203 = vector.broadcast %193 : vector<1x512xf32> to vector<8x512xf32>
      %204 = arith.subf %189, %203 : vector<8x512xf32>
      %cst_76 = arith.constant 9.99999974E-6 : f32
      %205 = vector.broadcast %cst_76 : f32 to vector<1x512xf32>
      %206 = arith.addf %202, %205 : vector<1x512xf32>
      %207 = math.rsqrt %206 : vector<1x512xf32>
      %208 = vector.broadcast %207 : vector<1x512xf32> to vector<8x512xf32>
      %209 = arith.mulf %204, %208 : vector<8x512xf32>
      %210 = vector.broadcast %180 : vector<1x512xf32> to vector<8x512xf32>
      %211 = arith.mulf %209, %210 : vector<8x512xf32>
      %212 = vector.broadcast %181 : vector<1x512xf32> to vector<8x512xf32>
      %213 = arith.addf %211, %212 : vector<8x512xf32>
      %cst_77 = arith.constant 0.000000e+00 : f32
      %214 = vector.broadcast %cst_77 : f32 to vector<8x512xf32>
      %215 = arith.maximumf %213, %214 : vector<8x512xf32>
      %216 = vector.extract_strided_slice %188 {offsets = [8, 0], sizes = [8, 512], strides = [1, 1]} : vector<16x512xf32> to vector<8x512xf32>
      %cst_78 = arith.constant dense<0.000000e+00> : vector<512xf32>
      %217 = vector.multi_reduction <add>, %216, %cst_78 [0] : vector<8x512xf32> to vector<512xf32>
      %218 = vector.shape_cast %217 : vector<512xf32> to vector<1x512xf32>
      %cst_79 = arith.constant 8.000000e+00 : f32
      %219 = vector.broadcast %cst_79 : f32 to vector<1x512xf32>
      %220 = arith.divf %218, %219 : vector<1x512xf32>
      %221 = arith.mulf %216, %216 : vector<8x512xf32>
      %cst_80 = arith.constant dense<0.000000e+00> : vector<512xf32>
      %222 = vector.multi_reduction <add>, %221, %cst_80 [0] : vector<8x512xf32> to vector<512xf32>
      %223 = vector.shape_cast %222 : vector<512xf32> to vector<1x512xf32>
      %cst_81 = arith.constant 8.000000e+00 : f32
      %224 = vector.broadcast %cst_81 : f32 to vector<1x512xf32>
      %225 = arith.divf %223, %224 : vector<1x512xf32>
      %226 = arith.mulf %220, %220 : vector<1x512xf32>
      %227 = arith.subf %225, %226 : vector<1x512xf32>
      %cst_82 = arith.constant 0.000000e+00 : f32
      %228 = vector.broadcast %cst_82 : f32 to vector<1x512xf32>
      %229 = arith.maximumf %227, %228 : vector<1x512xf32>
      %230 = vector.broadcast %220 : vector<1x512xf32> to vector<8x512xf32>
      %231 = arith.subf %216, %230 : vector<8x512xf32>
      %cst_83 = arith.constant 9.99999974E-6 : f32
      %232 = vector.broadcast %cst_83 : f32 to vector<1x512xf32>
      %233 = arith.addf %229, %232 : vector<1x512xf32>
      %234 = math.rsqrt %233 : vector<1x512xf32>
      %235 = vector.broadcast %234 : vector<1x512xf32> to vector<8x512xf32>
      %236 = arith.mulf %231, %235 : vector<8x512xf32>
      %237 = vector.broadcast %180 : vector<1x512xf32> to vector<8x512xf32>
      %238 = arith.mulf %236, %237 : vector<8x512xf32>
      %239 = vector.broadcast %181 : vector<1x512xf32> to vector<8x512xf32>
      %240 = arith.addf %238, %239 : vector<8x512xf32>
      %cst_84 = arith.constant 0.000000e+00 : f32
      %241 = vector.broadcast %cst_84 : f32 to vector<8x512xf32>
      %242 = arith.maximumf %240, %241 : vector<8x512xf32>
      %243 = tpu.concatenate %215, %242 in 0 : vector<8x512xf32>, vector<8x512xf32> -> vector<16x512xf32>
      %244 = arith.truncf %243 : vector<16x512xf32> to vector<16x512xbf16>
      %c0_85 = arith.constant 0 : index
      %c0_86 = arith.constant 0 : index
      %245 = vector.load %arg16[%c0_85, %c0_86] : memref<512x128xbf16, #tpu.memory_space<vmem>>, vector<512x128xbf16>
      %cst_87 = arith.constant dense<0.000000e+00> : vector<16x128xf32>
      %246 = tpu.matmul %244, %245, %cst_87 {dimension_numbers = #tpu.dot_dimension_numbers<[1], [0], [0], [1], [0, 0, 1, 1], [], []>} : vector<16x512xbf16>, vector<512x128xbf16>, vector<16x128xf32> -> vector<16x128xf32>
      %247 = vector.broadcast %182 : vector<1x128xf32> to vector<16x128xf32>
      %248 = arith.addf %246, %247 : vector<16x128xf32>
      %249 = vector.extract_strided_slice %248 {offsets = [0, 0], sizes = [8, 128], strides = [1, 1]} : vector<16x128xf32> to vector<8x128xf32>
      %250 = vector.extract_strided_slice %248 {offsets = [8, 0], sizes = [8, 128], strides = [1, 1]} : vector<16x128xf32> to vector<8x128xf32>
      %251 = arith.mulf %249, %249 : vector<8x128xf32>
      %cst_88 = arith.constant dense<0.000000e+00> : vector<8xf32>
      %252 = vector.multi_reduction <add>, %251, %cst_88 [1] : vector<8x128xf32> to vector<8xf32>
      %253 = vector.shape_cast %252 : vector<8xf32> to vector<8x1xf32>
      %cst_89 = arith.constant 1.000000e-24 : f32
      %254 = vector.broadcast %cst_89 : f32 to vector<8x1xf32>
      %255 = arith.maximumf %253, %254 : vector<8x1xf32>
      %256 = math.rsqrt %255 : vector<8x1xf32>
      %257 = vector.broadcast %256 : vector<8x1xf32> to vector<8x128xf32>
      %258 = arith.mulf %249, %257 : vector<8x128xf32>
      %259 = arith.mulf %177, %177 : vector<8x128xf32>
      %cst_90 = arith.constant dense<0.000000e+00> : vector<8xf32>
      %260 = vector.multi_reduction <add>, %259, %cst_90 [1] : vector<8x128xf32> to vector<8xf32>
      %261 = vector.shape_cast %260 : vector<8xf32> to vector<8x1xf32>
      %cst_91 = arith.constant 1.000000e-24 : f32
      %262 = vector.broadcast %cst_91 : f32 to vector<8x1xf32>
      %263 = arith.maximumf %261, %262 : vector<8x1xf32>
      %264 = math.rsqrt %263 : vector<8x1xf32>
      %265 = vector.broadcast %264 : vector<8x1xf32> to vector<8x128xf32>
      %266 = arith.mulf %177, %265 : vector<8x128xf32>
      %267 = arith.mulf %258, %266 : vector<8x128xf32>
      %cst_92 = arith.constant dense<0.000000e+00> : vector<8xf32>
      %268 = vector.multi_reduction <add>, %267, %cst_92 [1] : vector<8x128xf32> to vector<8xf32>
      %269 = vector.shape_cast %268 : vector<8xf32> to vector<8x1xf32>
      %cst_93 = arith.constant 2.000000e+00 : f32
      %270 = vector.broadcast %cst_93 : f32 to vector<8x1xf32>
      %271 = arith.mulf %270, %269 : vector<8x1xf32>
      %cst_94 = arith.constant 2.000000e+00 : f32
      %272 = vector.broadcast %cst_94 : f32 to vector<8x1xf32>
      %273 = arith.subf %272, %271 : vector<8x1xf32>
      %274 = arith.mulf %250, %250 : vector<8x128xf32>
      %cst_95 = arith.constant dense<0.000000e+00> : vector<8xf32>
      %275 = vector.multi_reduction <add>, %274, %cst_95 [1] : vector<8x128xf32> to vector<8xf32>
      %276 = vector.shape_cast %275 : vector<8xf32> to vector<8x1xf32>
      %cst_96 = arith.constant 1.000000e-24 : f32
      %277 = vector.broadcast %cst_96 : f32 to vector<8x1xf32>
      %278 = arith.maximumf %276, %277 : vector<8x1xf32>
      %279 = math.rsqrt %278 : vector<8x1xf32>
      %280 = vector.broadcast %279 : vector<8x1xf32> to vector<8x128xf32>
      %281 = arith.mulf %250, %280 : vector<8x128xf32>
      %282 = arith.mulf %91, %91 : vector<8x128xf32>
      %cst_97 = arith.constant dense<0.000000e+00> : vector<8xf32>
      %283 = vector.multi_reduction <add>, %282, %cst_97 [1] : vector<8x128xf32> to vector<8xf32>
      %284 = vector.shape_cast %283 : vector<8xf32> to vector<8x1xf32>
      %cst_98 = arith.constant 1.000000e-24 : f32
      %285 = vector.broadcast %cst_98 : f32 to vector<8x1xf32>
      %286 = arith.maximumf %284, %285 : vector<8x1xf32>
      %287 = math.rsqrt %286 : vector<8x1xf32>
      %288 = vector.broadcast %287 : vector<8x1xf32> to vector<8x128xf32>
      %289 = arith.mulf %91, %288 : vector<8x128xf32>
      %290 = arith.mulf %281, %289 : vector<8x128xf32>
      %cst_99 = arith.constant dense<0.000000e+00> : vector<8xf32>
      %291 = vector.multi_reduction <add>, %290, %cst_99 [1] : vector<8x128xf32> to vector<8xf32>
      %292 = vector.shape_cast %291 : vector<8xf32> to vector<8x1xf32>
      %cst_100 = arith.constant 2.000000e+00 : f32
      %293 = vector.broadcast %cst_100 : f32 to vector<8x1xf32>
      %294 = arith.mulf %293, %292 : vector<8x1xf32>
      %cst_101 = arith.constant 2.000000e+00 : f32
      %295 = vector.broadcast %cst_101 : f32 to vector<8x1xf32>
      %296 = arith.subf %295, %294 : vector<8x1xf32>
      %297 = arith.addf %273, %296 : vector<8x1xf32>
      %298 = vector.shape_cast %297 : vector<8x1xf32> to vector<1x8x1xf32>
      %cst_102 = arith.constant dense<0.000000e+00> : vector<1xf32>
      %299 = vector.multi_reduction <add>, %298, %cst_102 [1, 2] : vector<1x8x1xf32> to vector<1xf32>
      %300 = vector.shape_cast %299 : vector<1xf32> to vector<1x1x1xf32>
      %301 = vector.extract %300[0, 0, 0] : f32 from vector<1x1x1xf32>
      %cst_103 = arith.constant 8.000000e+00 : f32
      %302 = arith.divf %301, %cst_103 : f32
      %303 = vector.broadcast %302 : f32 to vector<1x8x128xf32>
      %c0_104 = arith.constant 0 : index
      %c0_105 = arith.constant 0 : index
      %c0_106 = arith.constant 0 : index
      %304 = vector.load %arg18[%c0_104, %c0_105, %c0_106] : memref<1x8x128xf32, #tpu.memory_space<vmem>>, vector<1x8x128xf32>
      tpu.vector_store %arg18[%c0_104, %c0_105, %c0_106], %303 {strides = array<i32>} : memref<1x8x128xf32, #tpu.memory_space<vmem>>, vector<1x8x128xf32>,
    } else {
    }
    %c1_i32 = arith.constant 1 : i32
    %3 = arith.cmpi eq, %arg0, %c1_i32 : i32
    %4 = arith.extui %3 : i1 to i32
    %c0_i32_1 = arith.constant 0 : i32
    %5 = arith.cmpi ne, %4, %c0_i32_1 : i32
    scf.if %5 {
      %c0 = arith.constant 0 : index
      %c0_2 = arith.constant 0 : index
      %6 = vector.load %arg1[%c0, %c0_2] : memref<32x33xbf16, #tpu.memory_space<vmem>>, vector<32x33xbf16>
      %c0_3 = arith.constant 0 : index
      %c0_4 = arith.constant 0 : index
      %7 = vector.load %arg3[%c0_3, %c0_4] : memref<33x128xbf16, #tpu.memory_space<vmem>>, vector<33x128xbf16>
      %cst = arith.constant dense<0.000000e+00> : vector<32x128xf32>
      %8 = tpu.matmul %6, %7, %cst {dimension_numbers = #tpu.dot_dimension_numbers<[1], [0], [0], [1], [0, 0, 1, 1], [], []>} : vector<32x33xbf16>, vector<33x128xbf16>, vector<32x128xf32> -> vector<32x128xf32>
      %c0_5 = arith.constant 0 : index
      %c0_6 = arith.constant 0 : index
      %9 = vector.load %arg4[%c0_5, %c0_6] : memref<1x128xf32, #tpu.memory_space<vmem>>, vector<1x128xf32>
      %10 = vector.broadcast %9 : vector<1x128xf32> to vector<32x128xf32>
      %11 = arith.addf %8, %10 : vector<32x128xf32>
      %c0_7 = arith.constant 0 : index
      %c0_8 = arith.constant 0 : index
      %12 = vector.load %arg2[%c0_7, %c0_8] : memref<32x1xi32, #tpu.memory_space<vmem>>, vector<32x1xi32>
      %cst_9 = arith.constant dense<0xFF800000> : vector<32xf32>
      %13 = vector.multi_reduction <maximumf>, %11, %cst_9 [1] : vector<32x128xf32> to vector<32xf32>
      %14 = vector.shape_cast %13 : vector<32xf32> to vector<32x1xf32>
      %15 = vector.broadcast %14 : vector<32x1xf32> to vector<32x128xf32>
      %16 = arith.subf %11, %15 : vector<32x128xf32>
      %17 = math.exp %16 : vector<32x128xf32>
      %cst_10 = arith.constant dense<0.000000e+00> : vector<32xf32>
      %18 = vector.multi_reduction <add>, %17, %cst_10 [1] : vector<32x128xf32> to vector<32xf32>
      %19 = vector.shape_cast %18 : vector<32xf32> to vector<32x1xf32>
      %20 = math.log %19 : vector<32x1xf32>
      %21 = arith.addf %14, %20 : vector<32x1xf32>
      %22 = tpu.iota {dimensions = array<i32: 1>} : vector<32x128xi32>
      %23 = vector.broadcast %12 : vector<32x1xi32> to vector<32x128xi32>
      %24 = arith.cmpi eq, %22, %23 : vector<32x128xi32>
      %25 = arith.extui %24 : vector<32x128xi1> to vector<32x128xi32>
      %26 = arith.sitofp %25 : vector<32x128xi32> to vector<32x128xf32>
      %27 = arith.mulf %26, %11 : vector<32x128xf32>
      %cst_11 = arith.constant dense<0.000000e+00> : vector<32xf32>
      %28 = vector.multi_reduction <add>, %27, %cst_11 [1] : vector<32x128xf32> to vector<32xf32>
      %29 = vector.shape_cast %28 : vector<32xf32> to vector<32x1xf32>
      %30 = arith.subf %21, %29 : vector<32x1xf32>
      %c0_i32_12 = arith.constant 0 : i32
      %31 = vector.broadcast %c0_i32_12 : i32 to vector<32x1xi32>
      %32 = arith.cmpi ne, %12, %31 : vector<32x1xi32>
      %33 = arith.extui %32 : vector<32x1xi1> to vector<32x1xi32>
      %34 = arith.sitofp %33 : vector<32x1xi32> to vector<32x1xf32>
      %35 = arith.mulf %30, %34 : vector<32x1xf32>
      %36 = vector.shape_cast %35 : vector<32x1xf32> to vector<1x32x1xf32>
      %cst_13 = arith.constant dense<0.000000e+00> : vector<1xf32>
      %37 = vector.multi_reduction <add>, %36, %cst_13 [1, 2] : vector<1x32x1xf32> to vector<1xf32>
      %38 = vector.shape_cast %37 : vector<1xf32> to vector<1x1x1xf32>
      %39 = vector.extract %38[0, 0, 0] : f32 from vector<1x1x1xf32>
      %40 = vector.shape_cast %34 : vector<32x1xf32> to vector<1x32x1xf32>
      %cst_14 = arith.constant dense<0.000000e+00> : vector<1xf32>
      %41 = vector.multi_reduction <add>, %40, %cst_14 [1, 2] : vector<1x32x1xf32> to vector<1xf32>
      %42 = vector.shape_cast %41 : vector<1xf32> to vector<1x1x1xf32>
      %43 = vector.extract %42[0, 0, 0] : f32 from vector<1x1x1xf32>
      %cst_15 = arith.constant 1.000000e+00 : f32
      %44 = arith.maximumf %43, %cst_15 : f32
      %45 = arith.divf %39, %44 : f32
      %46 = vector.broadcast %45 : f32 to vector<1x8x128xf32>
      %c0_16 = arith.constant 0 : index
      %c0_17 = arith.constant 0 : index
      %c0_18 = arith.constant 0 : index
      %47 = vector.load %arg18[%c0_16, %c0_17, %c0_18] : memref<1x8x128xf32, #tpu.memory_space<vmem>>, vector<1x8x128xf32>
      tpu.vector_store %arg18[%c0_16, %c0_17, %c0_18], %46 {strides = array<i32>} : memref<1x8x128xf32, #tpu.memory_space<vmem>>, vector<1x8x128xf32>,
    } else {
    }
    return
  }
  func.func @transform_0(%arg0: i32) -> (i32, i32) {
    %c0_i32 = arith.constant 0 : i32
    %c0_i32_0 = arith.constant 0 : i32
    %c0_i32_1 = arith.constant 0 : i32
    return %c0_i32, %c0_i32_0 : i32, i32
  }
  func.func @transform_1(%arg0: i32) -> (i32, i32) {
    %c0_i32 = arith.constant 0 : i32
    %c0_i32_0 = arith.constant 0 : i32
    %c0_i32_1 = arith.constant 0 : i32
    return %c0_i32, %c0_i32_0 : i32, i32
  }
  func.func @transform_2(%arg0: i32) -> (i32, i32) {
    %c0_i32 = arith.constant 0 : i32
    %c0_i32_0 = arith.constant 0 : i32
    %c0_i32_1 = arith.constant 0 : i32
    return %c0_i32, %c0_i32_0 : i32, i32
  }
  func.func @transform_3(%arg0: i32) -> (i32, i32) {
    %c0_i32 = arith.constant 0 : i32
    %c0_i32_0 = arith.constant 0 : i32
    %c0_i32_1 = arith.constant 0 : i32
    return %c0_i32, %c0_i32_0 : i32, i32
  }
  func.func @transform_4(%arg0: i32) -> (i32, i32) {
    %c0_i32 = arith.constant 0 : i32
    %c0_i32_0 = arith.constant 0 : i32
    %c0_i32_1 = arith.constant 0 : i32
    return %c0_i32, %c0_i32_0 : i32, i32
  }
  func.func @transform_5(%arg0: i32) -> (i32, i32) {
    %c0_i32 = arith.constant 0 : i32
    %c0_i32_0 = arith.constant 0 : i32
    %c0_i32_1 = arith.constant 0 : i32
    return %c0_i32, %c0_i32_0 : i32, i32
  }
  func.func @transform_6(%arg0: i32) -> (i32, i32) {
    %c0_i32 = arith.constant 0 : i32
    %c0_i32_0 = arith.constant 0 : i32
    %c0_i32_1 = arith.constant 0 : i32
    return %c0_i32, %c0_i32_0 : i32, i32
  }
  func.func @transform_7(%arg0: i32) -> (i32, i32) {
    %c0_i32 = arith.constant 0 : i32
    %c0_i32_0 = arith.constant 0 : i32
    %c0_i32_1 = arith.constant 0 : i32
    return %c0_i32, %c0_i32_0 : i32, i32
  }
  func.func @transform_8(%arg0: i32) -> (i32, i32) {
    %c0_i32 = arith.constant 0 : i32
    %c0_i32_0 = arith.constant 0 : i32
    %c0_i32_1 = arith.constant 0 : i32
    return %c0_i32, %c0_i32_0 : i32, i32
  }
  func.func @transform_9(%arg0: i32) -> (i32, i32) {
    %c0_i32 = arith.constant 0 : i32
    %c0_i32_0 = arith.constant 0 : i32
    %c0_i32_1 = arith.constant 0 : i32
    return %c0_i32, %c0_i32_0 : i32, i32
  }
  func.func @transform_10(%arg0: i32) -> (i32, i32) {
    %c0_i32 = arith.constant 0 : i32
    %c0_i32_0 = arith.constant 0 : i32
    %c0_i32_1 = arith.constant 0 : i32
    return %c0_i32, %c0_i32_0 : i32, i32
  }
  func.func @transform_11(%arg0: i32) -> (i32, i32) {
    %c0_i32 = arith.constant 0 : i32
    %c0_i32_0 = arith.constant 0 : i32
    %c0_i32_1 = arith.constant 0 : i32
    return %c0_i32, %c0_i32_0 : i32, i32
  }
  func.func @transform_12(%arg0: i32) -> (i32, i32) {
    %c0_i32 = arith.constant 0 : i32
    %c0_i32_0 = arith.constant 0 : i32
    %c0_i32_1 = arith.constant 0 : i32
    return %c0_i32, %c0_i32_0 : i32, i32
  }
  func.func @transform_13(%arg0: i32) -> (i32, i32) {
    %c0_i32 = arith.constant 0 : i32
    %c0_i32_0 = arith.constant 0 : i32
    %c0_i32_1 = arith.constant 0 : i32
    return %c0_i32, %c0_i32_0 : i32, i32
  }
  func.func @transform_14(%arg0: i32) -> (i32, i32) {
    %c0_i32 = arith.constant 0 : i32
    %c0_i32_0 = arith.constant 0 : i32
    %c0_i32_1 = arith.constant 0 : i32
    return %c0_i32, %c0_i32_0 : i32, i32
  }
  func.func @transform_15(%arg0: i32) -> (i32, i32) {
    %c0_i32 = arith.constant 0 : i32
    %c0_i32_0 = arith.constant 0 : i32
    %c0_i32_1 = arith.constant 0 : i32
    return %c0_i32, %c0_i32_0 : i32, i32
  }
  func.func @transform_16(%arg0: i32) -> (i32, i32) {
    %c0_i32 = arith.constant 0 : i32
    %c0_i32_0 = arith.constant 0 : i32
    %c0_i32_1 = arith.constant 0 : i32
    return %c0_i32, %c0_i32_0 : i32, i32
  }
  func.func @transform_17(%arg0: i32) -> (i32, i32, i32) {
    %c0_i32 = arith.constant 0 : i32
    %c0_i32_0 = arith.constant 0 : i32
    %c0_i32_1 = arith.constant 0 : i32
    return %arg0, %c0_i32, %c0_i32_0 : i32, i32, i32
  }
}

</mosaic_0001>

<llo_original>
// kernel: ssl_forward.1
$region0: #{ssl_forward.1}
  #allocation0 [shape = 'u32[]', space=smem, size = 0x4, offset = 0x4, fixed_abs, tag = 'smem constant byte address 0x4 - core index']
  #allocation1 [shape = 'u32[144,128]{1,0:T(1,128)}', space=vmem, size = 0x12000, scoped, tag = 'internal scratch']
  %s0 = inlined_call_operand.vmem [shape: bf16[32,33], index: 0, kind: input, shape index: {}]
  %s1 = inlined_call_operand.vmem [shape: s32[32,1], index: 1, kind: input, shape index: {}]
  %s2 = inlined_call_operand.hbm [shape: bf16[33,128], index: 2, kind: input, shape index: {}]
  %s3 = inlined_call_operand.hbm [shape: f32[1,128], index: 3, kind: input, shape index: {}]
  %s4 = inlined_call_operand.vmem [shape: bf16[8,64], index: 4, kind: input, shape index: {}]
  %s5 = inlined_call_operand.vmem [shape: bf16[8,96], index: 5, kind: input, shape index: {}]
  %s6 = inlined_call_operand.hbm [shape: bf16[64,512], index: 6, kind: input, shape index: {}]
  %s7 = inlined_call_operand.vmem [shape: bf16[512,512], index: 7, kind: input, shape index: {}]
  %s8 = inlined_call_operand.vmem [shape: bf16[512,128], index: 8, kind: input, shape index: {}]
  %s9 = inlined_call_operand.hbm [shape: f32[4,512], index: 9, kind: input, shape index: {}]
  %s10 = inlined_call_operand.hbm [shape: bf16[96,512], index: 10, kind: input, shape index: {}]
  %s11 = inlined_call_operand.vmem [shape: bf16[512,512], index: 11, kind: input, shape index: {}]
  %s12 = inlined_call_operand.hbm [shape: bf16[512,128], index: 12, kind: input, shape index: {}]
  %s13 = inlined_call_operand.hbm [shape: f32[4,512], index: 13, kind: input, shape index: {}]
  %s14 = inlined_call_operand.hbm [shape: bf16[128,512], index: 14, kind: input, shape index: {}]
  %s15 = inlined_call_operand.hbm [shape: bf16[512,128], index: 15, kind: input, shape index: {}]
  %s16 = inlined_call_operand.hbm [shape: f32[4,512], index: 16, kind: input, shape index: {}]
  %s17 = inlined_call_operand.vmem [shape: f32[2,8,128], index: 17, kind: output, shape index: {}]
  %s18 = sld [smem:[#allocation0]]
  $region149: #{ssl_forward.1} parent=0
    _
  %s20 = ssub.s32 1, %s18
  %s21 = scalar_select 0, %s20, %s18
  $region1: #{ssl_forward.1} parent=0
    #allocation2 [shape = 'u8[10240]{0}', space=vmem, size = 0x2800, scoped, tag = 'input window, operand 2, single buffered']
    #allocation3 [shape = 's32[2]{0}', space=sflag, size = 0x8, scoped, tag = 'scoped memory for ssl_forward.1']
    #allocation4 [shape = 'u8[512]{0}', space=vmem, size = 0x400, scoped, tag = 'input window, operand 3, single buffered']
    #allocation5 [shape = 's32[1]{0}', space=sflag, size = 0x4, scoped, tag = 'scoped memory for ssl_forward.1']
    #allocation6 [shape = 'u8[65536]{0}', space=vmem, size = 0x10000, scoped, tag = 'input window, operand 6, single buffered']
    #allocation7 [shape = 'u8[8192]{0}', space=vmem, size = 0x2000, scoped, tag = 'input window, operand 9, single buffered']
    #allocation8 [shape = 's32[1]{0}', space=sflag, size = 0x4, scoped, tag = 'scoped memory for ssl_forward.1']
    #allocation9 [shape = 'u8[98304]{0}', space=vmem, size = 0x18000, scoped, tag = 'input window, operand 10, single buffered']
    #allocation10 [shape = 'u8[131072]{0}', space=vmem, size = 0x20000, scoped, tag = 'input window, operand 12, single buffered']
    #allocation11 [shape = 's32[1]{0}', space=sflag, size = 0x4, scoped, tag = 'scoped memory for ssl_forward.1']
    #allocation12 [shape = 'u8[8192]{0}', space=vmem, size = 0x2000, scoped, tag = 'input window, operand 13, single buffered']
    #allocation13 [shape = 'u8[131072]{0}', space=vmem, size = 0x20000, scoped, tag = 'input window, operand 14, single buffered']
    #allocation14 [shape = 's32[1]{0}', space=sflag, size = 0x4, scoped, tag = 'scoped memory for ssl_forward.1']
    #allocation15 [shape = 'u8[131072]{0}', space=vmem, size = 0x20000, scoped, tag = 'input window, operand 15, single buffered']
    #allocation16 [shape = 'u8[8192]{0}', space=vmem, size = 0x2000, scoped, tag = 'input window, operand 16, single buffered']
    #allocation17 [shape = 's32[1]{0}', space=sflag, size = 0x4, scoped, tag = 'scoped memory for ssl_forward.1']
    %22 = vsyncpa [#allocation3], 0
    %23 = vsyncpa [#allocation5], 0
    %24 = vsyncpa [#allocation8], 0
    %25 = vsyncpa [#allocation11], 0
    %26 = vsyncpa [#allocation14], 0
    %27 = vsyncpa [#allocation17], 0
    loop: start=0, step=1, limit=4
    $region2: #{ssl_forward.1} parent=1 // loop_pre_header
      _
    $region3: #{ssl_forward.1} parent=1 // loop_header
      %s29 = sphi 0, %s33
      %p30 = scmp.ge.s32.totalorder %s29, 4
      %s37 = sphi 0, %s37
      %s39 = sphi 0, %s37
      %s40 = sphi 0, %s39
      %s54 = sphi 0, %s40
      %s58 = sphi 0, %s58
      %s60 = sphi 0, %s58
      %s61 = sphi 0, %s60
      %s75 = sphi 0, %s61
      %s79 = sphi 0, %s79
      %s81 = sphi 0, %s79
      %s82 = sphi 0, %s81
      %s96 = sphi 0, %s82
      %s100 = sphi 0, %s100
      %s102 = sphi 0, %s100
      %s103 = sphi 0, %s102
      %s117 = sphi 0, %s103
      %s121 = sphi 0, %s121
      %s123 = sphi 0, %s121
      %s124 = sphi 0, %s123
      %s138 = sphi 0, %s124
      %s142 = sphi 0, %s142
      %s144 = sphi 0, %s142
      %s145 = sphi 0, %s144
      %s159 = sphi 0, %s145
      %s163 = sphi 0, %s163
      %s165 = sphi 0, %s163
      %s166 = sphi 0, %s165
      %s180 = sphi 0, %s166
      %s184 = sphi 0, %s184
      %s186 = sphi 0, %s184
      %s187 = sphi 0, %s186
      %s201 = sphi 0, %s187
      %s205 = sphi 0, %s205
      %s207 = sphi 0, %s205
      %s208 = sphi 0, %s207
      %s222 = sphi 0, %s208
      %s226 = sphi 0, %s226
      %s228 = sphi 0, %s226
      %s229 = sphi 0, %s228
      %s243 = sphi 0, %s229
      %s247 = sphi 0, %s247
      %s249 = sphi 0, %s247
      %s250 = sphi 0, %s249
      %s264 = sphi 0, %s250
      %s268 = sphi 0, %s268
      %s270 = sphi 0, %s268
      %s271 = sphi 0, %s270
      %s285 = sphi 0, %s271
      %s289 = sphi 0, %s289
      %s291 = sphi 0, %s289
      %s292 = sphi 0, %s291
      %s306 = sphi 0, %s292
      %s310 = sphi 0, %s310
      %s312 = sphi 0, %s310
      %s313 = sphi 0, %s312
      %s327 = sphi 0, %s313
      %s331 = sphi 0, %s331
      %s333 = sphi 0, %s331
      %s334 = sphi 0, %s333
      %s348 = sphi 0, %s334
      %s352 = sphi 0, %s352
      %s354 = sphi 0, %s352
      %s355 = sphi 0, %s354
      %s369 = sphi 0, %s355
      %s373 = sphi 0, %s373
      %s375 = sphi 0, %s373
      %s376 = sphi 0, %s375
      %s390 = sphi 0, %s376
      %s396 = sphi 0, %s398
      %s399 = sphi 0, %s396
      %s400 = sphi 0, %s399
      %s416 = sphi 0, %s400
    $region4: #{ssl_forward.1} parent=1 // loop_header_branch
      %32 = sbr.rel (%p30) target = $region8
    $region5: #{ssl_forward.1} parent=1 // loop_body
      %s34 = ssub.s32 %s29, 1
      %s35 = ssub.s32 %s29, 2
      %s36 = sadd.s32 %s29, 1
      %s38 = sadd.s32 %s37, 1
      %p41 = scmp.eq.s32.totalorder %s29, 1
      %p42 = scmp.ne.s32.totalorder %s37, %s39
      %p43 = scmp.eq.s32.totalorder %s29, 0
      %p44 = por %p42, %p43
      %p45 = scmp.ne.s32.totalorder %s37, %s39
      %p46 = scmp.eq.s32.totalorder %s34, 1
      %p47 = por %p45, %p46
      %p48 = scmp.ne.s32.totalorder %s39, %s40
      %p49 = scmp.eq.s32.totalorder %s34, 0
      %p50 = por %p48, %p49
      %p51 = scmp.ne.s32.totalorder %s39, %s40
      %p52 = scmp.eq.s32.totalorder %s35, 1
      %p53 = por %p51, %p52
      %p55 = scmp.ne.s32.totalorder %s40, %s54
      %p56 = scmp.eq.s32.totalorder %s35, 0
      %p57 = por %p55, %p56
      %s59 = sadd.s32 %s58, 1
      %p62 = scmp.eq.s32.totalorder %s29, 1
      %p63 = scmp.ne.s32.totalorder %s58, %s60
      %p64 = scmp.eq.s32.totalorder %s29, 0
      %p65 = por %p63, %p64
      %p66 = scmp.ne.s32.totalorder %s58, %s60
      %p67 = scmp.eq.s32.totalorder %s34, 1
      %p68 = por %p66, %p67
      %p69 = scmp.ne.s32.totalorder %s60, %s61
      %p70 = scmp.eq.s32.totalorder %s34, 0
      %p71 = por %p69, %p70
      %p72 = scmp.ne.s32.totalorder %s60, %s61
      %p73 = scmp.eq.s32.totalorder %s35, 1
      %p74 = por %p72, %p73
      %p76 = scmp.ne.s32.totalorder %s61, %s75
      %p77 = scmp.eq.s32.totalorder %s35, 0
      %p78 = por %p76, %p77
      %s80 = sadd.s32 %s79, 1
      %p83 = scmp.eq.s32.totalorder %s29, 1
      %p84 = scmp.ne.s32.totalorder %s79, %s81
      %p85 = scmp.eq.s32.totalorder %s29, 0
      %p86 = por %p84, %p85
      %p87 = scmp.ne.s32.totalorder %s79, %s81
      %p88 = scmp.eq.s32.totalorder %s34, 1
      %p89 = por %p87, %p88
      %p90 = scmp.ne.s32.totalorder %s81, %s82
      %p91 = scmp.eq.s32.totalorder %s34, 0
      %p92 = por %p90, %p91
      %p93 = scmp.ne.s32.totalorder %s81, %s82
      %p94 = scmp.eq.s32.totalorder %s35, 1
      %p95 = por %p93, %p94
      %p97 = scmp.ne.s32.totalorder %s82, %s96
      %p98 = scmp.eq.s32.totalorder %s35, 0
      %p99 = por %p97, %p98
      %s101 = sadd.s32 %s100, 1
      %p104 = scmp.eq.s32.totalorder %s29, 1
      %p105 = scmp.ne.s32.totalorder %s100, %s102
      %p106 = scmp.eq.s32.totalorder %s29, 0
      %p107 = por %p105, %p106
      %p108 = scmp.ne.s32.totalorder %s100, %s102
      %p109 = scmp.eq.s32.totalorder %s34, 1
      %p110 = por %p108, %p109
      %p111 = scmp.ne.s32.totalorder %s102, %s103
      %p112 = scmp.eq.s32.totalorder %s34, 0
      %p113 = por %p111, %p112
      %p114 = scmp.ne.s32.totalorder %s102, %s103
      %p115 = scmp.eq.s32.totalorder %s35, 1
      %p116 = por %p114, %p115
      %p118 = scmp.ne.s32.totalorder %s103, %s117
      %p119 = scmp.eq.s32.totalorder %s35, 0
      %p120 = por %p118, %p119
      %s122 = sadd.s32 %s121, 1
      %p125 = scmp.eq.s32.totalorder %s29, 1
      %p126 = scmp.ne.s32.totalorder %s121, %s123
      %p127 = scmp.eq.s32.totalorder %s29, 0
      %p128 = por %p126, %p127
      %p129 = scmp.ne.s32.totalorder %s121, %s123
      %p130 = scmp.eq.s32.totalorder %s34, 1
      %p131 = por %p129, %p130
      %p132 = scmp.ne.s32.totalorder %s123, %s124
      %p133 = scmp.eq.s32.totalorder %s34, 0
      %p134 = por %p132, %p133
      %p135 = scmp.ne.s32.totalorder %s123, %s124
      %p136 = scmp.eq.s32.totalorder %s35, 1
      %p137 = por %p135, %p136
      %p139 = scmp.ne.s32.totalorder %s124, %s138
      %p140 = scmp.eq.s32.totalorder %s35, 0
      %p141 = por %p139, %p140
      %s143 = sadd.s32 %s142, 1
      %p146 = scmp.eq.s32.totalorder %s29, 1
      %p147 = scmp.ne.s32.totalorder %s142, %s144
      %p148 = scmp.eq.s32.totalorder %s29, 0
      %p149 = por %p147, %p148
      %p150 = scmp.ne.s32.totalorder %s142, %s144
      %p151 = scmp.eq.s32.totalorder %s34, 1
      %p152 = por %p150, %p151
      %p153 = scmp.ne.s32.totalorder %s144, %s145
      %p154 = scmp.eq.s32.totalorder %s34, 0
      %p155 = por %p153, %p154
      %p156 = scmp.ne.s32.totalorder %s144, %s145
      %p157 = scmp.eq.s32.totalorder %s35, 1
      %p158 = por %p156, %p157
      %p160 = scmp.ne.s32.totalorder %s145, %s159
      %p161 = scmp.eq.s32.totalorder %s35, 0
      %p162 = por %p160, %p161
      %s164 = sadd.s32 %s163, 1
      %p167 = scmp.eq.s32.totalorder %s29, 1
      %p168 = scmp.ne.s32.totalorder %s163, %s165
      %p169 = scmp.eq.s32.totalorder %s29, 0
      %p170 = por %p168, %p169
      %p171 = scmp.ne.s32.totalorder %s163, %s165
      %p172 = scmp.eq.s32.totalorder %s34, 1
      %p173 = por %p171, %p172
      %p174 = scmp.ne.s32.totalorder %s165, %s166
      %p175 = scmp.eq.s32.totalorder %s34, 0
      %p176 = por %p174, %p175
      %p177 = scmp.ne.s32.totalorder %s165, %s166
      %p178 = scmp.eq.s32.totalorder %s35, 1
      %p179 = por %p177, %p178
      %p181 = scmp.ne.s32.totalorder %s166, %s180
      %p182 = scmp.eq.s32.totalorder %s35, 0
      %p183 = por %p181, %p182
      %s185 = sadd.s32 %s184, 1
      %p188 = scmp.eq.s32.totalorder %s29, 1
      %p189 = scmp.ne.s32.totalorder %s184, %s186
      %p190 = scmp.eq.s32.totalorder %s29, 0
      %p191 = por %p189, %p190
      %p192 = scmp.ne.s32.totalorder %s184, %s186
      %p193 = scmp.eq.s32.totalorder %s34, 1
      %p194 = por %p192, %p193
      %p195 = scmp.ne.s32.totalorder %s186, %s187
      %p196 = scmp.eq.s32.totalorder %s34, 0
      %p197 = por %p195, %p196
      %p198 = scmp.ne.s32.totalorder %s186, %s187
      %p199 = scmp.eq.s32.totalorder %s35, 1
      %p200 = por %p198, %p199
      %p202 = scmp.ne.s32.totalorder %s187, %s201
      %p203 = scmp.eq.s32.totalorder %s35, 0
      %p204 = por %p202, %p203
      %s206 = sadd.s32 %s205, 1
      %p209 = scmp.eq.s32.totalorder %s29, 1
      %p210 = scmp.ne.s32.totalorder %s205, %s207
      %p211 = scmp.eq.s32.totalorder %s29, 0
      %p212 = por %p210, %p211
      %p213 = scmp.ne.s32.totalorder %s205, %s207
      %p214 = scmp.eq.s32.totalorder %s34, 1
      %p215 = por %p213, %p214
      %p216 = scmp.ne.s32.totalorder %s207, %s208
      %p217 = scmp.eq.s32.totalorder %s34, 0
      %p218 = por %p216, %p217
      %p219 = scmp.ne.s32.totalorder %s207, %s208
      %p220 = scmp.eq.s32.totalorder %s35, 1
      %p221 = por %p219, %p220
      %p223 = scmp.ne.s32.totalorder %s208, %s222
      %p224 = scmp.eq.s32.totalorder %s35, 0
      %p225 = por %p223, %p224
      %s227 = sadd.s32 %s226, 1
      %p230 = scmp.eq.s32.totalorder %s29, 1
      %p231 = scmp.ne.s32.totalorder %s226, %s228
      %p232 = scmp.eq.s32.totalorder %s29, 0
      %p233 = por %p231, %p232
      %p234 = scmp.ne.s32.totalorder %s226, %s228
      %p235 = scmp.eq.s32.totalorder %s34, 1
      %p236 = por %p234, %p235
      %p237 = scmp.ne.s32.totalorder %s228, %s229
      %p238 = scmp.eq.s32.totalorder %s34, 0
      %p239 = por %p237, %p238
      %p240 = scmp.ne.s32.totalorder %s228, %s229
      %p241 = scmp.eq.s32.totalorder %s35, 1
      %p242 = por %p240, %p241
      %p244 = scmp.ne.s32.totalorder %s229, %s243
      %p245 = scmp.eq.s32.totalorder %s35, 0
      %p246 = por %p244, %p245
      %s248 = sadd.s32 %s247, 1
      %p251 = scmp.eq.s32.totalorder %s29, 1
      %p252 = scmp.ne.s32.totalorder %s247, %s249
      %p253 = scmp.eq.s32.totalorder %s29, 0
      %p254 = por %p252, %p253
      %p255 = scmp.ne.s32.totalorder %s247, %s249
      %p256 = scmp.eq.s32.totalorder %s34, 1
      %p257 = por %p255, %p256
      %p258 = scmp.ne.s32.totalorder %s249, %s250
      %p259 = scmp.eq.s32.totalorder %s34, 0
      %p260 = por %p258, %p259
      %p261 = scmp.ne.s32.totalorder %s249, %s250
      %p262 = scmp.eq.s32.totalorder %s35, 1
      %p263 = por %p261, %p262
      %p265 = scmp.ne.s32.totalorder %s250, %s264
      %p266 = scmp.eq.s32.totalorder %s35, 0
      %p267 = por %p265, %p266
      %s269 = sadd.s32 %s268, 1
      %p272 = scmp.eq.s32.totalorder %s29, 1
      %p273 = scmp.ne.s32.totalorder %s268, %s270
      %p274 = scmp.eq.s32.totalorder %s29, 0
      %p275 = por %p273, %p274
      %p276 = scmp.ne.s32.totalorder %s268, %s270
      %p277 = scmp.eq.s32.totalorder %s34, 1
      %p278 = por %p276, %p277
      %p279 = scmp.ne.s32.totalorder %s270, %s271
      %p280 = scmp.eq.s32.totalorder %s34, 0
      %p281 = por %p279, %p280
      %p282 = scmp.ne.s32.totalorder %s270, %s271
      %p283 = scmp.eq.s32.totalorder %s35, 1
      %p284 = por %p282, %p283
      %p286 = scmp.ne.s32.totalorder %s271, %s285
      %p287 = scmp.eq.s32.totalorder %s35, 0
      %p288 = por %p286, %p287
      %s290 = sadd.s32 %s289, 1
      %p293 = scmp.eq.s32.totalorder %s29, 1
      %p294 = scmp.ne.s32.totalorder %s289, %s291
      %p295 = scmp.eq.s32.totalorder %s29, 0
      %p296 = por %p294, %p295
      %p297 = scmp.ne.s32.totalorder %s289, %s291
      %p298 = scmp.eq.s32.totalorder %s34, 1
      %p299 = por %p297, %p298
      %p300 = scmp.ne.s32.totalorder %s291, %s292
      %p301 = scmp.eq.s32.totalorder %s34, 0
      %p302 = por %p300, %p301
      %p303 = scmp.ne.s32.totalorder %s291, %s292
      %p304 = scmp.eq.s32.totalorder %s35, 1
      %p305 = por %p303, %p304
      %p307 = scmp.ne.s32.totalorder %s292, %s306
      %p308 = scmp.eq.s32.totalorder %s35, 0
      %p309 = por %p307, %p308
      %s311 = sadd.s32 %s310, 1
      %p314 = scmp.eq.s32.totalorder %s29, 1
      %p315 = scmp.ne.s32.totalorder %s310, %s312
      %p316 = scmp.eq.s32.totalorder %s29, 0
      %p317 = por %p315, %p316
      %p318 = scmp.ne.s32.totalorder %s310, %s312
      %p319 = scmp.eq.s32.totalorder %s34, 1
      %p320 = por %p318, %p319
      %p321 = scmp.ne.s32.totalorder %s312, %s313
      %p322 = scmp.eq.s32.totalorder %s34, 0
      %p323 = por %p321, %p322
      %p324 = scmp.ne.s32.totalorder %s312, %s313
      %p325 = scmp.eq.s32.totalorder %s35, 1
      %p326 = por %p324, %p325
      %p328 = scmp.ne.s32.totalorder %s313, %s327
      %p329 = scmp.eq.s32.totalorder %s35, 0
      %p330 = por %p328, %p329
      %s332 = sadd.s32 %s331, 1
      %p335 = scmp.eq.s32.totalorder %s29, 1
      %p336 = scmp.ne.s32.totalorder %s331, %s333
      %p337 = scmp.eq.s32.totalorder %s29, 0
      %p338 = por %p336, %p337
      %p339 = scmp.ne.s32.totalorder %s331, %s333
      %p340 = scmp.eq.s32.totalorder %s34, 1
      %p341 = por %p339, %p340
      %p342 = scmp.ne.s32.totalorder %s333, %s334
      %p343 = scmp.eq.s32.totalorder %s34, 0
      %p344 = por %p342, %p343
      %p345 = scmp.ne.s32.totalorder %s333, %s334
      %p346 = scmp.eq.s32.totalorder %s35, 1
      %p347 = por %p345, %p346
      %p349 = scmp.ne.s32.totalorder %s334, %s348
      %p350 = scmp.eq.s32.totalorder %s35, 0
      %p351 = por %p349, %p350
      %s353 = sadd.s32 %s352, 1
      %p356 = scmp.eq.s32.totalorder %s29, 1
      %p357 = scmp.ne.s32.totalorder %s352, %s354
      %p358 = scmp.eq.s32.totalorder %s29, 0
      %p359 = por %p357, %p358
      %p360 = scmp.ne.s32.totalorder %s352, %s354
      %p361 = scmp.eq.s32.totalorder %s34, 1
      %p362 = por %p360, %p361
      %p363 = scmp.ne.s32.totalorder %s354, %s355
      %p364 = scmp.eq.s32.totalorder %s34, 0
      %p365 = por %p363, %p364
      %p366 = scmp.ne.s32.totalorder %s354, %s355
      %p367 = scmp.eq.s32.totalorder %s35, 1
      %p368 = por %p366, %p367
      %p370 = scmp.ne.s32.totalorder %s355, %s369
      %p371 = scmp.eq.s32.totalorder %s35, 0
      %p372 = por %p370, %p371
      %s374 = sadd.s32 %s373, 1
      %p377 = scmp.eq.s32.totalorder %s29, 1
      %p378 = scmp.ne.s32.totalorder %s373, %s375
      %p379 = scmp.eq.s32.totalorder %s29, 0
      %p380 = por %p378, %p379
      %p381 = scmp.ne.s32.totalorder %s373, %s375
      %p382 = scmp.eq.s32.totalorder %s34, 1
      %p383 = por %p381, %p382
      %p384 = scmp.ne.s32.totalorder %s375, %s376
      %p385 = scmp.eq.s32.totalorder %s34, 0
      %p386 = por %p384, %p385
      %p387 = scmp.ne.s32.totalorder %s375, %s376
      %p388 = scmp.eq.s32.totalorder %s35, 1
      %p389 = por %p387, %p388
      %p391 = scmp.ne.s32.totalorder %s376, %s390
      %p392 = scmp.eq.s32.totalorder %s35, 0
      %p393 = por %p391, %p392
      %s394 = ssub.s32 %s29, %s36
      %p395 = scmp.eq.s32.totalorder %s394, 0
      %s397 = sadd.s32 %s396, 1
      %s398 = scalar_select %p395, %s396, %s397
      %p401 = pneg %p395
      %p402 = scmp.eq.s32.totalorder %s29, 1
      %p403 = por %p401, %p402
      %p404 = scmp.ne.s32.totalorder %s396, %s399
      %p405 = scmp.eq.s32.totalorder %s29, 0
      %p406 = por %p404, %p405
      %p407 = scmp.ne.s32.totalorder %s396, %s399
      %p408 = scmp.eq.s32.totalorder %s34, 1
      %p409 = por %p407, %p408
      %p410 = scmp.ne.s32.totalorder %s399, %s400
      %p411 = scmp.eq.s32.totalorder %s34, 0
      %p412 = por %p410, %p411
      %p413 = scmp.ne.s32.totalorder %s399, %s400
      %p414 = scmp.eq.s32.totalorder %s35, 1
      %p415 = por %p413, %p414
      %p417 = scmp.ne.s32.totalorder %s400, %s416
      %p418 = scmp.eq.s32.totalorder %s35, 0
      %p419 = por %p417, %p418
      %p420 = scmp.le.s32.totalorder 1, %s29
      %p421 = scmp.lt.s32.totalorder %s29, 3
      %p422 = pnand %p420, %p421
      %p423 = pneg %p422
      // Predicated region
      $region9: #{ssl_forward.1} parent=5 // pred_check
        _
      $region10: #{ssl_forward.1} parent=5 // pred_check_branch
        %425 = sbr.rel (%p422) target = $region12
      $region11: #{ssl_forward.1} parent=5 // pred_region
        %s426 = ssub.s32 %s29, 1
        // Predicated region
        $region13: #{ssl_forward.1} parent=11 // pred_check
          %p427 = pneg %p50
        $region14: #{ssl_forward.1} parent=11 // pred_check_branch
          %429 = sbr.rel (%p427) target = $region16
        $region15: #{ssl_forward.1} parent=11 // pred_region
          _
        $region16: #{ssl_forward.1} parent=11 // pred_fallthru
          _
        // Predicated region
        $region17: #{ssl_forward.1} parent=11 // pred_check
          %p430 = pneg %p71
        $region18: #{ssl_forward.1} parent=11 // pred_check_branch
          %432 = sbr.rel (%p430) target = $region20
        $region19: #{ssl_forward.1} parent=11 // pred_region
          _
        $region20: #{ssl_forward.1} parent=11 // pred_fallthru
          _
        // Predicated region
        $region21: #{ssl_forward.1} parent=11 // pred_check
          %p433 = pneg %p92
        $region22: #{ssl_forward.1} parent=11 // pred_check_branch
          %435 = sbr.rel (%p433) target = $region24
        $region23: #{ssl_forward.1} parent=11 // pred_region
          %s437 = ssub.s32 320, 320
          %438 = vsyncadd [#allocation3], %s437
          %s439 = sshll.u32 [#allocation2], 4
          %s440 = int_to_ptr.vmem [resolvable:$true] %s439
          %445 = dma.hbm_to_vmem [thread:$0]  %s2, 320, %s440, [#allocation3], 64, 64, 4
        $region24: #{ssl_forward.1} parent=11 // pred_fallthru
          _
        // Predicated region
        $region25: #{ssl_forward.1} parent=11 // pred_check
          %p446 = pneg %p113
        $region26: #{ssl_forward.1} parent=11 // pred_check_branch
          %448 = sbr.rel (%p446) target = $region28
        $region27: #{ssl_forward.1} parent=11 // pred_region
          %s450 = ssub.s32 16, 16
          %451 = vsyncadd [#allocation5], %s450
          %s453 = sshll.u32 [#allocation4], 4
          %s454 = int_to_ptr.vmem [resolvable:$true] %s453
          %456 = dma.hbm_to_vmem [thread:$0]  %s3, 16, %s454, [#allocation5]
        $region28: #{ssl_forward.1} parent=11 // pred_fallthru
          _
        // Predicated region
        $region29: #{ssl_forward.1} parent=11 // pred_check
          %p457 = pneg %p134
        $region30: #{ssl_forward.1} parent=11 // pred_check_branch
          %459 = sbr.rel (%p457) target = $region32
        $region31: #{ssl_forward.1} parent=11 // pred_region
          _
        $region32: #{ssl_forward.1} parent=11 // pred_fallthru
          _
        // Predicated region
        $region33: #{ssl_forward.1} parent=11 // pred_check
          %p460 = pneg %p155
        $region34: #{ssl_forward.1} parent=11 // pred_check_branch
          %462 = sbr.rel (%p460) target = $region36
        $region35: #{ssl_forward.1} parent=11 // pred_region
          _
        $region36: #{ssl_forward.1} parent=11 // pred_fallthru
          _
        // Predicated region
        $region37: #{ssl_forward.1} parent=11 // pred_check
          %p463 = pneg %p176
        $region38: #{ssl_forward.1} parent=11 // pred_check_branch
          %465 = sbr.rel (%p463) target = $region40
        $region39: #{ssl_forward.1} parent=11 // pred_region
          %s467 = ssub.s32 2048, 2048
          %468 = vsyncadd [#allocation5], %s467
          %s469 = sshll.u32 [#allocation6], 4
          %s470 = int_to_ptr.vmem [resolvable:$true] %s469
          %475 = dma.hbm_to_vmem [thread:$0]  %s6, 2048, %s470, [#allocation5], 256, 256, 16
        $region40: #{ssl_forward.1} parent=11 // pred_fallthru
          _
        // Predicated region
        $region41: #{ssl_forward.1} parent=11 // pred_check
          %p476 = pneg %p197
        $region42: #{ssl_forward.1} parent=11 // pred_check_branch
          %478 = sbr.rel (%p476) target = $region44
        $region43: #{ssl_forward.1} parent=11 // pred_region
          _
        $region44: #{ssl_forward.1} parent=11 // pred_fallthru
          _
        // Predicated region
        $region45: #{ssl_forward.1} parent=11 // pred_check
          %p479 = pneg %p218
        $region46: #{ssl_forward.1} parent=11 // pred_check_branch
          %481 = sbr.rel (%p479) target = $region48
        $region47: #{ssl_forward.1} parent=11 // pred_region
          _
        $region48: #{ssl_forward.1} parent=11 // pred_fallthru
          _
        // Predicated region
        $region49: #{ssl_forward.1} parent=11 // pred_check
          %p482 = pneg %p239
        $region50: #{ssl_forward.1} parent=11 // pred_check_branch
          %484 = sbr.rel (%p482) target = $region52
        $region51: #{ssl_forward.1} parent=11 // pred_region
          %s486 = ssub.s32 256, 256
          %487 = vsyncadd [#allocation8], %s486
          %s489 = sshll.u32 [#allocation7], 4
          %s490 = int_to_ptr.vmem [resolvable:$true] %s489
          %492 = dma.hbm_to_vmem [thread:$0]  %s9, 256, %s490, [#allocation8]
        $region52: #{ssl_forward.1} parent=11 // pred_fallthru
          _
        // Predicated region
        $region53: #{ssl_forward.1} parent=11 // pred_check
          %p493 = pneg %p260
        $region54: #{ssl_forward.1} parent=11 // pred_check_branch
          %495 = sbr.rel (%p493) target = $region56
        $region55: #{ssl_forward.1} parent=11 // pred_region
          %s497 = ssub.s32 3072, 3072
          %498 = vsyncadd [#allocation8], %s497
          %s499 = sshll.u32 [#allocation9], 4
          %s500 = int_to_ptr.vmem [resolvable:$true] %s499
          %505 = dma.hbm_to_vmem [thread:$0]  %s10, 3072, %s500, [#allocation8], 256, 256, 16
        $region56: #{ssl_forward.1} parent=11 // pred_fallthru
          _
        // Predicated region
        $region57: #{ssl_forward.1} parent=11 // pred_check
          %p506 = pneg %p281
        $region58: #{ssl_forward.1} parent=11 // pred_check_branch
          %508 = sbr.rel (%p506) target = $region60
        $region59: #{ssl_forward.1} parent=11 // pred_region
          _
        $region60: #{ssl_forward.1} parent=11 // pred_fallthru
          _
        // Predicated region
        $region61: #{ssl_forward.1} parent=11 // pred_check
          %p509 = pneg %p302
        $region62: #{ssl_forward.1} parent=11 // pred_check_branch
          %511 = sbr.rel (%p509) target = $region64
        $region63: #{ssl_forward.1} parent=11 // pred_region
          %s513 = ssub.s32 4096, 4096
          %514 = vsyncadd [#allocation11], %s513
          %s515 = sshll.u32 [#allocation10], 4
          %s516 = int_to_ptr.vmem [resolvable:$true] %s515
          %521 = dma.hbm_to_vmem [thread:$0]  %s12, 4096, %s516, [#allocation11], 64, 64, 4
        $region64: #{ssl_forward.1} parent=11 // pred_fallthru
          _
        // Predicated region
        $region65: #{ssl_forward.1} parent=11 // pred_check
          %p522 = pneg %p323
        $region66: #{ssl_forward.1} parent=11 // pred_check_branch
          %524 = sbr.rel (%p522) target = $region68
        $region67: #{ssl_forward.1} parent=11 // pred_region
          %s526 = ssub.s32 256, 256
          %527 = vsyncadd [#allocation11], %s526
          %s529 = sshll.u32 [#allocation12], 4
          %s530 = int_to_ptr.vmem [resolvable:$true] %s529
          %532 = dma.hbm_to_vmem [thread:$0]  %s13, 256, %s530, [#allocation11]
        $region68: #{ssl_forward.1} parent=11 // pred_fallthru
          _
        // Predicated region
        $region69: #{ssl_forward.1} parent=11 // pred_check
          %p533 = pneg %p344
        $region70: #{ssl_forward.1} parent=11 // pred_check_branch
          %535 = sbr.rel (%p533) target = $region72
        $region71: #{ssl_forward.1} parent=11 // pred_region
          %s537 = ssub.s32 4096, 4096
          %538 = vsyncadd [#allocation14], %s537
          %s539 = sshll.u32 [#allocation13], 4
          %s540 = int_to_ptr.vmem [resolvable:$true] %s539
          %545 = dma.hbm_to_vmem [thread:$0]  %s14, 4096, %s540, [#allocation14], 256, 256, 16
        $region72: #{ssl_forward.1} parent=11 // pred_fallthru
          _
        // Predicated region
        $region73: #{ssl_forward.1} parent=11 // pred_check
          %p546 = pneg %p365
        $region74: #{ssl_forward.1} parent=11 // pred_check_branch
          %548 = sbr.rel (%p546) target = $region76
        $region75: #{ssl_forward.1} parent=11 // pred_region
          %s550 = ssub.s32 4096, 4096
          %551 = vsyncadd [#allocation14], %s550
          %s552 = sshll.u32 [#allocation15], 4
          %s553 = int_to_ptr.vmem [resolvable:$true] %s552
          %558 = dma.hbm_to_vmem [thread:$0]  %s15, 4096, %s553, [#allocation14], 64, 64, 4
        $region76: #{ssl_forward.1} parent=11 // pred_fallthru
          _
        // Predicated region
        $region77: #{ssl_forward.1} parent=11 // pred_check
          %p559 = pneg %p386
        $region78: #{ssl_forward.1} parent=11 // pred_check_branch
          %561 = sbr.rel (%p559) target = $region80
        $region79: #{ssl_forward.1} parent=11 // pred_region
          %s563 = ssub.s32 256, 256
          %564 = vsyncadd [#allocation17], %s563
          %s566 = sshll.u32 [#allocation16], 4
          %s567 = int_to_ptr.vmem [resolvable:$true] %s566
          %569 = dma.hbm_to_vmem [thread:$0]  %s16, 256, %s567, [#allocation17]
        $region80: #{ssl_forward.1} parent=11 // pred_fallthru
          _
      $region12: #{ssl_forward.1} parent=5 // pred_fallthru
        _
      %p570 = scmp.lt.s32.totalorder %s29, 2
      // Predicated region
      $region81: #{ssl_forward.1} parent=5 // pred_check
        %p571 = pneg %p570
      $region82: #{ssl_forward.1} parent=5 // pred_check_branch
        %573 = sbr.rel (%p571) target = $region84
      $region83: #{ssl_forward.1} parent=5 // pred_region
        _
      $region84: #{ssl_forward.1} parent=5 // pred_fallthru
        _
      %p574 = scmp.le.s32.totalorder 1, %s29
      %p575 = scmp.lt.s32.totalorder %s29, 3
      %p576 = pnand %p574, %p575
      %p577 = pneg %p576
      // Predicated region
      $region85: #{ssl_forward.1} parent=5 // pred_check
        _
      $region86: #{ssl_forward.1} parent=5 // pred_check_branch
        %579 = sbr.rel (%p576) target = $region88
      $region87: #{ssl_forward.1} parent=5 // pred_region
        %s580 = ssub.s32 %s29, 1
        // Predicated region
        $region89: #{ssl_forward.1} parent=87 // pred_check
          %p581 = pneg %p92
        $region90: #{ssl_forward.1} parent=87 // pred_check_branch
          %583 = sbr.rel (%p581) target = $region92
        $region91: #{ssl_forward.1} parent=87 // pred_region
          %584 = dma.done [#allocation3], 320
        $region92: #{ssl_forward.1} parent=87 // pred_fallthru
          _
        // Predicated region
        $region93: #{ssl_forward.1} parent=87 // pred_check
          %p585 = pneg %p113
        $region94: #{ssl_forward.1} parent=87 // pred_check_branch
          %587 = sbr.rel (%p585) target = $region96
        $region95: #{ssl_forward.1} parent=87 // pred_region
          %588 = dma.done [#allocation5], 16
        $region96: #{ssl_forward.1} parent=87 // pred_fallthru
          _
        // Predicated region
        $region97: #{ssl_forward.1} parent=87 // pred_check
          %p589 = pneg %p176
        $region98: #{ssl_forward.1} parent=87 // pred_check_branch
          %591 = sbr.rel (%p589) target = $region100
        $region99: #{ssl_forward.1} parent=87 // pred_region
          %592 = dma.done [#allocation5], 2048
        $region100: #{ssl_forward.1} parent=87 // pred_fallthru
          _
        // Predicated region
        $region101: #{ssl_forward.1} parent=87 // pred_check
          %p593 = pneg %p239
        $region102: #{ssl_forward.1} parent=87 // pred_check_branch
          %595 = sbr.rel (%p593) target = $region104
        $region103: #{ssl_forward.1} parent=87 // pred_region
          %596 = dma.done [#allocation8], 256
        $region104: #{ssl_forward.1} parent=87 // pred_fallthru
          _
        // Predicated region
        $region105: #{ssl_forward.1} parent=87 // pred_check
          %p597 = pneg %p260
        $region106: #{ssl_forward.1} parent=87 // pred_check_branch
          %599 = sbr.rel (%p597) target = $region108
        $region107: #{ssl_forward.1} parent=87 // pred_region
          %600 = dma.done [#allocation8], 3072
        $region108: #{ssl_forward.1} parent=87 // pred_fallthru
          _
        // Predicated region
        $region109: #{ssl_forward.1} parent=87 // pred_check
          %p601 = pneg %p302
        $region110: #{ssl_forward.1} parent=87 // pred_check_branch
          %603 = sbr.rel (%p601) target = $region112
        $region111: #{ssl_forward.1} parent=87 // pred_region
          %604 = dma.done [#allocation11], 4096
        $region112: #{ssl_forward.1} parent=87 // pred_fallthru
          _
        // Predicated region
        $region113: #{ssl_forward.1} parent=87 // pred_check
          %p605 = pneg %p323
        $region114: #{ssl_forward.1} parent=87 // pred_check_branch
          %607 = sbr.rel (%p605) target = $region116
        $region115: #{ssl_forward.1} parent=87 // pred_region
          %608 = dma.done [#allocation11], 256
        $region116: #{ssl_forward.1} parent=87 // pred_fallthru
          _
        // Predicated region
        $region117: #{ssl_forward.1} parent=87 // pred_check
          %p609 = pneg %p344
        $region118: #{ssl_forward.1} parent=87 // pred_check_branch
          %611 = sbr.rel (%p609) target = $region120
        $region119: #{ssl_forward.1} parent=87 // pred_region
          %612 = dma.done [#allocation14], 4096
        $region120: #{ssl_forward.1} parent=87 // pred_fallthru
          _
        // Predicated region
        $region121: #{ssl_forward.1} parent=87 // pred_check
          %p613 = pneg %p365
        $region122: #{ssl_forward.1} parent=87 // pred_check_branch
          %615 = sbr.rel (%p613) target = $region124
        $region123: #{ssl_forward.1} parent=87 // pred_region
          %616 = dma.done [#allocation14], 4096
        $region124: #{ssl_forward.1} parent=87 // pred_fallthru
          _
        // Predicated region
        $region125: #{ssl_forward.1} parent=87 // pred_check
          %p617 = pneg %p386
        $region126: #{ssl_forward.1} parent=87 // pred_check_branch
          %619 = sbr.rel (%p617) target = $region128
        $region127: #{ssl_forward.1} parent=87 // pred_region
          %620 = dma.done [#allocation17], 256
        $region128: #{ssl_forward.1} parent=87 // pred_fallthru
          _
        %p621 = pneg %p50
        %p622 = pneg %p47
        %p623 = pneg %p71
        %p624 = pneg %p68
        %p625 = pneg %p92
        %p626 = pneg %p89
        %p627 = pneg %p113
        %p628 = pneg %p110
        %p629 = pneg %p134
        %p630 = pneg %p131
        %p631 = pneg %p155
        %p632 = pneg %p152
        %p633 = pneg %p176
        %p634 = pneg %p173
        %p635 = pneg %p197
        %p636 = pneg %p194
        %p637 = pneg %p218
        %p638 = pneg %p215
        %p639 = pneg %p239
        %p640 = pneg %p236
        %p641 = pneg %p260
        %p642 = pneg %p257
        %p643 = pneg %p281
        %p644 = pneg %p278
        %p645 = pneg %p302
        %p646 = pneg %p299
        %p647 = pneg %p323
        %p648 = pneg %p320
        %p649 = pneg %p344
        %p650 = pneg %p341
        %p651 = pneg %p365
        %p652 = pneg %p362
        %p653 = pneg %p386
        %p654 = pneg %p383
        %p655 = pneg %p412
        %p656 = pneg %p409
        %p657 = scmp.lt.s32.totalorder %s34, 1
        %s658 = scalar_select %p657, %s34, 1
        %s659 = smul.addr %s658, 8
        %s660 = scalar_lea.vmem %s17, %s659
        %p661 = scmp.lt.s32.totalorder %s34, 1
        %s662 = scalar_select %p661, %s34, 1
        %s663 = smul.addr %s662, 8
        %s664 = scalar_lea.vmem %s17, %s663
        %p666 = scmp.eq.s32.totalorder %s34, 0
        // Predicated region
        $region129: #{ssl_forward.1} parent=87 // pred_check
          %p667 = pneg %p666
        $region130: #{ssl_forward.1} parent=87 // pred_check_branch
          %669 = sbr.rel (%p667) target = $region132
        $region131: #{ssl_forward.1} parent=87 // pred_region
          %v670 = vld [vmem:[%s4] sm:$0xf]
          %v671 = vld [vmem:[#allocation7] sm:$0xff]
          %v672 = vld [vmem:[#allocation7 + $0x8] sm:$0xff]
          %v673 = vld [vmem:[#allocation6] sm:$0xff]
          %v674 = vld [vmem:[#allocation6 + $0x8] sm:$0xff]
          %v675 = vld [vmem:[#allocation6 + $0x10] sm:$0xff]
          %v676 = vld [vmem:[#allocation6 + $0x18] sm:$0xff]
          %v677 = vld [vmem:[#allocation6 + $0x20] sm:$0xff]
          %v678 = vld [vmem:[#allocation6 + $0x28] sm:$0xff]
          %v679 = vld [vmem:[#allocation6 + $0x30] sm:$0xff]
          %v680 = vld [vmem:[#allocation6 + $0x38] sm:$0xff]
          %v681 = vld [vmem:[#allocation6 + $0x40] sm:$0xff]
          %v682 = vld [vmem:[#allocation6 + $0x48] sm:$0xff]
          %v683 = vld [vmem:[#allocation6 + $0x50] sm:$0xff]
          %v684 = vld [vmem:[#allocation6 + $0x58] sm:$0xff]
          %v685 = vld [vmem:[#allocation6 + $0x60] sm:$0xff]
          %v686 = vld [vmem:[#allocation6 + $0x68] sm:$0xff]
          %v687 = vld [vmem:[#allocation6 + $0x70] sm:$0xff]
          %v688 = vld [vmem:[#allocation6 + $0x78] sm:$0xff]
          %v705 = vunpack.c.l.b16 %v673
          %v706 = vunpack.c.h.b16 %v673
          %v707 = vunpack.c.l.b16 %v674
          %v708 = vunpack.c.h.b16 %v674
          %v709 = vunpack.c.l.b16 %v675
          %v710 = vunpack.c.h.b16 %v675
          %v711 = vunpack.c.l.b16 %v676
          %v712 = vunpack.c.h.b16 %v676
          %v713 = vunpack.c.l.b16 %v677
          %v714 = vunpack.c.h.b16 %v677
          %v715 = vunpack.c.l.b16 %v678
          %v716 = vunpack.c.h.b16 %v678
          %v717 = vunpack.c.l.b16 %v679
          %v718 = vunpack.c.h.b16 %v679
          %v719 = vunpack.c.l.b16 %v680
          %v720 = vunpack.c.h.b16 %v680
          %v721 = vunpack.c.l.b16 %v681
          %v722 = vunpack.c.h.b16 %v681
          %v723 = vunpack.c.l.b16 %v682
          %v724 = vunpack.c.h.b16 %v682
          %v725 = vunpack.c.l.b16 %v683
          %v726 = vunpack.c.h.b16 %v683
          %v727 = vunpack.c.l.b16 %v684
          %v728 = vunpack.c.h.b16 %v684
          %v729 = vunpack.c.l.b16 %v685
          %v730 = vunpack.c.h.b16 %v685
          %v731 = vunpack.c.l.b16 %v686
          %v732 = vunpack.c.h.b16 %v686
          %v733 = vunpack.c.l.b16 %v687
          %v734 = vunpack.c.h.b16 %v687
          %v735 = vunpack.c.l.b16 %v688
          %v736 = vunpack.c.h.b16 %v688
          %v737 = vpack.c.b16 %v709, %v705
          %v738 = vpack.c.b16 %v710, %v706
          %v739 = vpack.c.b16 %v711, %v707
          %v740 = vpack.c.b16 %v712, %v708
          %v741 = vpack.c.b16 %v717, %v713
          %v742 = vpack.c.b16 %v718, %v714
          %v743 = vpack.c.b16 %v719, %v715
          %v744 = vpack.c.b16 %v720, %v716
          %v745 = vpack.c.b16 %v725, %v721
          %v746 = vpack.c.b16 %v726, %v722
          %v747 = vpack.c.b16 %v727, %v723
          %v748 = vpack.c.b16 %v728, %v724
          %v749 = vpack.c.b16 %v733, %v729
          %v750 = vpack.c.b16 %v734, %v730
          %v751 = vpack.c.b16 %v735, %v731
          %v752 = vpack.c.b16 %v736, %v732
          %vm769 = vcmask 523264
          %v771 = vsel %vm769, %v670, 0
          %773 = vmatprep.subr.bf16.mxu0 0
          %774 = vmatpush1.bf16.msra.mxu0 0
          %775 = vmatprep.subr.bf16.mxu0 0
          %776 = vmatpush1.bf16.msra.mxu0 0
          %777 = vmatprep.subr.bf16.mxu0 0
          %778 = vmatpush1.bf16.msra.mxu0 0
          %779 = vmatprep.subr.bf16.mxu0 0
          %780 = vmatpush1.bf16.msra.mxu0 0
          %781 = vmatprep.subr.bf16.mxu0 %v750
          %782 = vmatpush1.bf16.msra.mxu0 %v749
          %783 = vmatprep.subr.bf16.mxu0 %v746
          %784 = vmatpush1.bf16.msra.mxu0 %v745
          %785 = vmatprep.subr.bf16.mxu0 %v742
          %786 = vmatpush1.bf16.msra.mxu0 %v741
          %787 = vmatprep.subr.bf16.mxu0 %v738
          %788 = vmatpush1.bf16.msra.mxu0 %v737
          %789 = vmatprep.subr.bf16.mxu0 0
          %790 = vmatpush2.bf16.msra.mxu0 0
          %791 = vmatprep.subr.bf16.mxu0 0
          %792 = vmatpush2.bf16.msra.mxu0 0
          %793 = vmatprep.subr.bf16.mxu0 0
          %794 = vmatpush2.bf16.msra.mxu0 0
          %795 = vmatprep.subr.bf16.mxu0 0
          %796 = vmatpush2.bf16.msra.mxu0 0
          %797 = vmatprep.subr.bf16.mxu0 0
          %798 = vmatpush2.bf16.msra.mxu0 0
          %799 = vmatprep.subr.bf16.mxu0 0
          %800 = vmatpush2.bf16.msra.mxu0 0
          %801 = vmatprep.subr.bf16.mxu0 0
          %802 = vmatpush2.bf16.msra.mxu0 0
          %803 = vmatprep.subr.bf16.mxu0 0
          %804 = vmatpush2.bf16.msra.mxu0 0
          %805 = vmatprep.mubr.bf16.mxu0 0
          %806 = vmatmul.mubr.bf16.gmra.mxu0 %v771
          %v807 = vpop.f32.mrf.mxu0
          %v808 = vadd.f32 0.0, %v807
          %v809 = vpop.f32.mrf.mxu0
          %v810 = vadd.f32 0.0, %v809
          %v811 = vpop.f32.mrf.mxu0
          %v812 = vpop.f32.mrf.mxu0
          %813 = vdwg.mxu0
          %814 = vmatprep.subr.bf16.mxu0 0
          %815 = vmatpush1.bf16.msra.mxu0 0
          %816 = vmatprep.subr.bf16.mxu0 0
          %817 = vmatpush1.bf16.msra.mxu0 0
          %818 = vmatprep.subr.bf16.mxu0 0
          %819 = vmatpush1.bf16.msra.mxu0 0
          %820 = vmatprep.subr.bf16.mxu0 0
          %821 = vmatpush1.bf16.msra.mxu0 0
          %822 = vmatprep.subr.bf16.mxu0 %v752
          %823 = vmatpush1.bf16.msra.mxu0 %v751
          %824 = vmatprep.subr.bf16.mxu0 %v748
          %825 = vmatpush1.bf16.msra.mxu0 %v747
          %826 = vmatprep.subr.bf16.mxu0 %v744
          %827 = vmatpush1.bf16.msra.mxu0 %v743
          %828 = vmatprep.subr.bf16.mxu0 %v740
          %829 = vmatpush1.bf16.msra.mxu0 %v739
          %830 = vmatprep.subr.bf16.mxu0 0
          %831 = vmatpush2.bf16.msra.mxu0 0
          %832 = vmatprep.subr.bf16.mxu0 0
          %833 = vmatpush2.bf16.msra.mxu0 0
          %834 = vmatprep.subr.bf16.mxu0 0
          %835 = vmatpush2.bf16.msra.mxu0 0
          %836 = vmatprep.subr.bf16.mxu0 0
          %837 = vmatpush2.bf16.msra.mxu0 0
          %838 = vmatprep.subr.bf16.mxu0 0
          %839 = vmatpush2.bf16.msra.mxu0 0
          %840 = vmatprep.subr.bf16.mxu0 0
          %841 = vmatpush2.bf16.msra.mxu0 0
          %842 = vmatprep.subr.bf16.mxu0 0
          %843 = vmatpush2.bf16.msra.mxu0 0
          %844 = vmatprep.subr.bf16.mxu0 0
          %845 = vmatpush2.bf16.msra.mxu0 0
          %846 = vmatprep.mubr.bf16.mxu0 0
          %847 = vmatmul.mubr.bf16.gmra.mxu0 %v771
          %v848 = vpop.f32.mrf.mxu0
          %v849 = vadd.f32 0.0, %v848
          %v850 = vpop.f32.mrf.mxu0
          %v851 = vadd.f32 0.0, %v850
          %v852 = vpop.f32.mrf.mxu0
          %v853 = vpop.f32.mrf.mxu0
          %854 = vdwg.mxu0
          %v855 = vrot.slane %v808, 4
          %v856 = vadd.f32 %v808, %v855
          %v857 = vrot.slane %v856, 2
          %v858 = vadd.f32 %v856, %v857
          %v859 = vrot.slane %v858, 1
          %v860 = vadd.f32 %v858, %v859
          %v861 = vrot.slane %v810, 4
          %v862 = vadd.f32 %v810, %v861
          %v863 = vrot.slane %v862, 2
          %v864 = vadd.f32 %v862, %v863
          %v865 = vrot.slane %v864, 1
          %v866 = vadd.f32 %v864, %v865
          %v867 = vrot.slane %v849, 4
          %v868 = vadd.f32 %v849, %v867
          %v869 = vrot.slane %v868, 2
          %v870 = vadd.f32 %v868, %v869
          %v871 = vrot.slane %v870, 1
          %v872 = vadd.f32 %v870, %v871
          %v873 = vrot.slane %v851, 4
          %v874 = vadd.f32 %v851, %v873
          %v875 = vrot.slane %v874, 2
          %v876 = vadd.f32 %v874, %v875
          %v877 = vrot.slane %v876, 1
          %v878 = vadd.f32 %v876, %v877
          %v879 = vrcp.pop 8.0
          %v880 = vmul.f32 %v860, %v879
          %v881 = vmul.f32 %v866, %v879
          %v882 = vmul.f32 %v872, %v879
          %v883 = vmul.f32 %v878, %v879
          %v884 = vmul.f32 %v808, %v808
          %v885 = vmul.f32 %v810, %v810
          %v886 = vmul.f32 %v849, %v849
          %v887 = vmul.f32 %v851, %v851
          %v888 = vrot.slane %v884, 4
          %v889 = vadd.f32 %v884, %v888
          %v890 = vrot.slane %v889, 2
          %v891 = vadd.f32 %v889, %v890
          %v892 = vrot.slane %v891, 1
          %v893 = vadd.f32 %v891, %v892
          %v894 = vrot.slane %v885, 4
          %v895 = vadd.f32 %v885, %v894
          %v896 = vrot.slane %v895, 2
          %v897 = vadd.f32 %v895, %v896
          %v898 = vrot.slane %v897, 1
          %v899 = vadd.f32 %v897, %v898
          %v900 = vrot.slane %v886, 4
          %v901 = vadd.f32 %v886, %v900
          %v902 = vrot.slane %v901, 2
          %v903 = vadd.f32 %v901, %v902
          %v904 = vrot.slane %v903, 1
          %v905 = vadd.f32 %v903, %v904
          %v906 = vrot.slane %v887, 4
          %v907 = vadd.f32 %v887, %v906
          %v908 = vrot.slane %v907, 2
          %v909 = vadd.f32 %v907, %v908
          %v910 = vrot.slane %v909, 1
          %v911 = vadd.f32 %v909, %v910
          %v912 = vmul.f32 %v893, %v879
          %v913 = vmul.f32 %v899, %v879
          %v914 = vmul.f32 %v905, %v879
          %v915 = vmul.f32 %v911, %v879
          %v916 = vmul.f32 %v880, %v880
          %v917 = vmul.f32 %v881, %v881
          %v918 = vmul.f32 %v882, %v882
          %v919 = vmul.f32 %v883, %v883
          %v920 = vsub.f32 %v912, %v916
          %v921 = vsub.f32 %v913, %v917
          %v922 = vsub.f32 %v914, %v918
          %v923 = vsub.f32 %v915, %v919
          %v924 = vmax.f32 %v920, 0.0
          %v925 = vmax.f32 %v921, 0.0
          %v926 = vmax.f32 %v922, 0.0
          %v927 = vmax.f32 %v923, 0.0
          %v928 = vsub.f32 %v808, %v880
          %v929 = vsub.f32 %v810, %v881
          %v930 = vsub.f32 %v849, %v882
          %v931 = vsub.f32 %v851, %v883
          %v932 = vadd.f32 %v924, 1e-05
          %v933 = vadd.f32 %v925, 1e-05
          %v934 = vadd.f32 %v926, 1e-05
          %v935 = vadd.f32 %v927, 1e-05
          %v936 = vrsqrt.pop %v932
          %v937 = vrsqrt.pop %v933
          %v938 = vrsqrt.pop %v934
          %v939 = vrsqrt.pop %v935
          %v940 = vmul.f32 %v928, %v936
          %v941 = vmul.f32 %v929, %v937
          %v942 = vmul.f32 %v930, %v938
          %v943 = vmul.f32 %v931, %v939
          %v946 = vlaneseq
          %v947 = vshrl.u32 %v946, 7
          %v948 = vsub.s32 0, %v947
          %v949 = vrot.slane %v671, %v948
          %v950 = vlaneseq
          %v951 = vshrl.u32 %v950, 7
          %v952 = vsub.s32 4, %v951
          %v953 = vrot.slane %v671, %v952
          %v954 = vlaneseq
          %v955 = vshrl.u32 %v954, 7
          %v956 = vsub.s32 0, %v955
          %v957 = vrot.slane %v672, %v956
          %v958 = vlaneseq
          %v959 = vshrl.u32 %v958, 7
          %v960 = vsub.s32 4, %v959
          %v961 = vrot.slane %v672, %v960
          %v966 = vlaneseq
          %v967 = vshrl.u32 %v966, 7
          %v968 = vsub.s32 0, %v967
          %v969 = vrot.slane %v949, %v968
          %v970 = vlaneseq
          %v971 = vshrl.u32 %v970, 7
          %v972 = vsub.s32 0, %v971
          %v973 = vrot.slane %v953, %v972
          %v974 = vlaneseq
          %v975 = vshrl.u32 %v974, 7
          %v976 = vsub.s32 0, %v975
          %v977 = vrot.slane %v957, %v976
          %v978 = vlaneseq
          %v979 = vshrl.u32 %v978, 7
          %v980 = vsub.s32 0, %v979
          %v981 = vrot.slane %v961, %v980
          %v982 = vmul.f32 %v940, %v969
          %v983 = vmul.f32 %v941, %v973
          %v984 = vmul.f32 %v942, %v977
          %v985 = vmul.f32 %v943, %v981
          %v986 = vlaneseq
          %v987 = vshrl.u32 %v986, 7
          %v988 = vsub.s32 1, %v987
          %v989 = vrot.slane %v671, %v988
          %v990 = vlaneseq
          %v991 = vshrl.u32 %v990, 7
          %v992 = vsub.s32 5, %v991
          %v993 = vrot.slane %v671, %v992
          %v994 = vlaneseq
          %v995 = vshrl.u32 %v994, 7
          %v996 = vsub.s32 1, %v995
          %v997 = vrot.slane %v672, %v996
          %v998 = vlaneseq
          %v999 = vshrl.u32 %v998, 7
          %v1000 = vsub.s32 5, %v999
          %v1001 = vrot.slane %v672, %v1000
          %v1006 = vlaneseq
          %v1007 = vshrl.u32 %v1006, 7
          %v1008 = vsub.s32 1, %v1007
          %v1009 = vrot.slane %v989, %v1008
          %v1010 = vlaneseq
          %v1011 = vshrl.u32 %v1010, 7
          %v1012 = vsub.s32 1, %v1011
          %v1013 = vrot.slane %v993, %v1012
          %v1014 = vlaneseq
          %v1015 = vshrl.u32 %v1014, 7
          %v1016 = vsub.s32 1, %v1015
          %v1017 = vrot.slane %v997, %v1016
          %v1018 = vlaneseq
          %v1019 = vshrl.u32 %v1018, 7
          %v1020 = vsub.s32 1, %v1019
          %v1021 = vrot.slane %v1001, %v1020
          %v1022 = vadd.f32 %v982, %v1009
          %v1023 = vadd.f32 %v983, %v1013
          %v1024 = vadd.f32 %v984, %v1017
          %v1025 = vadd.f32 %v985, %v1021
          %v1026 = vmax.f32 %v1022, 0.0
          %v1027 = vmax.f32 %v1023, 0.0
          %v1028 = vmax.f32 %v1024, 0.0
          %v1029 = vmax.f32 %v1025, 0.0
          %v1030 = vpack.c.bf16 %v1026, %v1026
          %v1031 = vpack.c.bf16 %v1027, %v1027
          %v1032 = vpack.c.bf16 %v1028, %v1028
          %v1033 = vpack.c.bf16 %v1029, %v1029
          %v1034 = vld [vmem:[%s7] sm:$0xff]
          %v1035 = vld [vmem:[%s7 + $0x8] sm:$0xff]
          %v1036 = vld [vmem:[%s7 + $0x10] sm:$0xff]
          %v1037 = vld [vmem:[%s7 + $0x18] sm:$0xff]
          %v1038 = vld [vmem:[%s7 + $0x20] sm:$0xff]
          %v1039 = vld [vmem:[%s7 + $0x28] sm:$0xff]
          %v1040 = vld [vmem:[%s7 + $0x30] sm:$0xff]
          %v1041 = vld [vmem:[%s7 + $0x38] sm:$0xff]
          %v1042 = vld [vmem:[%s7 + $0x40] sm:$0xff]
          %v1043 = vld [vmem:[%s7 + $0x48] sm:$0xff]
          %v1044 = vld [vmem:[%s7 + $0x50] sm:$0xff]
          %v1045 = vld [vmem:[%s7 + $0x58] sm:$0xff]
          %v1046 = vld [vmem:[%s7 + $0x60] sm:$0xff]
          %v1047 = vld [vmem:[%s7 + $0x68] sm:$0xff]
          %v1048 = vld [vmem:[%s7 + $0x70] sm:$0xff]
          %v1049 = vld [vmem:[%s7 + $0x78] sm:$0xff]
          %v1050 = vld [vmem:[%s7 + $0x80] sm:$0xff]
          %v1051 = vld [vmem:[%s7 + $0x88] sm:$0xff]
          %v1052 = vld [vmem:[%s7 + $0x90] sm:$0xff]
          %v1053 = vld [vmem:[%s7 + $0x98] sm:$0xff]
          %v1054 = vld [vmem:[%s7 + $0xa0] sm:$0xff]
          %v1055 = vld [vmem:[%s7 + $0xa8] sm:$0xff]
          %v1056 = vld [vmem:[%s7 + $0xb0] sm:$0xff]
          %v1057 = vld [vmem:[%s7 + $0xb8] sm:$0xff]
          %v1058 = vld [vmem:[%s7 + $0xc0] sm:$0xff]
          %v1059 = vld [vmem:[%s7 + $0xc8] sm:$0xff]
          %v1060 = vld [vmem:[%s7 + $0xd0] sm:$0xff]
          %v1061 = vld [vmem:[%s7 + $0xd8] sm:$0xff]
          %v1062 = vld [vmem:[%s7 + $0xe0] sm:$0xff]
          %v1063 = vld [vmem:[%s7 + $0xe8] sm:$0xff]
          %v1064 = vld [vmem:[%s7 + $0xf0] sm:$0xff]
          %v1065 = vld [vmem:[%s7 + $0xf8] sm:$0xff]
          %v1066 = vld [vmem:[%s7 + $0x100] sm:$0xff]
          %v1067 = vld [vmem:[%s7 + $0x108] sm:$0xff]
          %v1068 = vld [vmem:[%s7 + $0x110] sm:$0xff]
          %v1069 = vld [vmem:[%s7 + $0x118] sm:$0xff]
          %v1070 = vld [vmem:[%s7 + $0x120] sm:$0xff]
          %v1071 = vld [vmem:[%s7 + $0x128] sm:$0xff]
          %v1072 = vld [vmem:[%s7 + $0x130] sm:$0xff]
          %v1073 = vld [vmem:[%s7 + $0x138] sm:$0xff]
          %v1074 = vld [vmem:[%s7 + $0x140] sm:$0xff]
          %v1075 = vld [vmem:[%s7 + $0x148] sm:$0xff]
          %v1076 = vld [vmem:[%s7 + $0x150] sm:$0xff]
          %v1077 = vld [vmem:[%s7 + $0x158] sm:$0xff]
          %v1078 = vld [vmem:[%s7 + $0x160] sm:$0xff]
          %v1079 = vld [vmem:[%s7 + $0x168] sm:$0xff]
          %v1080 = vld [vmem:[%s7 + $0x170] sm:$0xff]
          %v1081 = vld [vmem:[%s7 + $0x178] sm:$0xff]
          %v1082 = vld [vmem:[%s7 + $0x180] sm:$0xff]
          %v1083 = vld [vmem:[%s7 + $0x188] sm:$0xff]
          %v1084 = vld [vmem:[%s7 + $0x190] sm:$0xff]
          %v1085 = vld [vmem:[%s7 + $0x198] sm:$0xff]
          %v1086 = vld [vmem:[%s7 + $0x1a0] sm:$0xff]
          %v1087 = vld [vmem:[%s7 + $0x1a8] sm:$0xff]
          %v1088 = vld [vmem:[%s7 + $0x1b0] sm:$0xff]
          %v1089 = vld [vmem:[%s7 + $0x1b8] sm:$0xff]
          %v1090 = vld [vmem:[%s7 + $0x1c0] sm:$0xff]
          %v1091 = vld [vmem:[%s7 + $0x1c8] sm:$0xff]
          %v1092 = vld [vmem:[%s7 + $0x1d0] sm:$0xff]
          %v1093 = vld [vmem:[%s7 + $0x1d8] sm:$0xff]
          %v1094 = vld [vmem:[%s7 + $0x1e0] sm:$0xff]
          %v1095 = vld [vmem:[%s7 + $0x1e8] sm:$0xff]
          %v1096 = vld [vmem:[%s7 + $0x1f0] sm:$0xff]
          %v1097 = vld [vmem:[%s7 + $0x1f8] sm:$0xff]
          %v1098 = vld [vmem:[%s7 + $0x200] sm:$0xff]
          %v1099 = vld [vmem:[%s7 + $0x208] sm:$0xff]
          %v1100 = vld [vmem:[%s7 + $0x210] sm:$0xff]
          %v1101 = vld [vmem:[%s7 + $0x218] sm:$0xff]
          %v1102 = vld [vmem:[%s7 + $0x220] sm:$0xff]
          %v1103 = vld [vmem:[%s7 + $0x228] sm:$0xff]
          %v1104 = vld [vmem:[%s7 + $0x230] sm:$0xff]
          %v1105 = vld [vmem:[%s7 + $0x238] sm:$0xff]
          %v1106 = vld [vmem:[%s7 + $0x240] sm:$0xff]
          %v1107 = vld [vmem:[%s7 + $0x248] sm:$0xff]
          %v1108 = vld [vmem:[%s7 + $0x250] sm:$0xff]
          %v1109 = vld [vmem:[%s7 + $0x258] sm:$0xff]
          %v1110 = vld [vmem:[%s7 + $0x260] sm:$0xff]
          %v1111 = vld [vmem:[%s7 + $0x268] sm:$0xff]
          %v1112 = vld [vmem:[%s7 + $0x270] sm:$0xff]
          %v1113 = vld [vmem:[%s7 + $0x278] sm:$0xff]
          %v1114 = vld [vmem:[%s7 + $0x280] sm:$0xff]
          %v1115 = vld [vmem:[%s7 + $0x288] sm:$0xff]
          %v1116 = vld [vmem:[%s7 + $0x290] sm:$0xff]
          %v1117 = vld [vmem:[%s7 + $0x298] sm:$0xff]
          %v1118 = vld [vmem:[%s7 + $0x2a0] sm:$0xff]
          %v1119 = vld [vmem:[%s7 + $0x2a8] sm:$0xff]
          %v1120 = vld [vmem:[%s7 + $0x2b0] sm:$0xff]
          %v1121 = vld [vmem:[%s7 + $0x2b8] sm:$0xff]
          %v1122 = vld [vmem:[%s7 + $0x2c0] sm:$0xff]
          %v1123 = vld [vmem:[%s7 + $0x2c8] sm:$0xff]
          %v1124 = vld [vmem:[%s7 + $0x2d0] sm:$0xff]
          %v1125 = vld [vmem:[%s7 + $0x2d8] sm:$0xff]
          %v1126 = vld [vmem:[%s7 + $0x2e0] sm:$0xff]
          %v1127 = vld [vmem:[%s7 + $0x2e8] sm:$0xff]
          %v1128 = vld [vmem:[%s7 + $0x2f0] sm:$0xff]
          %v1129 = vld [vmem:[%s7 + $0x2f8] sm:$0xff]
          %v1130 = vld [vmem:[%s7 + $0x300] sm:$0xff]
          %v1131 = vld [vmem:[%s7 + $0x308] sm:$0xff]
          %v1132 = vld [vmem:[%s7 + $0x310] sm:$0xff]
          %v1133 = vld [vmem:[%s7 + $0x318] sm:$0xff]
          %v1134 = vld [vmem:[%s7 + $0x320] sm:$0xff]
          %v1135 = vld [vmem:[%s7 + $0x328] sm:$0xff]
          %v1136 = vld [vmem:[%s7 + $0x330] sm:$0xff]
          %v1137 = vld [vmem:[%s7 + $0x338] sm:$0xff]
          %v1138 = vld [vmem:[%s7 + $0x340] sm:$0xff]
          %v1139 = vld [vmem:[%s7 + $0x348] sm:$0xff]
          %v1140 = vld [vmem:[%s7 + $0x350] sm:$0xff]
          %v1141 = vld [vmem:[%s7 + $0x358] sm:$0xff]
          %v1142 = vld [vmem:[%s7 + $0x360] sm:$0xff]
          %v1143 = vld [vmem:[%s7 + $0x368] sm:$0xff]
          %v1144 = vld [vmem:[%s7 + $0x370] sm:$0xff]
          %v1145 = vld [vmem:[%s7 + $0x378] sm:$0xff]
          %v1146 = vld [vmem:[%s7 + $0x380] sm:$0xff]
          %v1147 = vld [vmem:[%s7 + $0x388] sm:$0xff]
          %v1148 = vld [vmem:[%s7 + $0x390] sm:$0xff]
          %v1149 = vld [vmem:[%s7 + $0x398] sm:$0xff]
          %v1150 = vld [vmem:[%s7 + $0x3a0] sm:$0xff]
          %v1151 = vld [vmem:[%s7 + $0x3a8] sm:$0xff]
          %v1152 = vld [vmem:[%s7 + $0x3b0] sm:$0xff]
          %v1153 = vld [vmem:[%s7 + $0x3b8] sm:$0xff]
          %v1154 = vld [vmem:[%s7 + $0x3c0] sm:$0xff]
          %v1155 = vld [vmem:[%s7 + $0x3c8] sm:$0xff]
          %v1156 = vld [vmem:[%s7 + $0x3d0] sm:$0xff]
          %v1157 = vld [vmem:[%s7 + $0x3d8] sm:$0xff]
          %v1158 = vld [vmem:[%s7 + $0x3e0] sm:$0xff]
          %v1159 = vld [vmem:[%s7 + $0x3e8] sm:$0xff]
          %v1160 = vld [vmem:[%s7 + $0x3f0] sm:$0xff]
          %v1161 = vld [vmem:[%s7 + $0x3f8] sm:$0xff]
          %v1290 = vunpack.c.l.b16 %v1034
          %v1291 = vunpack.c.h.b16 %v1034
          %v1292 = vunpack.c.l.b16 %v1035
          %v1293 = vunpack.c.h.b16 %v1035
          %v1294 = vunpack.c.l.b16 %v1036
          %v1295 = vunpack.c.h.b16 %v1036
          %v1296 = vunpack.c.l.b16 %v1037
          %v1297 = vunpack.c.h.b16 %v1037
          %v1298 = vunpack.c.l.b16 %v1038
          %v1299 = vunpack.c.h.b16 %v1038
          %v1300 = vunpack.c.l.b16 %v1039
          %v1301 = vunpack.c.h.b16 %v1039
          %v1302 = vunpack.c.l.b16 %v1040
          %v1303 = vunpack.c.h.b16 %v1040
          %v1304 = vunpack.c.l.b16 %v1041
          %v1305 = vunpack.c.h.b16 %v1041
          %v1306 = vunpack.c.l.b16 %v1042
          %v1307 = vunpack.c.h.b16 %v1042
          %v1308 = vunpack.c.l.b16 %v1043
          %v1309 = vunpack.c.h.b16 %v1043
          %v1310 = vunpack.c.l.b16 %v1044
          %v1311 = vunpack.c.h.b16 %v1044
          %v1312 = vunpack.c.l.b16 %v1045
          %v1313 = vunpack.c.h.b16 %v1045
          %v1314 = vunpack.c.l.b16 %v1046
          %v1315 = vunpack.c.h.b16 %v1046
          %v1316 = vunpack.c.l.b16 %v1047
          %v1317 = vunpack.c.h.b16 %v1047
          %v1318 = vunpack.c.l.b16 %v1048
          %v1319 = vunpack.c.h.b16 %v1048
          %v1320 = vunpack.c.l.b16 %v1049
          %v1321 = vunpack.c.h.b16 %v1049
          %v1322 = vunpack.c.l.b16 %v1050
          %v1323 = vunpack.c.h.b16 %v1050
          %v1324 = vunpack.c.l.b16 %v1051
          %v1325 = vunpack.c.h.b16 %v1051
          %v1326 = vunpack.c.l.b16 %v1052
          %v1327 = vunpack.c.h.b16 %v1052
          %v1328 = vunpack.c.l.b16 %v1053
          %v1329 = vunpack.c.h.b16 %v1053
          %v1330 = vunpack.c.l.b16 %v1054
          %v1331 = vunpack.c.h.b16 %v1054
          %v1332 = vunpack.c.l.b16 %v1055
          %v1333 = vunpack.c.h.b16 %v1055
          %v1334 = vunpack.c.l.b16 %v1056
          %v1335 = vunpack.c.h.b16 %v1056
          %v1336 = vunpack.c.l.b16 %v1057
          %v1337 = vunpack.c.h.b16 %v1057
          %v1338 = vunpack.c.l.b16 %v1058
          %v1339 = vunpack.c.h.b16 %v1058
          %v1340 = vunpack.c.l.b16 %v1059
          %v1341 = vunpack.c.h.b16 %v1059
          %v1342 = vunpack.c.l.b16 %v1060
          %v1343 = vunpack.c.h.b16 %v1060
          %v1344 = vunpack.c.l.b16 %v1061
          %v1345 = vunpack.c.h.b16 %v1061
          %v1346 = vunpack.c.l.b16 %v1062
          %v1347 = vunpack.c.h.b16 %v1062
          %v1348 = vunpack.c.l.b16 %v1063
          %v1349 = vunpack.c.h.b16 %v1063
          %v1350 = vunpack.c.l.b16 %v1064
          %v1351 = vunpack.c.h.b16 %v1064
          %v1352 = vunpack.c.l.b16 %v1065
          %v1353 = vunpack.c.h.b16 %v1065
          %v1354 = vunpack.c.l.b16 %v1066
          %v1355 = vunpack.c.h.b16 %v1066
          %v1356 = vunpack.c.l.b16 %v1067
          %v1357 = vunpack.c.h.b16 %v1067
          %v1358 = vunpack.c.l.b16 %v1068
          %v1359 = vunpack.c.h.b16 %v1068
          %v1360 = vunpack.c.l.b16 %v1069
          %v1361 = vunpack.c.h.b16 %v1069
          %v1362 = vunpack.c.l.b16 %v1070
          %v1363 = vunpack.c.h.b16 %v1070
          %v1364 = vunpack.c.l.b16 %v1071
          %v1365 = vunpack.c.h.b16 %v1071
          %v1366 = vunpack.c.l.b16 %v1072
          %v1367 = vunpack.c.h.b16 %v1072
          %v1368 = vunpack.c.l.b16 %v1073
          %v1369 = vunpack.c.h.b16 %v1073
          %v1370 = vunpack.c.l.b16 %v1074
          %v1371 = vunpack.c.h.b16 %v1074
          %v1372 = vunpack.c.l.b16 %v1075
          %v1373 = vunpack.c.h.b16 %v1075
          %v1374 = vunpack.c.l.b16 %v1076
          %v1375 = vunpack.c.h.b16 %v1076
          %v1376 = vunpack.c.l.b16 %v1077
          %v1377 = vunpack.c.h.b16 %v1077
          %v1378 = vunpack.c.l.b16 %v1078
          %v1379 = vunpack.c.h.b16 %v1078
          %v1380 = vunpack.c.l.b16 %v1079
          %v1381 = vunpack.c.h.b16 %v1079
          %v1382 = vunpack.c.l.b16 %v1080
          %v1383 = vunpack.c.h.b16 %v1080
          %v1384 = vunpack.c.l.b16 %v1081
          %v1385 = vunpack.c.h.b16 %v1081
          %v1386 = vunpack.c.l.b16 %v1082
          %v1387 = vunpack.c.h.b16 %v1082
          %v1388 = vunpack.c.l.b16 %v1083
          %v1389 = vunpack.c.h.b16 %v1083
          %v1390 = vunpack.c.l.b16 %v1084
          %v1391 = vunpack.c.h.b16 %v1084
          %v1392 = vunpack.c.l.b16 %v1085
          %v1393 = vunpack.c.h.b16 %v1085
          %v1394 = vunpack.c.l.b16 %v1086
          %v1395 = vunpack.c.h.b16 %v1086
          %v1396 = vunpack.c.l.b16 %v1087
          %v1397 = vunpack.c.h.b16 %v1087
          %v1398 = vunpack.c.l.b16 %v1088
          %v1399 = vunpack.c.h.b16 %v1088
          %v1400 = vunpack.c.l.b16 %v1089
          %v1401 = vunpack.c.h.b16 %v1089
          %v1402 = vunpack.c.l.b16 %v1090
          %v1403 = vunpack.c.h.b16 %v1090
          %v1404 = vunpack.c.l.b16 %v1091
          %v1405 = vunpack.c.h.b16 %v1091
          %v1406 = vunpack.c.l.b16 %v1092
          %v1407 = vunpack.c.h.b16 %v1092
          %v1408 = vunpack.c.l.b16 %v1093
          %v1409 = vunpack.c.h.b16 %v1093
          %v1410 = vunpack.c.l.b16 %v1094
          %v1411 = vunpack.c.h.b16 %v1094
          %v1412 = vunpack.c.l.b16 %v1095
          %v1413 = vunpack.c.h.b16 %v1095
          %v1414 = vunpack.c.l.b16 %v1096
          %v1415 = vunpack.c.h.b16 %v1096
          %v1416 = vunpack.c.l.b16 %v1097
          %v1417 = vunpack.c.h.b16 %v1097
          %v1418 = vunpack.c.l.b16 %v1098
          %v1419 = vunpack.c.h.b16 %v1098
          %v1420 = vunpack.c.l.b16 %v1099
          %v1421 = vunpack.c.h.b16 %v1099
          %v1422 = vunpack.c.l.b16 %v1100
          %v1423 = vunpack.c.h.b16 %v1100
          %v1424 = vunpack.c.l.b16 %v1101
          %v1425 = vunpack.c.h.b16 %v1101
          %v1426 = vunpack.c.l.b16 %v1102
          %v1427 = vunpack.c.h.b16 %v1102
          %v1428 = vunpack.c.l.b16 %v1103
          %v1429 = vunpack.c.h.b16 %v1103
          %v1430 = vunpack.c.l.b16 %v1104
          %v1431 = vunpack.c.h.b16 %v1104
          %v1432 = vunpack.c.l.b16 %v1105
          %v1433 = vunpack.c.h.b16 %v1105
          %v1434 = vunpack.c.l.b16 %v1106
          %v1435 = vunpack.c.h.b16 %v1106
          %v1436 = vunpack.c.l.b16 %v1107
          %v1437 = vunpack.c.h.b16 %v1107
          %v1438 = vunpack.c.l.b16 %v1108
          %v1439 = vunpack.c.h.b16 %v1108
          %v1440 = vunpack.c.l.b16 %v1109
          %v1441 = vunpack.c.h.b16 %v1109
          %v1442 = vunpack.c.l.b16 %v1110
          %v1443 = vunpack.c.h.b16 %v1110
          %v1444 = vunpack.c.l.b16 %v1111
          %v1445 = vunpack.c.h.b16 %v1111
          %v1446 = vunpack.c.l.b16 %v1112
          %v1447 = vunpack.c.h.b16 %v1112
          %v1448 = vunpack.c.l.b16 %v1113
          %v1449 = vunpack.c.h.b16 %v1113
          %v1450 = vunpack.c.l.b16 %v1114
          %v1451 = vunpack.c.h.b16 %v1114
          %v1452 = vunpack.c.l.b16 %v1115
          %v1453 = vunpack.c.h.b16 %v1115
          %v1454 = vunpack.c.l.b16 %v1116
          %v1455 = vunpack.c.h.b16 %v1116
          %v1456 = vunpack.c.l.b16 %v1117
          %v1457 = vunpack.c.h.b16 %v1117
          %v1458 = vunpack.c.l.b16 %v1118
          %v1459 = vunpack.c.h.b16 %v1118
          %v1460 = vunpack.c.l.b16 %v1119
          %v1461 = vunpack.c.h.b16 %v1119
          %v1462 = vunpack.c.l.b16 %v1120
          %v1463 = vunpack.c.h.b16 %v1120
          %v1464 = vunpack.c.l.b16 %v1121
          %v1465 = vunpack.c.h.b16 %v1121
          %v1466 = vunpack.c.l.b16 %v1122
          %v1467 = vunpack.c.h.b16 %v1122
          %v1468 = vunpack.c.l.b16 %v1123
          %v1469 = vunpack.c.h.b16 %v1123
          %v1470 = vunpack.c.l.b16 %v1124
          %v1471 = vunpack.c.h.b16 %v1124
          %v1472 = vunpack.c.l.b16 %v1125
          %v1473 = vunpack.c.h.b16 %v1125
          %v1474 = vunpack.c.l.b16 %v1126
          %v1475 = vunpack.c.h.b16 %v1126
          %v1476 = vunpack.c.l.b16 %v1127
          %v1477 = vunpack.c.h.b16 %v1127
          %v1478 = vunpack.c.l.b16 %v1128
          %v1479 = vunpack.c.h.b16 %v1128
          %v1480 = vunpack.c.l.b16 %v1129
          %v1481 = vunpack.c.h.b16 %v1129
          %v1482 = vunpack.c.l.b16 %v1130
          %v1483 = vunpack.c.h.b16 %v1130
          %v1484 = vunpack.c.l.b16 %v1131
          %v1485 = vunpack.c.h.b16 %v1131
          %v1486 = vunpack.c.l.b16 %v1132
          %v1487 = vunpack.c.h.b16 %v1132
          %v1488 = vunpack.c.l.b16 %v1133
          %v1489 = vunpack.c.h.b16 %v1133
          %v1490 = vunpack.c.l.b16 %v1134
          %v1491 = vunpack.c.h.b16 %v1134
          %v1492 = vunpack.c.l.b16 %v1135
          %v1493 = vunpack.c.h.b16 %v1135
          %v1494 = vunpack.c.l.b16 %v1136
          %v1495 = vunpack.c.h.b16 %v1136
          %v1496 = vunpack.c.l.b16 %v1137
          %v1497 = vunpack.c.h.b16 %v1137
          %v1498 = vunpack.c.l.b16 %v1138
          %v1499 = vunpack.c.h.b16 %v1138
          %v1500 = vunpack.c.l.b16 %v1139
          %v1501 = vunpack.c.h.b16 %v1139
          %v1502 = vunpack.c.l.b16 %v1140
          %v1503 = vunpack.c.h.b16 %v1140
          %v1504 = vunpack.c.l.b16 %v1141
          %v1505 = vunpack.c.h.b16 %v1141
          %v1506 = vunpack.c.l.b16 %v1142
          %v1507 = vunpack.c.h.b16 %v1142
          %v1508 = vunpack.c.l.b16 %v1143
          %v1509 = vunpack.c.h.b16 %v1143
          %v1510 = vunpack.c.l.b16 %v1144
          %v1511 = vunpack.c.h.b16 %v1144
          %v1512 = vunpack.c.l.b16 %v1145
          %v1513 = vunpack.c.h.b16 %v1145
          %v1514 = vunpack.c.l.b16 %v1146
          %v1515 = vunpack.c.h.b16 %v1146
          %v1516 = vunpack.c.l.b16 %v1147
          %v1517 = vunpack.c.h.b16 %v1147
          %v1518 = vunpack.c.l.b16 %v1148
          %v1519 = vunpack.c.h.b16 %v1148
          %v1520 = vunpack.c.l.b16 %v1149
          %v1521 = vunpack.c.h.b16 %v1149
          %v1522 = vunpack.c.l.b16 %v1150
          %v1523 = vunpack.c.h.b16 %v1150
          %v1524 = vunpack.c.l.b16 %v1151
          %v1525 = vunpack.c.h.b16 %v1151
          %v1526 = vunpack.c.l.b16 %v1152
          %v1527 = vunpack.c.h.b16 %v1152
          %v1528 = vunpack.c.l.b16 %v1153
          %v1529 = vunpack.c.h.b16 %v1153
          %v1530 = vunpack.c.l.b16 %v1154
          %v1531 = vunpack.c.h.b16 %v1154
          %v1532 = vunpack.c.l.b16 %v1155
          %v1533 = vunpack.c.h.b16 %v1155
          %v1534 = vunpack.c.l.b16 %v1156
          %v1535 = vunpack.c.h.b16 %v1156
          %v1536 = vunpack.c.l.b16 %v1157
          %v1537 = vunpack.c.h.b16 %v1157
          %v1538 = vunpack.c.l.b16 %v1158
          %v1539 = vunpack.c.h.b16 %v1158
          %v1540 = vunpack.c.l.b16 %v1159
          %v1541 = vunpack.c.h.b16 %v1159
          %v1542 = vunpack.c.l.b16 %v1160
          %v1543 = vunpack.c.h.b16 %v1160
          %v1544 = vunpack.c.l.b16 %v1161
          %v1545 = vunpack.c.h.b16 %v1161
          %v1546 = vpack.c.b16 %v1294, %v1290
          %v1547 = vpack.c.b16 %v1295, %v1291
          %v1548 = vpack.c.b16 %v1296, %v1292
          %v1549 = vpack.c.b16 %v1297, %v1293
          %v1550 = vpack.c.b16 %v1302, %v1298
          %v1551 = vpack.c.b16 %v1303, %v1299
          %v1552 = vpack.c.b16 %v1304, %v1300
          %v1553 = vpack.c.b16 %v1305, %v1301
          %v1554 = vpack.c.b16 %v1310, %v1306
          %v1555 = vpack.c.b16 %v1311, %v1307
          %v1556 = vpack.c.b16 %v1312, %v1308
          %v1557 = vpack.c.b16 %v1313, %v1309
          %v1558 = vpack.c.b16 %v1318, %v1314
          %v1559 = vpack.c.b16 %v1319, %v1315
          %v1560 = vpack.c.b16 %v1320, %v1316
          %v1561 = vpack.c.b16 %v1321, %v1317
          %v1562 = vpack.c.b16 %v1326, %v1322
          %v1563 = vpack.c.b16 %v1327, %v1323
          %v1564 = vpack.c.b16 %v1328, %v1324
          %v1565 = vpack.c.b16 %v1329, %v1325
          %v1566 = vpack.c.b16 %v1334, %v1330
          %v1567 = vpack.c.b16 %v1335, %v1331
          %v1568 = vpack.c.b16 %v1336, %v1332
          %v1569 = vpack.c.b16 %v1337, %v1333
          %v1570 = vpack.c.b16 %v1342, %v1338
          %v1571 = vpack.c.b16 %v1343, %v1339
          %v1572 = vpack.c.b16 %v1344, %v1340
          %v1573 = vpack.c.b16 %v1345, %v1341
          %v1574 = vpack.c.b16 %v1350, %v1346
          %v1575 = vpack.c.b16 %v1351, %v1347
          %v1576 = vpack.c.b16 %v1352, %v1348
          %v1577 = vpack.c.b16 %v1353, %v1349
          %v1578 = vpack.c.b16 %v1358, %v1354
          %v1579 = vpack.c.b16 %v1359, %v1355
          %v1580 = vpack.c.b16 %v1360, %v1356
          %v1581 = vpack.c.b16 %v1361, %v1357
          %v1582 = vpack.c.b16 %v1366, %v1362
          %v1583 = vpack.c.b16 %v1367, %v1363
          %v1584 = vpack.c.b16 %v1368, %v1364
          %v1585 = vpack.c.b16 %v1369, %v1365
          %v1586 = vpack.c.b16 %v1374, %v1370
          %v1587 = vpack.c.b16 %v1375, %v1371
          %v1588 = vpack.c.b16 %v1376, %v1372
          %v1589 = vpack.c.b16 %v1377, %v1373
          %v1590 = vpack.c.b16 %v1382, %v1378
          %v1591 = vpack.c.b16 %v1383, %v1379
          %v1592 = vpack.c.b16 %v1384, %v1380
          %v1593 = vpack.c.b16 %v1385, %v1381
          %v1594 = vpack.c.b16 %v1390, %v1386
          %v1595 = vpack.c.b16 %v1391, %v1387
          %v1596 = vpack.c.b16 %v1392, %v1388
          %v1597 = vpack.c.b16 %v1393, %v1389
          %v1598 = vpack.c.b16 %v1398, %v1394
          %v1599 = vpack.c.b16 %v1399, %v1395
          %v1600 = vpack.c.b16 %v1400, %v1396
          %v1601 = vpack.c.b16 %v1401, %v1397
          %v1602 = vpack.c.b16 %v1406, %v1402
          %v1603 = vpack.c.b16 %v1407, %v1403
          %v1604 = vpack.c.b16 %v1408, %v1404
          %v1605 = vpack.c.b16 %v1409, %v1405
          %v1606 = vpack.c.b16 %v1414, %v1410
          %v1607 = vpack.c.b16 %v1415, %v1411
          %v1608 = vpack.c.b16 %v1416, %v1412
          %v1609 = vpack.c.b16 %v1417, %v1413
          %v1610 = vpack.c.b16 %v1422, %v1418
          %v1611 = vpack.c.b16 %v1423, %v1419
          %v1612 = vpack.c.b16 %v1424, %v1420
          %v1613 = vpack.c.b16 %v1425, %v1421
          %v1614 = vpack.c.b16 %v1430, %v1426
          %v1615 = vpack.c.b16 %v1431, %v1427
          %v1616 = vpack.c.b16 %v1432, %v1428
          %v1617 = vpack.c.b16 %v1433, %v1429
          %v1618 = vpack.c.b16 %v1438, %v1434
          %v1619 = vpack.c.b16 %v1439, %v1435
          %v1620 = vpack.c.b16 %v1440, %v1436
          %v1621 = vpack.c.b16 %v1441, %v1437
          %v1622 = vpack.c.b16 %v1446, %v1442
          %v1623 = vpack.c.b16 %v1447, %v1443
          %v1624 = vpack.c.b16 %v1448, %v1444
          %v1625 = vpack.c.b16 %v1449, %v1445
          %v1626 = vpack.c.b16 %v1454, %v1450
          %v1627 = vpack.c.b16 %v1455, %v1451
          %v1628 = vpack.c.b16 %v1456, %v1452
          %v1629 = vpack.c.b16 %v1457, %v1453
          %v1630 = vpack.c.b16 %v1462, %v1458
          %v1631 = vpack.c.b16 %v1463, %v1459
          %v1632 = vpack.c.b16 %v1464, %v1460
          %v1633 = vpack.c.b16 %v1465, %v1461
          %v1634 = vpack.c.b16 %v1470, %v1466
          %v1635 = vpack.c.b16 %v1471, %v1467
          %v1636 = vpack.c.b16 %v1472, %v1468
          %v1637 = vpack.c.b16 %v1473, %v1469
          %v1638 = vpack.c.b16 %v1478, %v1474
          %v1639 = vpack.c.b16 %v1479, %v1475
          %v1640 = vpack.c.b16 %v1480, %v1476
          %v1641 = vpack.c.b16 %v1481, %v1477
          %v1642 = vpack.c.b16 %v1486, %v1482
          %v1643 = vpack.c.b16 %v1487, %v1483
          %v1644 = vpack.c.b16 %v1488, %v1484
          %v1645 = vpack.c.b16 %v1489, %v1485
          %v1646 = vpack.c.b16 %v1494, %v1490
          %v1647 = vpack.c.b16 %v1495, %v1491
          %v1648 = vpack.c.b16 %v1496, %v1492
          %v1649 = vpack.c.b16 %v1497, %v1493
          %v1650 = vpack.c.b16 %v1502, %v1498
          %v1651 = vpack.c.b16 %v1503, %v1499
          %v1652 = vpack.c.b16 %v1504, %v1500
          %v1653 = vpack.c.b16 %v1505, %v1501
          %v1654 = vpack.c.b16 %v1510, %v1506
          %v1655 = vpack.c.b16 %v1511, %v1507
          %v1656 = vpack.c.b16 %v1512, %v1508
          %v1657 = vpack.c.b16 %v1513, %v1509
          %v1658 = vpack.c.b16 %v1518, %v1514
          %v1659 = vpack.c.b16 %v1519, %v1515
          %v1660 = vpack.c.b16 %v1520, %v1516
          %v1661 = vpack.c.b16 %v1521, %v1517
          %v1662 = vpack.c.b16 %v1526, %v1522
          %v1663 = vpack.c.b16 %v1527, %v1523
          %v1664 = vpack.c.b16 %v1528, %v1524
          %v1665 = vpack.c.b16 %v1529, %v1525
          %v1666 = vpack.c.b16 %v1534, %v1530
          %v1667 = vpack.c.b16 %v1535, %v1531
          %v1668 = vpack.c.b16 %v1536, %v1532
          %v1669 = vpack.c.b16 %v1537, %v1533
          %v1670 = vpack.c.b16 %v1542, %v1538
          %v1671 = vpack.c.b16 %v1543, %v1539
          %v1672 = vpack.c.b16 %v1544, %v1540
          %v1673 = vpack.c.b16 %v1545, %v1541
          %1802 = vmatprep.subr.bf16.mxu0 %v1575
          %1803 = vmatpush1.bf16.msra.mxu0 %v1574
          %1804 = vmatprep.subr.bf16.mxu0 %v1571
          %1805 = vmatpush1.bf16.msra.mxu0 %v1570
          %1806 = vmatprep.subr.bf16.mxu0 %v1567
          %1807 = vmatpush1.bf16.msra.mxu0 %v1566
          %1808 = vmatprep.subr.bf16.mxu0 %v1563
          %1809 = vmatpush1.bf16.msra.mxu0 %v1562
          %1810 = vmatprep.subr.bf16.mxu0 %v1559
          %1811 = vmatpush1.bf16.msra.mxu0 %v1558
          %1812 = vmatprep.subr.bf16.mxu0 %v1555
          %1813 = vmatpush1.bf16.msra.mxu0 %v1554
          %1814 = vmatprep.subr.bf16.mxu0 %v1551
          %1815 = vmatpush1.bf16.msra.mxu0 %v1550
          %1816 = vmatprep.subr.bf16.mxu0 %v1547
          %1817 = vmatpush1.bf16.msra.mxu0 %v1546
          %1818 = vmatprep.subr.bf16.mxu0 %v1607
          %1819 = vmatpush2.bf16.msra.mxu0 %v1606
          %1820 = vmatprep.subr.bf16.mxu0 %v1603
          %1821 = vmatpush2.bf16.msra.mxu0 %v1602
          %1822 = vmatprep.subr.bf16.mxu0 %v1599
          %1823 = vmatpush2.bf16.msra.mxu0 %v1598
          %1824 = vmatprep.subr.bf16.mxu0 %v1595
          %1825 = vmatpush2.bf16.msra.mxu0 %v1594
          %1826 = vmatprep.subr.bf16.mxu0 %v1591
          %1827 = vmatpush2.bf16.msra.mxu0 %v1590
          %1828 = vmatprep.subr.bf16.mxu0 %v1587
          %1829 = vmatpush2.bf16.msra.mxu0 %v1586
          %1830 = vmatprep.subr.bf16.mxu0 %v1583
          %1831 = vmatpush2.bf16.msra.mxu0 %v1582
          %1832 = vmatprep.subr.bf16.mxu0 %v1579
          %1833 = vmatpush2.bf16.msra.mxu0 %v1578
          %1834 = vmatprep.mubr.bf16.mxu0 %v1031
          %1835 = vmatmul.mubr.bf16.gmra.mxu0 %v1030
          %v1836 = vpop.f32.mrf.mxu0
          %v1837 = vadd.f32 0.0, %v1836
          %v1838 = vpop.f32.mrf.mxu0
          %v1839 = vadd.f32 0.0, %v1838
          %v1840 = vpop.f32.mrf.mxu0
          %v1841 = vpop.f32.mrf.mxu0
          %1842 = vdwg.mxu0
          %1843 = vmatprep.subr.bf16.mxu0 %v1639
          %1844 = vmatpush1.bf16.msra.mxu0 %v1638
          %1845 = vmatprep.subr.bf16.mxu0 %v1635
          %1846 = vmatpush1.bf16.msra.mxu0 %v1634
          %1847 = vmatprep.subr.bf16.mxu0 %v1631
          %1848 = vmatpush1.bf16.msra.mxu0 %v1630
          %1849 = vmatprep.subr.bf16.mxu0 %v1627
          %1850 = vmatpush1.bf16.msra.mxu0 %v1626
          %1851 = vmatprep.subr.bf16.mxu0 %v1623
          %1852 = vmatpush1.bf16.msra.mxu0 %v1622
          %1853 = vmatprep.subr.bf16.mxu0 %v1619
          %1854 = vmatpush1.bf16.msra.mxu0 %v1618
          %1855 = vmatprep.subr.bf16.mxu0 %v1615
          %1856 = vmatpush1.bf16.msra.mxu0 %v1614
          %1857 = vmatprep.subr.bf16.mxu0 %v1611
          %1858 = vmatpush1.bf16.msra.mxu0 %v1610
          %1859 = vmatprep.subr.bf16.mxu0 %v1671
          %1860 = vmatpush2.bf16.msra.mxu0 %v1670
          %1861 = vmatprep.subr.bf16.mxu0 %v1667
          %1862 = vmatpush2.bf16.msra.mxu0 %v1666
          %1863 = vmatprep.subr.bf16.mxu0 %v1663
          %1864 = vmatpush2.bf16.msra.mxu0 %v1662
          %1865 = vmatprep.subr.bf16.mxu0 %v1659
          %1866 = vmatpush2.bf16.msra.mxu0 %v1658
          %1867 = vmatprep.subr.bf16.mxu0 %v1655
          %1868 = vmatpush2.bf16.msra.mxu0 %v1654
          %1869 = vmatprep.subr.bf16.mxu0 %v1651
          %1870 = vmatpush2.bf16.msra.mxu0 %v1650
          %1871 = vmatprep.subr.bf16.mxu0 %v1647
          %1872 = vmatpush2.bf16.msra.mxu0 %v1646
          %1873 = vmatprep.subr.bf16.mxu0 %v1643
          %1874 = vmatpush2.bf16.msra.mxu0 %v1642
          %1875 = vmatprep.mubr.bf16.mxu0 %v1033
          %1876 = vmatmul.mubr.bf16.gmra.mxu0 %v1032
          %v1877 = vpop.f32.mrf.mxu0
          %v1878 = vadd.f32 %v1837, %v1877
          %v1879 = vpop.f32.mrf.mxu0
          %v1880 = vadd.f32 %v1839, %v1879
          %v1881 = vpop.f32.mrf.mxu0
          %v1882 = vpop.f32.mrf.mxu0
          %1883 = vdwg.mxu0
          %1884 = vmatprep.subr.bf16.mxu0 %v1577
          %1885 = vmatpush1.bf16.msra.mxu0 %v1576
          %1886 = vmatprep.subr.bf16.mxu0 %v1573
          %1887 = vmatpush1.bf16.msra.mxu0 %v1572
          %1888 = vmatprep.subr.bf16.mxu0 %v1569
          %1889 = vmatpush1.bf16.msra.mxu0 %v1568
          %1890 = vmatprep.subr.bf16.mxu0 %v1565
          %1891 = vmatpush1.bf16.msra.mxu0 %v1564
          %1892 = vmatprep.subr.bf16.mxu0 %v1561
          %1893 = vmatpush1.bf16.msra.mxu0 %v1560
          %1894 = vmatprep.subr.bf16.mxu0 %v1557
          %1895 = vmatpush1.bf16.msra.mxu0 %v1556
          %1896 = vmatprep.subr.bf16.mxu0 %v1553
          %1897 = vmatpush1.bf16.msra.mxu0 %v1552
          %1898 = vmatprep.subr.bf16.mxu0 %v1549
          %1899 = vmatpush1.bf16.msra.mxu0 %v1548
          %1900 = vmatprep.subr.bf16.mxu0 %v1609
          %1901 = vmatpush2.bf16.msra.mxu0 %v1608
          %1902 = vmatprep.subr.bf16.mxu0 %v1605
          %1903 = vmatpush2.bf16.msra.mxu0 %v1604
          %1904 = vmatprep.subr.bf16.mxu0 %v1601
          %1905 = vmatpush2.bf16.msra.mxu0 %v1600
          %1906 = vmatprep.subr.bf16.mxu0 %v1597
          %1907 = vmatpush2.bf16.msra.mxu0 %v1596
          %1908 = vmatprep.subr.bf16.mxu0 %v1593
          %1909 = vmatpush2.bf16.msra.mxu0 %v1592
          %1910 = vmatprep.subr.bf16.mxu0 %v1589
          %1911 = vmatpush2.bf16.msra.mxu0 %v1588
          %1912 = vmatprep.subr.bf16.mxu0 %v1585
          %1913 = vmatpush2.bf16.msra.mxu0 %v1584
          %1914 = vmatprep.subr.bf16.mxu0 %v1581
          %1915 = vmatpush2.bf16.msra.mxu0 %v1580
          %1916 = vmatprep.mubr.bf16.mxu0 %v1031
          %1917 = vmatmul.mubr.bf16.gmra.mxu0 %v1030
          %v1918 = vpop.f32.mrf.mxu0
          %v1919 = vadd.f32 0.0, %v1918
          %v1920 = vpop.f32.mrf.mxu0
          %v1921 = vadd.f32 0.0, %v1920
          %v1922 = vpop.f32.mrf.mxu0
          %v1923 = vpop.f32.mrf.mxu0
          %1924 = vdwg.mxu0
          %1925 = vmatprep.subr.bf16.mxu0 %v1641
          %1926 = vmatpush1.bf16.msra.mxu0 %v1640
          %1927 = vmatprep.subr.bf16.mxu0 %v1637
          %1928 = vmatpush1.bf16.msra.mxu0 %v1636
          %1929 = vmatprep.subr.bf16.mxu0 %v1633
          %1930 = vmatpush1.bf16.msra.mxu0 %v1632
          %1931 = vmatprep.subr.bf16.mxu0 %v1629
          %1932 = vmatpush1.bf16.msra.mxu0 %v1628
          %1933 = vmatprep.subr.bf16.mxu0 %v1625
          %1934 = vmatpush1.bf16.msra.mxu0 %v1624
          %1935 = vmatprep.subr.bf16.mxu0 %v1621
          %1936 = vmatpush1.bf16.msra.mxu0 %v1620
          %1937 = vmatprep.subr.bf16.mxu0 %v1617
          %1938 = vmatpush1.bf16.msra.mxu0 %v1616
          %1939 = vmatprep.subr.bf16.mxu0 %v1613
          %1940 = vmatpush1.bf16.msra.mxu0 %v1612
          %1941 = vmatprep.subr.bf16.mxu0 %v1673
          %1942 = vmatpush2.bf16.msra.mxu0 %v1672
          %1943 = vmatprep.subr.bf16.mxu0 %v1669
          %1944 = vmatpush2.bf16.msra.mxu0 %v1668
          %1945 = vmatprep.subr.bf16.mxu0 %v1665
          %1946 = vmatpush2.bf16.msra.mxu0 %v1664
          %1947 = vmatprep.subr.bf16.mxu0 %v1661
          %1948 = vmatpush2.bf16.msra.mxu0 %v1660
          %1949 = vmatprep.subr.bf16.mxu0 %v1657
          %1950 = vmatpush2.bf16.msra.mxu0 %v1656
          %1951 = vmatprep.subr.bf16.mxu0 %v1653
          %1952 = vmatpush2.bf16.msra.mxu0 %v1652
          %1953 = vmatprep.subr.bf16.mxu0 %v1649
          %1954 = vmatpush2.bf16.msra.mxu0 %v1648
          %1955 = vmatprep.subr.bf16.mxu0 %v1645
          %1956 = vmatpush2.bf16.msra.mxu0 %v1644
          %1957 = vmatprep.mubr.bf16.mxu0 %v1033
          %1958 = vmatmul.mubr.bf16.gmra.mxu0 %v1032
          %v1959 = vpop.f32.mrf.mxu0
          %v1960 = vadd.f32 %v1919, %v1959
          %v1961 = vpop.f32.mrf.mxu0
          %v1962 = vadd.f32 %v1921, %v1961
          %v1963 = vpop.f32.mrf.mxu0
          %v1964 = vpop.f32.mrf.mxu0
          %1965 = vdwg.mxu0
          %v1966 = vrot.slane %v1878, 4
          %v1967 = vadd.f32 %v1878, %v1966
          %v1968 = vrot.slane %v1967, 2
          %v1969 = vadd.f32 %v1967, %v1968
          %v1970 = vrot.slane %v1969, 1
          %v1971 = vadd.f32 %v1969, %v1970
          %v1972 = vrot.slane %v1880, 4
          %v1973 = vadd.f32 %v1880, %v1972
          %v1974 = vrot.slane %v1973, 2
          %v1975 = vadd.f32 %v1973, %v1974
          %v1976 = vrot.slane %v1975, 1
          %v1977 = vadd.f32 %v1975, %v1976
          %v1978 = vrot.slane %v1960, 4
          %v1979 = vadd.f32 %v1960, %v1978
          %v1980 = vrot.slane %v1979, 2
          %v1981 = vadd.f32 %v1979, %v1980
          %v1982 = vrot.slane %v1981, 1
          %v1983 = vadd.f32 %v1981, %v1982
          %v1984 = vrot.slane %v1962, 4
          %v1985 = vadd.f32 %v1962, %v1984
          %v1986 = vrot.slane %v1985, 2
          %v1987 = vadd.f32 %v1985, %v1986
          %v1988 = vrot.slane %v1987, 1
          %v1989 = vadd.f32 %v1987, %v1988
          %v1990 = vmul.f32 %v1971, %v879
          %v1991 = vmul.f32 %v1977, %v879
          %v1992 = vmul.f32 %v1983, %v879
          %v1993 = vmul.f32 %v1989, %v879
          %v1994 = vmul.f32 %v1878, %v1878
          %v1995 = vmul.f32 %v1880, %v1880
          %v1996 = vmul.f32 %v1960, %v1960
          %v1997 = vmul.f32 %v1962, %v1962
          %v1998 = vrot.slane %v1994, 4
          %v1999 = vadd.f32 %v1994, %v1998
          %v2000 = vrot.slane %v1999, 2
          %v2001 = vadd.f32 %v1999, %v2000
          %v2002 = vrot.slane %v2001, 1
          %v2003 = vadd.f32 %v2001, %v2002
          %v2004 = vrot.slane %v1995, 4
          %v2005 = vadd.f32 %v1995, %v2004
          %v2006 = vrot.slane %v2005, 2
          %v2007 = vadd.f32 %v2005, %v2006
          %v2008 = vrot.slane %v2007, 1
          %v2009 = vadd.f32 %v2007, %v2008
          %v2010 = vrot.slane %v1996, 4
          %v2011 = vadd.f32 %v1996, %v2010
          %v2012 = vrot.slane %v2011, 2
          %v2013 = vadd.f32 %v2011, %v2012
          %v2014 = vrot.slane %v2013, 1
          %v2015 = vadd.f32 %v2013, %v2014
          %v2016 = vrot.slane %v1997, 4
          %v2017 = vadd.f32 %v1997, %v2016
          %v2018 = vrot.slane %v2017, 2
          %v2019 = vadd.f32 %v2017, %v2018
          %v2020 = vrot.slane %v2019, 1
          %v2021 = vadd.f32 %v2019, %v2020
          %v2022 = vmul.f32 %v2003, %v879
          %v2023 = vmul.f32 %v2009, %v879
          %v2024 = vmul.f32 %v2015, %v879
          %v2025 = vmul.f32 %v2021, %v879
          %v2026 = vmul.f32 %v1990, %v1990
          %v2027 = vmul.f32 %v1991, %v1991
          %v2028 = vmul.f32 %v1992, %v1992
          %v2029 = vmul.f32 %v1993, %v1993
          %v2030 = vsub.f32 %v2022, %v2026
          %v2031 = vsub.f32 %v2023, %v2027
          %v2032 = vsub.f32 %v2024, %v2028
          %v2033 = vsub.f32 %v2025, %v2029
          %v2034 = vmax.f32 %v2030, 0.0
          %v2035 = vmax.f32 %v2031, 0.0
          %v2036 = vmax.f32 %v2032, 0.0
          %v2037 = vmax.f32 %v2033, 0.0
          %v2038 = vsub.f32 %v1878, %v1990
          %v2039 = vsub.f32 %v1880, %v1991
          %v2040 = vsub.f32 %v1960, %v1992
          %v2041 = vsub.f32 %v1962, %v1993
          %v2042 = vadd.f32 %v2034, 1e-05
          %v2043 = vadd.f32 %v2035, 1e-05
          %v2044 = vadd.f32 %v2036, 1e-05
          %v2045 = vadd.f32 %v2037, 1e-05
          %v2046 = vrsqrt.pop %v2042
          %v2047 = vrsqrt.pop %v2043
          %v2048 = vrsqrt.pop %v2044
          %v2049 = vrsqrt.pop %v2045
          %v2050 = vmul.f32 %v2038, %v2046
          %v2051 = vmul.f32 %v2039, %v2047
          %v2052 = vmul.f32 %v2040, %v2048
          %v2053 = vmul.f32 %v2041, %v2049
          %v2054 = vlaneseq
          %v2055 = vshrl.u32 %v2054, 7
          %v2056 = vsub.s32 2, %v2055
          %v2057 = vrot.slane %v671, %v2056
          %v2058 = vlaneseq
          %v2059 = vshrl.u32 %v2058, 7
          %v2060 = vsub.s32 6, %v2059
          %v2061 = vrot.slane %v671, %v2060
          %v2062 = vlaneseq
          %v2063 = vshrl.u32 %v2062, 7
          %v2064 = vsub.s32 2, %v2063
          %v2065 = vrot.slane %v672, %v2064
          %v2066 = vlaneseq
          %v2067 = vshrl.u32 %v2066, 7
          %v2068 = vsub.s32 6, %v2067
          %v2069 = vrot.slane %v672, %v2068
          %v2074 = vlaneseq
          %v2075 = vshrl.u32 %v2074, 7
          %v2076 = vsub.s32 2, %v2075
          %v2077 = vrot.slane %v2057, %v2076
          %v2078 = vlaneseq
          %v2079 = vshrl.u32 %v2078, 7
          %v2080 = vsub.s32 2, %v2079
          %v2081 = vrot.slane %v2061, %v2080
          %v2082 = vlaneseq
          %v2083 = vshrl.u32 %v2082, 7
          %v2084 = vsub.s32 2, %v2083
          %v2085 = vrot.slane %v2065, %v2084
          %v2086 = vlaneseq
          %v2087 = vshrl.u32 %v2086, 7
          %v2088 = vsub.s32 2, %v2087
          %v2089 = vrot.slane %v2069, %v2088
          %v2090 = vmul.f32 %v2050, %v2077
          %v2091 = vmul.f32 %v2051, %v2081
          %v2092 = vmul.f32 %v2052, %v2085
          %v2093 = vmul.f32 %v2053, %v2089
          %v2094 = vlaneseq
          %v2095 = vshrl.u32 %v2094, 7
          %v2096 = vsub.s32 3, %v2095
          %v2097 = vrot.slane %v671, %v2096
          %v2098 = vlaneseq
          %v2099 = vshrl.u32 %v2098, 7
          %v2100 = vsub.s32 7, %v2099
          %v2101 = vrot.slane %v671, %v2100
          %v2102 = vlaneseq
          %v2103 = vshrl.u32 %v2102, 7
          %v2104 = vsub.s32 3, %v2103
          %v2105 = vrot.slane %v672, %v2104
          %v2106 = vlaneseq
          %v2107 = vshrl.u32 %v2106, 7
          %v2108 = vsub.s32 7, %v2107
          %v2109 = vrot.slane %v672, %v2108
          %v2114 = vlaneseq
          %v2115 = vshrl.u32 %v2114, 7
          %v2116 = vsub.s32 3, %v2115
          %v2117 = vrot.slane %v2097, %v2116
          %v2118 = vlaneseq
          %v2119 = vshrl.u32 %v2118, 7
          %v2120 = vsub.s32 3, %v2119
          %v2121 = vrot.slane %v2101, %v2120
          %v2122 = vlaneseq
          %v2123 = vshrl.u32 %v2122, 7
          %v2124 = vsub.s32 3, %v2123
          %v2125 = vrot.slane %v2105, %v2124
          %v2126 = vlaneseq
          %v2127 = vshrl.u32 %v2126, 7
          %v2128 = vsub.s32 3, %v2127
          %v2129 = vrot.slane %v2109, %v2128
          %v2130 = vadd.f32 %v2090, %v2117
          %v2131 = vadd.f32 %v2091, %v2121
          %v2132 = vadd.f32 %v2092, %v2125
          %v2133 = vadd.f32 %v2093, %v2129
          %v2134 = vmax.f32 %v2130, 0.0
          %v2135 = vmax.f32 %v2131, 0.0
          %v2136 = vmax.f32 %v2132, 0.0
          %v2137 = vmax.f32 %v2133, 0.0
          %v2138 = vpack.c.bf16 %v2134, %v2134
          %v2139 = vpack.c.bf16 %v2135, %v2135
          %v2140 = vpack.c.bf16 %v2136, %v2136
          %v2141 = vpack.c.bf16 %v2137, %v2137
          %v2142 = vld [vmem:[%s8] sm:$0xf]
          %v2143 = vld [vmem:[%s8 + $0x4] sm:$0xf]
          %v2144 = vld [vmem:[%s8 + $0x8] sm:$0xf]
          %v2145 = vld [vmem:[%s8 + $0xc] sm:$0xf]
          %v2146 = vld [vmem:[%s8 + $0x10] sm:$0xf]
          %v2147 = vld [vmem:[%s8 + $0x14] sm:$0xf]
          %v2148 = vld [vmem:[%s8 + $0x18] sm:$0xf]
          %v2149 = vld [vmem:[%s8 + $0x1c] sm:$0xf]
          %v2150 = vld [vmem:[%s8 + $0x20] sm:$0xf]
          %v2151 = vld [vmem:[%s8 + $0x24] sm:$0xf]
          %v2152 = vld [vmem:[%s8 + $0x28] sm:$0xf]
          %v2153 = vld [vmem:[%s8 + $0x2c] sm:$0xf]
          %v2154 = vld [vmem:[%s8 + $0x30] sm:$0xf]
          %v2155 = vld [vmem:[%s8 + $0x34] sm:$0xf]
          %v2156 = vld [vmem:[%s8 + $0x38] sm:$0xf]
          %v2157 = vld [vmem:[%s8 + $0x3c] sm:$0xf]
          %v2158 = vld [vmem:[%s8 + $0x40] sm:$0xf]
          %v2159 = vld [vmem:[%s8 + $0x44] sm:$0xf]
          %v2160 = vld [vmem:[%s8 + $0x48] sm:$0xf]
          %v2161 = vld [vmem:[%s8 + $0x4c] sm:$0xf]
          %v2162 = vld [vmem:[%s8 + $0x50] sm:$0xf]
          %v2163 = vld [vmem:[%s8 + $0x54] sm:$0xf]
          %v2164 = vld [vmem:[%s8 + $0x58] sm:$0xf]
          %v2165 = vld [vmem:[%s8 + $0x5c] sm:$0xf]
          %v2166 = vld [vmem:[%s8 + $0x60] sm:$0xf]
          %v2167 = vld [vmem:[%s8 + $0x64] sm:$0xf]
          %v2168 = vld [vmem:[%s8 + $0x68] sm:$0xf]
          %v2169 = vld [vmem:[%s8 + $0x6c] sm:$0xf]
          %v2170 = vld [vmem:[%s8 + $0x70] sm:$0xf]
          %v2171 = vld [vmem:[%s8 + $0x74] sm:$0xf]
          %v2172 = vld [vmem:[%s8 + $0x78] sm:$0xf]
          %v2173 = vld [vmem:[%s8 + $0x7c] sm:$0xf]
          %v2174 = vld [vmem:[%s8 + $0x80] sm:$0xf]
          %v2175 = vld [vmem:[%s8 + $0x84] sm:$0xf]
          %v2176 = vld [vmem:[%s8 + $0x88] sm:$0xf]
          %v2177 = vld [vmem:[%s8 + $0x8c] sm:$0xf]
          %v2178 = vld [vmem:[%s8 + $0x90] sm:$0xf]
          %v2179 = vld [vmem:[%s8 + $0x94] sm:$0xf]
          %v2180 = vld [vmem:[%s8 + $0x98] sm:$0xf]
          %v2181 = vld [vmem:[%s8 + $0x9c] sm:$0xf]
          %v2182 = vld [vmem:[%s8 + $0xa0] sm:$0xf]
          %v2183 = vld [vmem:[%s8 + $0xa4] sm:$0xf]
          %v2184 = vld [vmem:[%s8 + $0xa8] sm:$0xf]
          %v2185 = vld [vmem:[%s8 + $0xac] sm:$0xf]
          %v2186 = vld [vmem:[%s8 + $0xb0] sm:$0xf]
          %v2187 = vld [vmem:[%s8 + $0xb4] sm:$0xf]
          %v2188 = vld [vmem:[%s8 + $0xb8] sm:$0xf]
          %v2189 = vld [vmem:[%s8 + $0xbc] sm:$0xf]
          %v2190 = vld [vmem:[%s8 + $0xc0] sm:$0xf]
          %v2191 = vld [vmem:[%s8 + $0xc4] sm:$0xf]
          %v2192 = vld [vmem:[%s8 + $0xc8] sm:$0xf]
          %v2193 = vld [vmem:[%s8 + $0xcc] sm:$0xf]
          %v2194 = vld [vmem:[%s8 + $0xd0] sm:$0xf]
          %v2195 = vld [vmem:[%s8 + $0xd4] sm:$0xf]
          %v2196 = vld [vmem:[%s8 + $0xd8] sm:$0xf]
          %v2197 = vld [vmem:[%s8 + $0xdc] sm:$0xf]
          %v2198 = vld [vmem:[%s8 + $0xe0] sm:$0xf]
          %v2199 = vld [vmem:[%s8 + $0xe4] sm:$0xf]
          %v2200 = vld [vmem:[%s8 + $0xe8] sm:$0xf]
          %v2201 = vld [vmem:[%s8 + $0xec] sm:$0xf]
          %v2202 = vld [vmem:[%s8 + $0xf0] sm:$0xf]
          %v2203 = vld [vmem:[%s8 + $0xf4] sm:$0xf]
          %v2204 = vld [vmem:[%s8 + $0xf8] sm:$0xf]
          %v2205 = vld [vmem:[%s8 + $0xfc] sm:$0xf]
          %v2270 = vunpack.c.l.b16 %v2142
          %v2271 = vunpack.c.l.b16 %v2143
          %v2272 = vunpack.c.l.b16 %v2144
          %v2273 = vunpack.c.l.b16 %v2145
          %v2274 = vunpack.c.l.b16 %v2146
          %v2275 = vunpack.c.l.b16 %v2147
          %v2276 = vunpack.c.l.b16 %v2148
          %v2277 = vunpack.c.l.b16 %v2149
          %v2278 = vunpack.c.l.b16 %v2150
          %v2279 = vunpack.c.l.b16 %v2151
          %v2280 = vunpack.c.l.b16 %v2152
          %v2281 = vunpack.c.l.b16 %v2153
          %v2282 = vunpack.c.l.b16 %v2154
          %v2283 = vunpack.c.l.b16 %v2155
          %v2284 = vunpack.c.l.b16 %v2156
          %v2285 = vunpack.c.l.b16 %v2157
          %v2286 = vunpack.c.l.b16 %v2158
          %v2287 = vunpack.c.l.b16 %v2159
          %v2288 = vunpack.c.l.b16 %v2160
          %v2289 = vunpack.c.l.b16 %v2161
          %v2290 = vunpack.c.l.b16 %v2162
          %v2291 = vunpack.c.l.b16 %v2163
          %v2292 = vunpack.c.l.b16 %v2164
          %v2293 = vunpack.c.l.b16 %v2165
          %v2294 = vunpack.c.l.b16 %v2166
          %v2295 = vunpack.c.l.b16 %v2167
          %v2296 = vunpack.c.l.b16 %v2168
          %v2297 = vunpack.c.l.b16 %v2169
          %v2298 = vunpack.c.l.b16 %v2170
          %v2299 = vunpack.c.l.b16 %v2171
          %v2300 = vunpack.c.l.b16 %v2172
          %v2301 = vunpack.c.l.b16 %v2173
          %v2302 = vunpack.c.l.b16 %v2174
          %v2303 = vunpack.c.l.b16 %v2175
          %v2304 = vunpack.c.l.b16 %v2176
          %v2305 = vunpack.c.l.b16 %v2177
          %v2306 = vunpack.c.l.b16 %v2178
          %v2307 = vunpack.c.l.b16 %v2179
          %v2308 = vunpack.c.l.b16 %v2180
          %v2309 = vunpack.c.l.b16 %v2181
          %v2310 = vunpack.c.l.b16 %v2182
          %v2311 = vunpack.c.l.b16 %v2183
          %v2312 = vunpack.c.l.b16 %v2184
          %v2313 = vunpack.c.l.b16 %v2185
          %v2314 = vunpack.c.l.b16 %v2186
          %v2315 = vunpack.c.l.b16 %v2187
          %v2316 = vunpack.c.l.b16 %v2188
          %v2317 = vunpack.c.l.b16 %v2189
          %v2318 = vunpack.c.l.b16 %v2190
          %v2319 = vunpack.c.l.b16 %v2191
          %v2320 = vunpack.c.l.b16 %v2192
          %v2321 = vunpack.c.l.b16 %v2193
          %v2322 = vunpack.c.l.b16 %v2194
          %v2323 = vunpack.c.l.b16 %v2195
          %v2324 = vunpack.c.l.b16 %v2196
          %v2325 = vunpack.c.l.b16 %v2197
          %v2326 = vunpack.c.l.b16 %v2198
          %v2327 = vunpack.c.l.b16 %v2199
          %v2328 = vunpack.c.l.b16 %v2200
          %v2329 = vunpack.c.l.b16 %v2201
          %v2330 = vunpack.c.l.b16 %v2202
          %v2331 = vunpack.c.l.b16 %v2203
          %v2332 = vunpack.c.l.b16 %v2204
          %v2333 = vunpack.c.l.b16 %v2205
          %v2334 = vpack.c.b16 %v2271, %v2270
          %v2335 = vpack.c.b16 %v2273, %v2272
          %v2336 = vpack.c.b16 %v2275, %v2274
          %v2337 = vpack.c.b16 %v2277, %v2276
          %v2338 = vpack.c.b16 %v2279, %v2278
          %v2339 = vpack.c.b16 %v2281, %v2280
          %v2340 = vpack.c.b16 %v2283, %v2282
          %v2341 = vpack.c.b16 %v2285, %v2284
          %v2342 = vpack.c.b16 %v2287, %v2286
          %v2343 = vpack.c.b16 %v2289, %v2288
          %v2344 = vpack.c.b16 %v2291, %v2290
          %v2345 = vpack.c.b16 %v2293, %v2292
          %v2346 = vpack.c.b16 %v2295, %v2294
          %v2347 = vpack.c.b16 %v2297, %v2296
          %v2348 = vpack.c.b16 %v2299, %v2298
          %v2349 = vpack.c.b16 %v2301, %v2300
          %v2350 = vpack.c.b16 %v2303, %v2302
          %v2351 = vpack.c.b16 %v2305, %v2304
          %v2352 = vpack.c.b16 %v2307, %v2306
          %v2353 = vpack.c.b16 %v2309, %v2308
          %v2354 = vpack.c.b16 %v2311, %v2310
          %v2355 = vpack.c.b16 %v2313, %v2312
          %v2356 = vpack.c.b16 %v2315, %v2314
          %v2357 = vpack.c.b16 %v2317, %v2316
          %v2358 = vpack.c.b16 %v2319, %v2318
          %v2359 = vpack.c.b16 %v2321, %v2320
          %v2360 = vpack.c.b16 %v2323, %v2322
          %v2361 = vpack.c.b16 %v2325, %v2324
          %v2362 = vpack.c.b16 %v2327, %v2326
          %v2363 = vpack.c.b16 %v2329, %v2328
          %v2364 = vpack.c.b16 %v2331, %v2330
          %v2365 = vpack.c.b16 %v2333, %v2332
          %2398 = vmatprep.subr.bf16.mxu0 0
          %2399 = vmatpush1.bf16.msra.mxu0 %v2341
          %2400 = vmatprep.subr.bf16.mxu0 0
          %2401 = vmatpush1.bf16.msra.mxu0 %v2340
          %2402 = vmatprep.subr.bf16.mxu0 0
          %2403 = vmatpush1.bf16.msra.mxu0 %v2339
          %2404 = vmatprep.subr.bf16.mxu0 0
          %2405 = vmatpush1.bf16.msra.mxu0 %v2338
          %2406 = vmatprep.subr.bf16.mxu0 0
          %2407 = vmatpush1.bf16.msra.mxu0 %v2337
          %2408 = vmatprep.subr.bf16.mxu0 0
          %2409 = vmatpush1.bf16.msra.mxu0 %v2336
          %2410 = vmatprep.subr.bf16.mxu0 0
          %2411 = vmatpush1.bf16.msra.mxu0 %v2335
          %2412 = vmatprep.subr.bf16.mxu0 0
          %2413 = vmatpush1.bf16.msra.mxu0 %v2334
          %2414 = vmatprep.subr.bf16.mxu0 0
          %2415 = vmatpush2.bf16.msra.mxu0 %v2349
          %2416 = vmatprep.subr.bf16.mxu0 0
          %2417 = vmatpush2.bf16.msra.mxu0 %v2348
          %2418 = vmatprep.subr.bf16.mxu0 0
          %2419 = vmatpush2.bf16.msra.mxu0 %v2347
          %2420 = vmatprep.subr.bf16.mxu0 0
          %2421 = vmatpush2.bf16.msra.mxu0 %v2346
          %2422 = vmatprep.subr.bf16.mxu0 0
          %2423 = vmatpush2.bf16.msra.mxu0 %v2345
          %2424 = vmatprep.subr.bf16.mxu0 0
          %2425 = vmatpush2.bf16.msra.mxu0 %v2344
          %2426 = vmatprep.subr.bf16.mxu0 0
          %2427 = vmatpush2.bf16.msra.mxu0 %v2343
          %2428 = vmatprep.subr.bf16.mxu0 0
          %2429 = vmatpush2.bf16.msra.mxu0 %v2342
          %2430 = vmatprep.mubr.bf16.mxu0 %v2139
          %2431 = vmatmul.mubr.bf16.gmra.mxu0 %v2138
          %v2432 = vpop.f32.mrf.mxu0
          %v2433 = vadd.f32 0.0, %v2432
          %v2434 = vpop.f32.mrf.mxu0
          %v2435 = vpop.f32.mrf.mxu0
          %v2436 = vpop.f32.mrf.mxu0
          %2437 = vdwg.mxu0
          %2438 = vmatprep.subr.bf16.mxu0 0
          %2439 = vmatpush1.bf16.msra.mxu0 %v2357
          %2440 = vmatprep.subr.bf16.mxu0 0
          %2441 = vmatpush1.bf16.msra.mxu0 %v2356
          %2442 = vmatprep.subr.bf16.mxu0 0
          %2443 = vmatpush1.bf16.msra.mxu0 %v2355
          %2444 = vmatprep.subr.bf16.mxu0 0
          %2445 = vmatpush1.bf16.msra.mxu0 %v2354
          %2446 = vmatprep.subr.bf16.mxu0 0
          %2447 = vmatpush1.bf16.msra.mxu0 %v2353
          %2448 = vmatprep.subr.bf16.mxu0 0
          %2449 = vmatpush1.bf16.msra.mxu0 %v2352
          %2450 = vmatprep.subr.bf16.mxu0 0
          %2451 = vmatpush1.bf16.msra.mxu0 %v2351
          %2452 = vmatprep.subr.bf16.mxu0 0
          %2453 = vmatpush1.bf16.msra.mxu0 %v2350
          %2454 = vmatprep.subr.bf16.mxu0 0
          %2455 = vmatpush2.bf16.msra.mxu0 %v2365
          %2456 = vmatprep.subr.bf16.mxu0 0
          %2457 = vmatpush2.bf16.msra.mxu0 %v2364
          %2458 = vmatprep.subr.bf16.mxu0 0
          %2459 = vmatpush2.bf16.msra.mxu0 %v2363
          %2460 = vmatprep.subr.bf16.mxu0 0
          %2461 = vmatpush2.bf16.msra.mxu0 %v2362
          %2462 = vmatprep.subr.bf16.mxu0 0
          %2463 = vmatpush2.bf16.msra.mxu0 %v2361
          %2464 = vmatprep.subr.bf16.mxu0 0
          %2465 = vmatpush2.bf16.msra.mxu0 %v2360
          %2466 = vmatprep.subr.bf16.mxu0 0
          %2467 = vmatpush2.bf16.msra.mxu0 %v2359
          %2468 = vmatprep.subr.bf16.mxu0 0
          %2469 = vmatpush2.bf16.msra.mxu0 %v2358
          %2470 = vmatprep.mubr.bf16.mxu0 %v2141
          %2471 = vmatmul.mubr.bf16.gmra.mxu0 %v2140
          %v2472 = vpop.f32.mrf.mxu0
          %v2473 = vadd.f32 %v2433, %v2472
          %v2474 = vpop.f32.mrf.mxu0
          %v2475 = vpop.f32.mrf.mxu0
          %v2476 = vpop.f32.mrf.mxu0
          %2477 = vdwg.mxu0
          %v2478 = vrot.slane %v2473, 4
          %v2479 = vadd.f32 %v2473, %v2478
          %v2480 = vrot.slane %v2479, 2
          %v2481 = vadd.f32 %v2479, %v2480
          %v2482 = vrot.slane %v2481, 1
          %v2483 = vadd.f32 %v2481, %v2482
          %v2484 = vmul.f32 %v2483, %v879
          %v2485 = vmul.f32 %v2473, %v2473
          %v2486 = vrot.slane %v2485, 4
          %v2487 = vadd.f32 %v2485, %v2486
          %v2488 = vrot.slane %v2487, 2
          %v2489 = vadd.f32 %v2487, %v2488
          %v2490 = vrot.slane %v2489, 1
          %v2491 = vadd.f32 %v2489, %v2490
          %v2492 = vmul.f32 %v2491, %v879
          %v2493 = vmul.f32 %v2484, %v2484
          %v2494 = vsub.f32 %v2492, %v2493
          %v2495 = vmax.f32 %v2494, 0.0
          %v2496 = vsub.f32 %v2473, %v2484
          %v2497 = vadd.f32 %v2495, 1e-05
          %v2498 = vrsqrt.pop %v2497
          %v2499 = vmul.f32 %v2496, %v2498
          %v2500 = vld [vmem:[%s5] sm:$0xf]
          %v2501 = vld [vmem:[#allocation12] sm:$0xff]
          %v2502 = vld [vmem:[#allocation12 + $0x8] sm:$0xff]
          %v2503 = vld [vmem:[#allocation9] sm:$0xff]
          %v2504 = vld [vmem:[#allocation9 + $0x8] sm:$0xff]
          %v2505 = vld [vmem:[#allocation9 + $0x10] sm:$0xff]
          %v2506 = vld [vmem:[#allocation9 + $0x18] sm:$0xff]
          %v2507 = vld [vmem:[#allocation9 + $0x20] sm:$0xff]
          %v2508 = vld [vmem:[#allocation9 + $0x28] sm:$0xff]
          %v2509 = vld [vmem:[#allocation9 + $0x30] sm:$0xff]
          %v2510 = vld [vmem:[#allocation9 + $0x38] sm:$0xff]
          %v2511 = vld [vmem:[#allocation9 + $0x40] sm:$0xff]
          %v2512 = vld [vmem:[#allocation9 + $0x48] sm:$0xff]
          %v2513 = vld [vmem:[#allocation9 + $0x50] sm:$0xff]
          %v2514 = vld [vmem:[#allocation9 + $0x58] sm:$0xff]
          %v2515 = vld [vmem:[#allocation9 + $0x60] sm:$0xff]
          %v2516 = vld [vmem:[#allocation9 + $0x68] sm:$0xff]
          %v2517 = vld [vmem:[#allocation9 + $0x70] sm:$0xff]
          %v2518 = vld [vmem:[#allocation9 + $0x78] sm:$0xff]
          %v2519 = vld [vmem:[#allocation9 + $0x80] sm:$0xff]
          %v2520 = vld [vmem:[#allocation9 + $0x88] sm:$0xff]
          %v2521 = vld [vmem:[#allocation9 + $0x90] sm:$0xff]
          %v2522 = vld [vmem:[#allocation9 + $0x98] sm:$0xff]
          %v2523 = vld [vmem:[#allocation9 + $0xa0] sm:$0xff]
          %v2524 = vld [vmem:[#allocation9 + $0xa8] sm:$0xff]
          %v2525 = vld [vmem:[#allocation9 + $0xb0] sm:$0xff]
          %v2526 = vld [vmem:[#allocation9 + $0xb8] sm:$0xff]
          %v2551 = vunpack.c.l.b16 %v2503
          %v2552 = vunpack.c.h.b16 %v2503
          %v2553 = vunpack.c.l.b16 %v2504
          %v2554 = vunpack.c.h.b16 %v2504
          %v2555 = vunpack.c.l.b16 %v2505
          %v2556 = vunpack.c.h.b16 %v2505
          %v2557 = vunpack.c.l.b16 %v2506
          %v2558 = vunpack.c.h.b16 %v2506
          %v2559 = vunpack.c.l.b16 %v2507
          %v2560 = vunpack.c.h.b16 %v2507
          %v2561 = vunpack.c.l.b16 %v2508
          %v2562 = vunpack.c.h.b16 %v2508
          %v2563 = vunpack.c.l.b16 %v2509
          %v2564 = vunpack.c.h.b16 %v2509
          %v2565 = vunpack.c.l.b16 %v2510
          %v2566 = vunpack.c.h.b16 %v2510
          %v2567 = vunpack.c.l.b16 %v2511
          %v2568 = vunpack.c.h.b16 %v2511
          %v2569 = vunpack.c.l.b16 %v2512
          %v2570 = vunpack.c.h.b16 %v2512
          %v2571 = vunpack.c.l.b16 %v2513
          %v2572 = vunpack.c.h.b16 %v2513
          %v2573 = vunpack.c.l.b16 %v2514
          %v2574 = vunpack.c.h.b16 %v2514
          %v2575 = vunpack.c.l.b16 %v2515
          %v2576 = vunpack.c.h.b16 %v2515
          %v2577 = vunpack.c.l.b16 %v2516
          %v2578 = vunpack.c.h.b16 %v2516
          %v2579 = vunpack.c.l.b16 %v2517
          %v2580 = vunpack.c.h.b16 %v2517
          %v2581 = vunpack.c.l.b16 %v2518
          %v2582 = vunpack.c.h.b16 %v2518
          %v2583 = vunpack.c.l.b16 %v2519
          %v2584 = vunpack.c.h.b16 %v2519
          %v2585 = vunpack.c.l.b16 %v2520
          %v2586 = vunpack.c.h.b16 %v2520
          %v2587 = vunpack.c.l.b16 %v2521
          %v2588 = vunpack.c.h.b16 %v2521
          %v2589 = vunpack.c.l.b16 %v2522
          %v2590 = vunpack.c.h.b16 %v2522
          %v2591 = vunpack.c.l.b16 %v2523
          %v2592 = vunpack.c.h.b16 %v2523
          %v2593 = vunpack.c.l.b16 %v2524
          %v2594 = vunpack.c.h.b16 %v2524
          %v2595 = vunpack.c.l.b16 %v2525
          %v2596 = vunpack.c.h.b16 %v2525
          %v2597 = vunpack.c.l.b16 %v2526
          %v2598 = vunpack.c.h.b16 %v2526
          %v2599 = vpack.c.b16 %v2555, %v2551
          %v2600 = vpack.c.b16 %v2556, %v2552
          %v2601 = vpack.c.b16 %v2557, %v2553
          %v2602 = vpack.c.b16 %v2558, %v2554
          %v2603 = vpack.c.b16 %v2563, %v2559
          %v2604 = vpack.c.b16 %v2564, %v2560
          %v2605 = vpack.c.b16 %v2565, %v2561
          %v2606 = vpack.c.b16 %v2566, %v2562
          %v2607 = vpack.c.b16 %v2571, %v2567
          %v2608 = vpack.c.b16 %v2572, %v2568
          %v2609 = vpack.c.b16 %v2573, %v2569
          %v2610 = vpack.c.b16 %v2574, %v2570
          %v2611 = vpack.c.b16 %v2579, %v2575
          %v2612 = vpack.c.b16 %v2580, %v2576
          %v2613 = vpack.c.b16 %v2581, %v2577
          %v2614 = vpack.c.b16 %v2582, %v2578
          %v2615 = vpack.c.b16 %v2587, %v2583
          %v2616 = vpack.c.b16 %v2588, %v2584
          %v2617 = vpack.c.b16 %v2589, %v2585
          %v2618 = vpack.c.b16 %v2590, %v2586
          %v2619 = vpack.c.b16 %v2595, %v2591
          %v2620 = vpack.c.b16 %v2596, %v2592
          %v2621 = vpack.c.b16 %v2597, %v2593
          %v2622 = vpack.c.b16 %v2598, %v2594
          %vm2647 = vcmask 785408
          %v2649 = vsel %vm2647, %v2500, 0
          %2651 = vmatprep.subr.bf16.mxu0 0
          %2652 = vmatpush1.bf16.msra.mxu0 0
          %2653 = vmatprep.subr.bf16.mxu0 0
          %2654 = vmatpush1.bf16.msra.mxu0 0
          %2655 = vmatprep.subr.bf16.mxu0 %v2620
          %2656 = vmatpush1.bf16.msra.mxu0 %v2619
          %2657 = vmatprep.subr.bf16.mxu0 %v2616
          %2658 = vmatpush1.bf16.msra.mxu0 %v2615
          %2659 = vmatprep.subr.bf16.mxu0 %v2612
          %2660 = vmatpush1.bf16.msra.mxu0 %v2611
          %2661 = vmatprep.subr.bf16.mxu0 %v2608
          %2662 = vmatpush1.bf16.msra.mxu0 %v2607
          %2663 = vmatprep.subr.bf16.mxu0 %v2604
          %2664 = vmatpush1.bf16.msra.mxu0 %v2603
          %2665 = vmatprep.subr.bf16.mxu0 %v2600
          %2666 = vmatpush1.bf16.msra.mxu0 %v2599
          %2667 = vmatprep.subr.bf16.mxu0 0
          %2668 = vmatpush2.bf16.msra.mxu0 0
          %2669 = vmatprep.subr.bf16.mxu0 0
          %2670 = vmatpush2.bf16.msra.mxu0 0
          %2671 = vmatprep.subr.bf16.mxu0 0
          %2672 = vmatpush2.bf16.msra.mxu0 0
          %2673 = vmatprep.subr.bf16.mxu0 0
          %2674 = vmatpush2.bf16.msra.mxu0 0
          %2675 = vmatprep.subr.bf16.mxu0 0
          %2676 = vmatpush2.bf16.msra.mxu0 0
          %2677 = vmatprep.subr.bf16.mxu0 0
          %2678 = vmatpush2.bf16.msra.mxu0 0
          %2679 = vmatprep.subr.bf16.mxu0 0
          %2680 = vmatpush2.bf16.msra.mxu0 0
          %2681 = vmatprep.subr.bf16.mxu0 0
          %2682 = vmatpush2.bf16.msra.mxu0 0
          %2683 = vmatprep.mubr.bf16.mxu0 0
          %2684 = vmatmul.mubr.bf16.gmra.mxu0 %v2649
          %v2685 = vpop.f32.mrf.mxu0
          %v2686 = vadd.f32 0.0, %v2685
          %v2687 = vpop.f32.mrf.mxu0
          %v2688 = vadd.f32 0.0, %v2687
          %v2689 = vpop.f32.mrf.mxu0
          %v2690 = vpop.f32.mrf.mxu0
          %2691 = vdwg.mxu0
          %2692 = vmatprep.subr.bf16.mxu0 0
          %2693 = vmatpush1.bf16.msra.mxu0 0
          %2694 = vmatprep.subr.bf16.mxu0 0
          %2695 = vmatpush1.bf16.msra.mxu0 0
          %2696 = vmatprep.subr.bf16.mxu0 %v2622
          %2697 = vmatpush1.bf16.msra.mxu0 %v2621
          %2698 = vmatprep.subr.bf16.mxu0 %v2618
          %2699 = vmatpush1.bf16.msra.mxu0 %v2617
          %2700 = vmatprep.subr.bf16.mxu0 %v2614
          %2701 = vmatpush1.bf16.msra.mxu0 %v2613
          %2702 = vmatprep.subr.bf16.mxu0 %v2610
          %2703 = vmatpush1.bf16.msra.mxu0 %v2609
          %2704 = vmatprep.subr.bf16.mxu0 %v2606
          %2705 = vmatpush1.bf16.msra.mxu0 %v2605
          %2706 = vmatprep.subr.bf16.mxu0 %v2602
          %2707 = vmatpush1.bf16.msra.mxu0 %v2601
          %2708 = vmatprep.subr.bf16.mxu0 0
          %2709 = vmatpush2.bf16.msra.mxu0 0
          %2710 = vmatprep.subr.bf16.mxu0 0
          %2711 = vmatpush2.bf16.msra.mxu0 0
          %2712 = vmatprep.subr.bf16.mxu0 0
          %2713 = vmatpush2.bf16.msra.mxu0 0
          %2714 = vmatprep.subr.bf16.mxu0 0
          %2715 = vmatpush2.bf16.msra.mxu0 0
          %2716 = vmatprep.subr.bf16.mxu0 0
          %2717 = vmatpush2.bf16.msra.mxu0 0
          %2718 = vmatprep.subr.bf16.mxu0 0
          %2719 = vmatpush2.bf16.msra.mxu0 0
          %2720 = vmatprep.subr.bf16.mxu0 0
          %2721 = vmatpush2.bf16.msra.mxu0 0
          %2722 = vmatprep.subr.bf16.mxu0 0
          %2723 = vmatpush2.bf16.msra.mxu0 0
          %2724 = vmatprep.mubr.bf16.mxu0 0
          %2725 = vmatmul.mubr.bf16.gmra.mxu0 %v2649
          %v2726 = vpop.f32.mrf.mxu0
          %v2727 = vadd.f32 0.0, %v2726
          %v2728 = vpop.f32.mrf.mxu0
          %v2729 = vadd.f32 0.0, %v2728
          %v2730 = vpop.f32.mrf.mxu0
          %v2731 = vpop.f32.mrf.mxu0
          %2732 = vdwg.mxu0
          %v2733 = vrot.slane %v2686, 4
          %v2734 = vadd.f32 %v2686, %v2733
          %v2735 = vrot.slane %v2734, 2
          %v2736 = vadd.f32 %v2734, %v2735
          %v2737 = vrot.slane %v2736, 1
          %v2738 = vadd.f32 %v2736, %v2737
          %v2739 = vrot.slane %v2688, 4
          %v2740 = vadd.f32 %v2688, %v2739
          %v2741 = vrot.slane %v2740, 2
          %v2742 = vadd.f32 %v2740, %v2741
          %v2743 = vrot.slane %v2742, 1
          %v2744 = vadd.f32 %v2742, %v2743
          %v2745 = vrot.slane %v2727, 4
          %v2746 = vadd.f32 %v2727, %v2745
          %v2747 = vrot.slane %v2746, 2
          %v2748 = vadd.f32 %v2746, %v2747
          %v2749 = vrot.slane %v2748, 1
          %v2750 = vadd.f32 %v2748, %v2749
          %v2751 = vrot.slane %v2729, 4
          %v2752 = vadd.f32 %v2729, %v2751
          %v2753 = vrot.slane %v2752, 2
          %v2754 = vadd.f32 %v2752, %v2753
          %v2755 = vrot.slane %v2754, 1
          %v2756 = vadd.f32 %v2754, %v2755
          %v2757 = vmul.f32 %v2738, %v879
          %v2758 = vmul.f32 %v2744, %v879
          %v2759 = vmul.f32 %v2750, %v879
          %v2760 = vmul.f32 %v2756, %v879
          %v2761 = vmul.f32 %v2686, %v2686
          %v2762 = vmul.f32 %v2688, %v2688
          %v2763 = vmul.f32 %v2727, %v2727
          %v2764 = vmul.f32 %v2729, %v2729
          %v2765 = vrot.slane %v2761, 4
          %v2766 = vadd.f32 %v2761, %v2765
          %v2767 = vrot.slane %v2766, 2
          %v2768 = vadd.f32 %v2766, %v2767
          %v2769 = vrot.slane %v2768, 1
          %v2770 = vadd.f32 %v2768, %v2769
          %v2771 = vrot.slane %v2762, 4
          %v2772 = vadd.f32 %v2762, %v2771
          %v2773 = vrot.slane %v2772, 2
          %v2774 = vadd.f32 %v2772, %v2773
          %v2775 = vrot.slane %v2774, 1
          %v2776 = vadd.f32 %v2774, %v2775
          %v2777 = vrot.slane %v2763, 4
          %v2778 = vadd.f32 %v2763, %v2777
          %v2779 = vrot.slane %v2778, 2
          %v2780 = vadd.f32 %v2778, %v2779
          %v2781 = vrot.slane %v2780, 1
          %v2782 = vadd.f32 %v2780, %v2781
          %v2783 = vrot.slane %v2764, 4
          %v2784 = vadd.f32 %v2764, %v2783
          %v2785 = vrot.slane %v2784, 2
          %v2786 = vadd.f32 %v2784, %v2785
          %v2787 = vrot.slane %v2786, 1
          %v2788 = vadd.f32 %v2786, %v2787
          %v2789 = vmul.f32 %v2770, %v879
          %v2790 = vmul.f32 %v2776, %v879
          %v2791 = vmul.f32 %v2782, %v879
          %v2792 = vmul.f32 %v2788, %v879
          %v2793 = vmul.f32 %v2757, %v2757
          %v2794 = vmul.f32 %v2758, %v2758
          %v2795 = vmul.f32 %v2759, %v2759
          %v2796 = vmul.f32 %v2760, %v2760
          %v2797 = vsub.f32 %v2789, %v2793
          %v2798 = vsub.f32 %v2790, %v2794
          %v2799 = vsub.f32 %v2791, %v2795
          %v2800 = vsub.f32 %v2792, %v2796
          %v2801 = vmax.f32 %v2797, 0.0
          %v2802 = vmax.f32 %v2798, 0.0
          %v2803 = vmax.f32 %v2799, 0.0
          %v2804 = vmax.f32 %v2800, 0.0
          %v2805 = vsub.f32 %v2686, %v2757
          %v2806 = vsub.f32 %v2688, %v2758
          %v2807 = vsub.f32 %v2727, %v2759
          %v2808 = vsub.f32 %v2729, %v2760
          %v2809 = vadd.f32 %v2801, 1e-05
          %v2810 = vadd.f32 %v2802, 1e-05
          %v2811 = vadd.f32 %v2803, 1e-05
          %v2812 = vadd.f32 %v2804, 1e-05
          %v2813 = vrsqrt.pop %v2809
          %v2814 = vrsqrt.pop %v2810
          %v2815 = vrsqrt.pop %v2811
          %v2816 = vrsqrt.pop %v2812
          %v2817 = vmul.f32 %v2805, %v2813
          %v2818 = vmul.f32 %v2806, %v2814
          %v2819 = vmul.f32 %v2807, %v2815
          %v2820 = vmul.f32 %v2808, %v2816
          %v2823 = vlaneseq
          %v2824 = vshrl.u32 %v2823, 7
          %v2825 = vsub.s32 0, %v2824
          %v2826 = vrot.slane %v2501, %v2825
          %v2827 = vlaneseq
          %v2828 = vshrl.u32 %v2827, 7
          %v2829 = vsub.s32 4, %v2828
          %v2830 = vrot.slane %v2501, %v2829
          %v2831 = vlaneseq
          %v2832 = vshrl.u32 %v2831, 7
          %v2833 = vsub.s32 0, %v2832
          %v2834 = vrot.slane %v2502, %v2833
          %v2835 = vlaneseq
          %v2836 = vshrl.u32 %v2835, 7
          %v2837 = vsub.s32 4, %v2836
          %v2838 = vrot.slane %v2502, %v2837
          %v2843 = vlaneseq
          %v2844 = vshrl.u32 %v2843, 7
          %v2845 = vsub.s32 0, %v2844
          %v2846 = vrot.slane %v2826, %v2845
          %v2847 = vlaneseq
          %v2848 = vshrl.u32 %v2847, 7
          %v2849 = vsub.s32 0, %v2848
          %v2850 = vrot.slane %v2830, %v2849
          %v2851 = vlaneseq
          %v2852 = vshrl.u32 %v2851, 7
          %v2853 = vsub.s32 0, %v2852
          %v2854 = vrot.slane %v2834, %v2853
          %v2855 = vlaneseq
          %v2856 = vshrl.u32 %v2855, 7
          %v2857 = vsub.s32 0, %v2856
          %v2858 = vrot.slane %v2838, %v2857
          %v2859 = vmul.f32 %v2817, %v2846
          %v2860 = vmul.f32 %v2818, %v2850
          %v2861 = vmul.f32 %v2819, %v2854
          %v2862 = vmul.f32 %v2820, %v2858
          %v2863 = vlaneseq
          %v2864 = vshrl.u32 %v2863, 7
          %v2865 = vsub.s32 1, %v2864
          %v2866 = vrot.slane %v2501, %v2865
          %v2867 = vlaneseq
          %v2868 = vshrl.u32 %v2867, 7
          %v2869 = vsub.s32 5, %v2868
          %v2870 = vrot.slane %v2501, %v2869
          %v2871 = vlaneseq
          %v2872 = vshrl.u32 %v2871, 7
          %v2873 = vsub.s32 1, %v2872
          %v2874 = vrot.slane %v2502, %v2873
          %v2875 = vlaneseq
          %v2876 = vshrl.u32 %v2875, 7
          %v2877 = vsub.s32 5, %v2876
          %v2878 = vrot.slane %v2502, %v2877
          %v2883 = vlaneseq
          %v2884 = vshrl.u32 %v2883, 7
          %v2885 = vsub.s32 1, %v2884
          %v2886 = vrot.slane %v2866, %v2885
          %v2887 = vlaneseq
          %v2888 = vshrl.u32 %v2887, 7
          %v2889 = vsub.s32 1, %v2888
          %v2890 = vrot.slane %v2870, %v2889
          %v2891 = vlaneseq
          %v2892 = vshrl.u32 %v2891, 7
          %v2893 = vsub.s32 1, %v2892
          %v2894 = vrot.slane %v2874, %v2893
          %v2895 = vlaneseq
          %v2896 = vshrl.u32 %v2895, 7
          %v2897 = vsub.s32 1, %v2896
          %v2898 = vrot.slane %v2878, %v2897
          %v2899 = vadd.f32 %v2859, %v2886
          %v2900 = vadd.f32 %v2860, %v2890
          %v2901 = vadd.f32 %v2861, %v2894
          %v2902 = vadd.f32 %v2862, %v2898
          %v2903 = vmax.f32 %v2899, 0.0
          %v2904 = vmax.f32 %v2900, 0.0
          %v2905 = vmax.f32 %v2901, 0.0
          %v2906 = vmax.f32 %v2902, 0.0
          %v2907 = vpack.c.bf16 %v2903, %v2903
          %v2908 = vpack.c.bf16 %v2904, %v2904
          %v2909 = vpack.c.bf16 %v2905, %v2905
          %v2910 = vpack.c.bf16 %v2906, %v2906
          %v2911 = vld [vmem:[%s11] sm:$0xff]
          %v2912 = vld [vmem:[%s11 + $0x8] sm:$0xff]
          %v2913 = vld [vmem:[%s11 + $0x10] sm:$0xff]
          %v2914 = vld [vmem:[%s11 + $0x18] sm:$0xff]
          %v2915 = vld [vmem:[%s11 + $0x20] sm:$0xff]
          %v2916 = vld [vmem:[%s11 + $0x28] sm:$0xff]
          %v2917 = vld [vmem:[%s11 + $0x30] sm:$0xff]
          %v2918 = vld [vmem:[%s11 + $0x38] sm:$0xff]
          %v2919 = vld [vmem:[%s11 + $0x40] sm:$0xff]
          %v2920 = vld [vmem:[%s11 + $0x48] sm:$0xff]
          %v2921 = vld [vmem:[%s11 + $0x50] sm:$0xff]
          %v2922 = vld [vmem:[%s11 + $0x58] sm:$0xff]
          %v2923 = vld [vmem:[%s11 + $0x60] sm:$0xff]
          %v2924 = vld [vmem:[%s11 + $0x68] sm:$0xff]
          %v2925 = vld [vmem:[%s11 + $0x70] sm:$0xff]
          %v2926 = vld [vmem:[%s11 + $0x78] sm:$0xff]
          %v2927 = vld [vmem:[%s11 + $0x80] sm:$0xff]
          %v2928 = vld [vmem:[%s11 + $0x88] sm:$0xff]
          %v2929 = vld [vmem:[%s11 + $0x90] sm:$0xff]
          %v2930 = vld [vmem:[%s11 + $0x98] sm:$0xff]
          %v2931 = vld [vmem:[%s11 + $0xa0] sm:$0xff]
          %v2932 = vld [vmem:[%s11 + $0xa8] sm:$0xff]
          %v2933 = vld [vmem:[%s11 + $0xb0] sm:$0xff]
          %v2934 = vld [vmem:[%s11 + $0xb8] sm:$0xff]
          %v2935 = vld [vmem:[%s11 + $0xc0] sm:$0xff]
          %v2936 = vld [vmem:[%s11 + $0xc8] sm:$0xff]
          %v2937 = vld [vmem:[%s11 + $0xd0] sm:$0xff]
          %v2938 = vld [vmem:[%s11 + $0xd8] sm:$0xff]
          %v2939 = vld [vmem:[%s11 + $0xe0] sm:$0xff]
          %v2940 = vld [vmem:[%s11 + $0xe8] sm:$0xff]
          %v2941 = vld [vmem:[%s11 + $0xf0] sm:$0xff]
          %v2942 = vld [vmem:[%s11 + $0xf8] sm:$0xff]
          %v2943 = vld [vmem:[%s11 + $0x100] sm:$0xff]
          %v2944 = vld [vmem:[%s11 + $0x108] sm:$0xff]
          %v2945 = vld [vmem:[%s11 + $0x110] sm:$0xff]
          %v2946 = vld [vmem:[%s11 + $0x118] sm:$0xff]
          %v2947 = vld [vmem:[%s11 + $0x120] sm:$0xff]
          %v2948 = vld [vmem:[%s11 + $0x128] sm:$0xff]
          %v2949 = vld [vmem:[%s11 + $0x130] sm:$0xff]
          %v2950 = vld [vmem:[%s11 + $0x138] sm:$0xff]
          %v2951 = vld [vmem:[%s11 + $0x140] sm:$0xff]
          %v2952 = vld [vmem:[%s11 + $0x148] sm:$0xff]
          %v2953 = vld [vmem:[%s11 + $0x150] sm:$0xff]
          %v2954 = vld [vmem:[%s11 + $0x158] sm:$0xff]
          %v2955 = vld [vmem:[%s11 + $0x160] sm:$0xff]
          %v2956 = vld [vmem:[%s11 + $0x168] sm:$0xff]
          %v2957 = vld [vmem:[%s11 + $0x170] sm:$0xff]
          %v2958 = vld [vmem:[%s11 + $0x178] sm:$0xff]
          %v2959 = vld [vmem:[%s11 + $0x180] sm:$0xff]
          %v2960 = vld [vmem:[%s11 + $0x188] sm:$0xff]
          %v2961 = vld [vmem:[%s11 + $0x190] sm:$0xff]
          %v2962 = vld [vmem:[%s11 + $0x198] sm:$0xff]
          %v2963 = vld [vmem:[%s11 + $0x1a0] sm:$0xff]
          %v2964 = vld [vmem:[%s11 + $0x1a8] sm:$0xff]
          %v2965 = vld [vmem:[%s11 + $0x1b0] sm:$0xff]
          %v2966 = vld [vmem:[%s11 + $0x1b8] sm:$0xff]
          %v2967 = vld [vmem:[%s11 + $0x1c0] sm:$0xff]
          %v2968 = vld [vmem:[%s11 + $0x1c8] sm:$0xff]
          %v2969 = vld [vmem:[%s11 + $0x1d0] sm:$0xff]
          %v2970 = vld [vmem:[%s11 + $0x1d8] sm:$0xff]
          %v2971 = vld [vmem:[%s11 + $0x1e0] sm:$0xff]
          %v2972 = vld [vmem:[%s11 + $0x1e8] sm:$0xff]
          %v2973 = vld [vmem:[%s11 + $0x1f0] sm:$0xff]
          %v2974 = vld [vmem:[%s11 + $0x1f8] sm:$0xff]
          %v2975 = vld [vmem:[%s11 + $0x200] sm:$0xff]
          %v2976 = vld [vmem:[%s11 + $0x208] sm:$0xff]
          %v2977 = vld [vmem:[%s11 + $0x210] sm:$0xff]
          %v2978 = vld [vmem:[%s11 + $0x218] sm:$0xff]
          %v2979 = vld [vmem:[%s11 + $0x220] sm:$0xff]
          %v2980 = vld [vmem:[%s11 + $0x228] sm:$0xff]
          %v2981 = vld [vmem:[%s11 + $0x230] sm:$0xff]
          %v2982 = vld [vmem:[%s11 + $0x238] sm:$0xff]
          %v2983 = vld [vmem:[%s11 + $0x240] sm:$0xff]
          %v2984 = vld [vmem:[%s11 + $0x248] sm:$0xff]
          %v2985 = vld [vmem:[%s11 + $0x250] sm:$0xff]
          %v2986 = vld [vmem:[%s11 + $0x258] sm:$0xff]
          %v2987 = vld [vmem:[%s11 + $0x260] sm:$0xff]
          %v2988 = vld [vmem:[%s11 + $0x268] sm:$0xff]
          %v2989 = vld [vmem:[%s11 + $0x270] sm:$0xff]
          %v2990 = vld [vmem:[%s11 + $0x278] sm:$0xff]
          %v2991 = vld [vmem:[%s11 + $0x280] sm:$0xff]
          %v2992 = vld [vmem:[%s11 + $0x288] sm:$0xff]
          %v2993 = vld [vmem:[%s11 + $0x290] sm:$0xff]
          %v2994 = vld [vmem:[%s11 + $0x298] sm:$0xff]
          %v2995 = vld [vmem:[%s11 + $0x2a0] sm:$0xff]
          %v2996 = vld [vmem:[%s11 + $0x2a8] sm:$0xff]
          %v2997 = vld [vmem:[%s11 + $0x2b0] sm:$0xff]
          %v2998 = vld [vmem:[%s11 + $0x2b8] sm:$0xff]
          %v2999 = vld [vmem:[%s11 + $0x2c0] sm:$0xff]
          %v3000 = vld [vmem:[%s11 + $0x2c8] sm:$0xff]
          %v3001 = vld [vmem:[%s11 + $0x2d0] sm:$0xff]
          %v3002 = vld [vmem:[%s11 + $0x2d8] sm:$0xff]
          %v3003 = vld [vmem:[%s11 + $0x2e0] sm:$0xff]
          %v3004 = vld [vmem:[%s11 + $0x2e8] sm:$0xff]
          %v3005 = vld [vmem:[%s11 + $0x2f0] sm:$0xff]
          %v3006 = vld [vmem:[%s11 + $0x2f8] sm:$0xff]
          %v3007 = vld [vmem:[%s11 + $0x300] sm:$0xff]
          %v3008 = vld [vmem:[%s11 + $0x308] sm:$0xff]
          %v3009 = vld [vmem:[%s11 + $0x310] sm:$0xff]
          %v3010 = vld [vmem:[%s11 + $0x318] sm:$0xff]
          %v3011 = vld [vmem:[%s11 + $0x320] sm:$0xff]
          %v3012 = vld [vmem:[%s11 + $0x328] sm:$0xff]
          %v3013 = vld [vmem:[%s11 + $0x330] sm:$0xff]
          %v3014 = vld [vmem:[%s11 + $0x338] sm:$0xff]
          %v3015 = vld [vmem:[%s11 + $0x340] sm:$0xff]
          %v3016 = vld [vmem:[%s11 + $0x348] sm:$0xff]
          %v3017 = vld [vmem:[%s11 + $0x350] sm:$0xff]
          %v3018 = vld [vmem:[%s11 + $0x358] sm:$0xff]
          %v3019 = vld [vmem:[%s11 + $0x360] sm:$0xff]
          %v3020 = vld [vmem:[%s11 + $0x368] sm:$0xff]
          %v3021 = vld [vmem:[%s11 + $0x370] sm:$0xff]
          %v3022 = vld [vmem:[%s11 + $0x378] sm:$0xff]
          %v3023 = vld [vmem:[%s11 + $0x380] sm:$0xff]
          %v3024 = vld [vmem:[%s11 + $0x388] sm:$0xff]
          %v3025 = vld [vmem:[%s11 + $0x390] sm:$0xff]
          %v3026 = vld [vmem:[%s11 + $0x398] sm:$0xff]
          %v3027 = vld [vmem:[%s11 + $0x3a0] sm:$0xff]
          %v3028 = vld [vmem:[%s11 + $0x3a8] sm:$0xff]
          %v3029 = vld [vmem:[%s11 + $0x3b0] sm:$0xff]
          %v3030 = vld [vmem:[%s11 + $0x3b8] sm:$0xff]
          %v3031 = vld [vmem:[%s11 + $0x3c0] sm:$0xff]
          %v3032 = vld [vmem:[%s11 + $0x3c8] sm:$0xff]
          %v3033 = vld [vmem:[%s11 + $0x3d0] sm:$0xff]
          %v3034 = vld [vmem:[%s11 + $0x3d8] sm:$0xff]
          %v3035 = vld [vmem:[%s11 + $0x3e0] sm:$0xff]
          %v3036 = vld [vmem:[%s11 + $0x3e8] sm:$0xff]
          %v3037 = vld [vmem:[%s11 + $0x3f0] sm:$0xff]
          %v3038 = vld [vmem:[%s11 + $0x3f8] sm:$0xff]
          %v3167 = vunpack.c.l.b16 %v2911
          %v3168 = vunpack.c.h.b16 %v2911
          %v3169 = vunpack.c.l.b16 %v2912
          %v3170 = vunpack.c.h.b16 %v2912
          %v3171 = vunpack.c.l.b16 %v2913
          %v3172 = vunpack.c.h.b16 %v2913
          %v3173 = vunpack.c.l.b16 %v2914
          %v3174 = vunpack.c.h.b16 %v2914
          %v3175 = vunpack.c.l.b16 %v2915
          %v3176 = vunpack.c.h.b16 %v2915
          %v3177 = vunpack.c.l.b16 %v2916
          %v3178 = vunpack.c.h.b16 %v2916
          %v3179 = vunpack.c.l.b16 %v2917
          %v3180 = vunpack.c.h.b16 %v2917
          %v3181 = vunpack.c.l.b16 %v2918
          %v3182 = vunpack.c.h.b16 %v2918
          %v3183 = vunpack.c.l.b16 %v2919
          %v3184 = vunpack.c.h.b16 %v2919
          %v3185 = vunpack.c.l.b16 %v2920
          %v3186 = vunpack.c.h.b16 %v2920
          %v3187 = vunpack.c.l.b16 %v2921
          %v3188 = vunpack.c.h.b16 %v2921
          %v3189 = vunpack.c.l.b16 %v2922
          %v3190 = vunpack.c.h.b16 %v2922
          %v3191 = vunpack.c.l.b16 %v2923
          %v3192 = vunpack.c.h.b16 %v2923
          %v3193 = vunpack.c.l.b16 %v2924
          %v3194 = vunpack.c.h.b16 %v2924
          %v3195 = vunpack.c.l.b16 %v2925
          %v3196 = vunpack.c.h.b16 %v2925
          %v3197 = vunpack.c.l.b16 %v2926
          %v3198 = vunpack.c.h.b16 %v2926
          %v3199 = vunpack.c.l.b16 %v2927
          %v3200 = vunpack.c.h.b16 %v2927
          %v3201 = vunpack.c.l.b16 %v2928
          %v3202 = vunpack.c.h.b16 %v2928
          %v3203 = vunpack.c.l.b16 %v2929
          %v3204 = vunpack.c.h.b16 %v2929
          %v3205 = vunpack.c.l.b16 %v2930
          %v3206 = vunpack.c.h.b16 %v2930
          %v3207 = vunpack.c.l.b16 %v2931
          %v3208 = vunpack.c.h.b16 %v2931
          %v3209 = vunpack.c.l.b16 %v2932
          %v3210 = vunpack.c.h.b16 %v2932
          %v3211 = vunpack.c.l.b16 %v2933
          %v3212 = vunpack.c.h.b16 %v2933
          %v3213 = vunpack.c.l.b16 %v2934
          %v3214 = vunpack.c.h.b16 %v2934
          %v3215 = vunpack.c.l.b16 %v2935
          %v3216 = vunpack.c.h.b16 %v2935
          %v3217 = vunpack.c.l.b16 %v2936
          %v3218 = vunpack.c.h.b16 %v2936
          %v3219 = vunpack.c.l.b16 %v2937
          %v3220 = vunpack.c.h.b16 %v2937
          %v3221 = vunpack.c.l.b16 %v2938
          %v3222 = vunpack.c.h.b16 %v2938
          %v3223 = vunpack.c.l.b16 %v2939
          %v3224 = vunpack.c.h.b16 %v2939
          %v3225 = vunpack.c.l.b16 %v2940
          %v3226 = vunpack.c.h.b16 %v2940
          %v3227 = vunpack.c.l.b16 %v2941
          %v3228 = vunpack.c.h.b16 %v2941
          %v3229 = vunpack.c.l.b16 %v2942
          %v3230 = vunpack.c.h.b16 %v2942
          %v3231 = vunpack.c.l.b16 %v2943
          %v3232 = vunpack.c.h.b16 %v2943
          %v3233 = vunpack.c.l.b16 %v2944
          %v3234 = vunpack.c.h.b16 %v2944
          %v3235 = vunpack.c.l.b16 %v2945
          %v3236 = vunpack.c.h.b16 %v2945
          %v3237 = vunpack.c.l.b16 %v2946
          %v3238 = vunpack.c.h.b16 %v2946
          %v3239 = vunpack.c.l.b16 %v2947
          %v3240 = vunpack.c.h.b16 %v2947
          %v3241 = vunpack.c.l.b16 %v2948
          %v3242 = vunpack.c.h.b16 %v2948
          %v3243 = vunpack.c.l.b16 %v2949
          %v3244 = vunpack.c.h.b16 %v2949
          %v3245 = vunpack.c.l.b16 %v2950
          %v3246 = vunpack.c.h.b16 %v2950
          %v3247 = vunpack.c.l.b16 %v2951
          %v3248 = vunpack.c.h.b16 %v2951
          %v3249 = vunpack.c.l.b16 %v2952
          %v3250 = vunpack.c.h.b16 %v2952
          %v3251 = vunpack.c.l.b16 %v2953
          %v3252 = vunpack.c.h.b16 %v2953
          %v3253 = vunpack.c.l.b16 %v2954
          %v3254 = vunpack.c.h.b16 %v2954
          %v3255 = vunpack.c.l.b16 %v2955
          %v3256 = vunpack.c.h.b16 %v2955
          %v3257 = vunpack.c.l.b16 %v2956
          %v3258 = vunpack.c.h.b16 %v2956
          %v3259 = vunpack.c.l.b16 %v2957
          %v3260 = vunpack.c.h.b16 %v2957
          %v3261 = vunpack.c.l.b16 %v2958
          %v3262 = vunpack.c.h.b16 %v2958
          %v3263 = vunpack.c.l.b16 %v2959
          %v3264 = vunpack.c.h.b16 %v2959
          %v3265 = vunpack.c.l.b16 %v2960
          %v3266 = vunpack.c.h.b16 %v2960
          %v3267 = vunpack.c.l.b16 %v2961
          %v3268 = vunpack.c.h.b16 %v2961
          %v3269 = vunpack.c.l.b16 %v2962
          %v3270 = vunpack.c.h.b16 %v2962
          %v3271 = vunpack.c.l.b16 %v2963
          %v3272 = vunpack.c.h.b16 %v2963
          %v3273 = vunpack.c.l.b16 %v2964
          %v3274 = vunpack.c.h.b16 %v2964
          %v3275 = vunpack.c.l.b16 %v2965
          %v3276 = vunpack.c.h.b16 %v2965
          %v3277 = vunpack.c.l.b16 %v2966
          %v3278 = vunpack.c.h.b16 %v2966
          %v3279 = vunpack.c.l.b16 %v2967
          %v3280 = vunpack.c.h.b16 %v2967
          %v3281 = vunpack.c.l.b16 %v2968
          %v3282 = vunpack.c.h.b16 %v2968
          %v3283 = vunpack.c.l.b16 %v2969
          %v3284 = vunpack.c.h.b16 %v2969
          %v3285 = vunpack.c.l.b16 %v2970
          %v3286 = vunpack.c.h.b16 %v2970
          %v3287 = vunpack.c.l.b16 %v2971
          %v3288 = vunpack.c.h.b16 %v2971
          %v3289 = vunpack.c.l.b16 %v2972
          %v3290 = vunpack.c.h.b16 %v2972
          %v3291 = vunpack.c.l.b16 %v2973
          %v3292 = vunpack.c.h.b16 %v2973
          %v3293 = vunpack.c.l.b16 %v2974
          %v3294 = vunpack.c.h.b16 %v2974
          %v3295 = vunpack.c.l.b16 %v2975
          %v3296 = vunpack.c.h.b16 %v2975
          %v3297 = vunpack.c.l.b16 %v2976
          %v3298 = vunpack.c.h.b16 %v2976
          %v3299 = vunpack.c.l.b16 %v2977
          %v3300 = vunpack.c.h.b16 %v2977
          %v3301 = vunpack.c.l.b16 %v2978
          %v3302 = vunpack.c.h.b16 %v2978
          %v3303 = vunpack.c.l.b16 %v2979
          %v3304 = vunpack.c.h.b16 %v2979
          %v3305 = vunpack.c.l.b16 %v2980
          %v3306 = vunpack.c.h.b16 %v2980
          %v3307 = vunpack.c.l.b16 %v2981
          %v3308 = vunpack.c.h.b16 %v2981
          %v3309 = vunpack.c.l.b16 %v2982
          %v3310 = vunpack.c.h.b16 %v2982
          %v3311 = vunpack.c.l.b16 %v2983
          %v3312 = vunpack.c.h.b16 %v2983
          %v3313 = vunpack.c.l.b16 %v2984
          %v3314 = vunpack.c.h.b16 %v2984
          %v3315 = vunpack.c.l.b16 %v2985
          %v3316 = vunpack.c.h.b16 %v2985
          %v3317 = vunpack.c.l.b16 %v2986
          %v3318 = vunpack.c.h.b16 %v2986
          %v3319 = vunpack.c.l.b16 %v2987
          %v3320 = vunpack.c.h.b16 %v2987
          %v3321 = vunpack.c.l.b16 %v2988
          %v3322 = vunpack.c.h.b16 %v2988
          %v3323 = vunpack.c.l.b16 %v2989
          %v3324 = vunpack.c.h.b16 %v2989
          %v3325 = vunpack.c.l.b16 %v2990
          %v3326 = vunpack.c.h.b16 %v2990
          %v3327 = vunpack.c.l.b16 %v2991
          %v3328 = vunpack.c.h.b16 %v2991
          %v3329 = vunpack.c.l.b16 %v2992
          %v3330 = vunpack.c.h.b16 %v2992
          %v3331 = vunpack.c.l.b16 %v2993
          %v3332 = vunpack.c.h.b16 %v2993
          %v3333 = vunpack.c.l.b16 %v2994
          %v3334 = vunpack.c.h.b16 %v2994
          %v3335 = vunpack.c.l.b16 %v2995
          %v3336 = vunpack.c.h.b16 %v2995
          %v3337 = vunpack.c.l.b16 %v2996
          %v3338 = vunpack.c.h.b16 %v2996
          %v3339 = vunpack.c.l.b16 %v2997
          %v3340 = vunpack.c.h.b16 %v2997
          %v3341 = vunpack.c.l.b16 %v2998
          %v3342 = vunpack.c.h.b16 %v2998
          %v3343 = vunpack.c.l.b16 %v2999
          %v3344 = vunpack.c.h.b16 %v2999
          %v3345 = vunpack.c.l.b16 %v3000
          %v3346 = vunpack.c.h.b16 %v3000
          %v3347 = vunpack.c.l.b16 %v3001
          %v3348 = vunpack.c.h.b16 %v3001
          %v3349 = vunpack.c.l.b16 %v3002
          %v3350 = vunpack.c.h.b16 %v3002
          %v3351 = vunpack.c.l.b16 %v3003
          %v3352 = vunpack.c.h.b16 %v3003
          %v3353 = vunpack.c.l.b16 %v3004
          %v3354 = vunpack.c.h.b16 %v3004
          %v3355 = vunpack.c.l.b16 %v3005
          %v3356 = vunpack.c.h.b16 %v3005
          %v3357 = vunpack.c.l.b16 %v3006
          %v3358 = vunpack.c.h.b16 %v3006
          %v3359 = vunpack.c.l.b16 %v3007
          %v3360 = vunpack.c.h.b16 %v3007
          %v3361 = vunpack.c.l.b16 %v3008
          %v3362 = vunpack.c.h.b16 %v3008
          %v3363 = vunpack.c.l.b16 %v3009
          %v3364 = vunpack.c.h.b16 %v3009
          %v3365 = vunpack.c.l.b16 %v3010
          %v3366 = vunpack.c.h.b16 %v3010
          %v3367 = vunpack.c.l.b16 %v3011
          %v3368 = vunpack.c.h.b16 %v3011
          %v3369 = vunpack.c.l.b16 %v3012
          %v3370 = vunpack.c.h.b16 %v3012
          %v3371 = vunpack.c.l.b16 %v3013
          %v3372 = vunpack.c.h.b16 %v3013
          %v3373 = vunpack.c.l.b16 %v3014
          %v3374 = vunpack.c.h.b16 %v3014
          %v3375 = vunpack.c.l.b16 %v3015
          %v3376 = vunpack.c.h.b16 %v3015
          %v3377 = vunpack.c.l.b16 %v3016
          %v3378 = vunpack.c.h.b16 %v3016
          %v3379 = vunpack.c.l.b16 %v3017
          %v3380 = vunpack.c.h.b16 %v3017
          %v3381 = vunpack.c.l.b16 %v3018
          %v3382 = vunpack.c.h.b16 %v3018
          %v3383 = vunpack.c.l.b16 %v3019
          %v3384 = vunpack.c.h.b16 %v3019
          %v3385 = vunpack.c.l.b16 %v3020
          %v3386 = vunpack.c.h.b16 %v3020
          %v3387 = vunpack.c.l.b16 %v3021
          %v3388 = vunpack.c.h.b16 %v3021
          %v3389 = vunpack.c.l.b16 %v3022
          %v3390 = vunpack.c.h.b16 %v3022
          %v3391 = vunpack.c.l.b16 %v3023
          %v3392 = vunpack.c.h.b16 %v3023
          %v3393 = vunpack.c.l.b16 %v3024
          %v3394 = vunpack.c.h.b16 %v3024
          %v3395 = vunpack.c.l.b16 %v3025
          %v3396 = vunpack.c.h.b16 %v3025
          %v3397 = vunpack.c.l.b16 %v3026
          %v3398 = vunpack.c.h.b16 %v3026
          %v3399 = vunpack.c.l.b16 %v3027
          %v3400 = vunpack.c.h.b16 %v3027
          %v3401 = vunpack.c.l.b16 %v3028
          %v3402 = vunpack.c.h.b16 %v3028
          %v3403 = vunpack.c.l.b16 %v3029
          %v3404 = vunpack.c.h.b16 %v3029
          %v3405 = vunpack.c.l.b16 %v3030
          %v3406 = vunpack.c.h.b16 %v3030
          %v3407 = vunpack.c.l.b16 %v3031
          %v3408 = vunpack.c.h.b16 %v3031
          %v3409 = vunpack.c.l.b16 %v3032
          %v3410 = vunpack.c.h.b16 %v3032
          %v3411 = vunpack.c.l.b16 %v3033
          %v3412 = vunpack.c.h.b16 %v3033
          %v3413 = vunpack.c.l.b16 %v3034
          %v3414 = vunpack.c.h.b16 %v3034
          %v3415 = vunpack.c.l.b16 %v3035
          %v3416 = vunpack.c.h.b16 %v3035
          %v3417 = vunpack.c.l.b16 %v3036
          %v3418 = vunpack.c.h.b16 %v3036
          %v3419 = vunpack.c.l.b16 %v3037
          %v3420 = vunpack.c.h.b16 %v3037
          %v3421 = vunpack.c.l.b16 %v3038
          %v3422 = vunpack.c.h.b16 %v3038
          %v3423 = vpack.c.b16 %v3171, %v3167
          %v3424 = vpack.c.b16 %v3172, %v3168
          %v3425 = vpack.c.b16 %v3173, %v3169
          %v3426 = vpack.c.b16 %v3174, %v3170
          %v3427 = vpack.c.b16 %v3179, %v3175
          %v3428 = vpack.c.b16 %v3180, %v3176
          %v3429 = vpack.c.b16 %v3181, %v3177
          %v3430 = vpack.c.b16 %v3182, %v3178
          %v3431 = vpack.c.b16 %v3187, %v3183
          %v3432 = vpack.c.b16 %v3188, %v3184
          %v3433 = vpack.c.b16 %v3189, %v3185
          %v3434 = vpack.c.b16 %v3190, %v3186
          %v3435 = vpack.c.b16 %v3195, %v3191
          %v3436 = vpack.c.b16 %v3196, %v3192
          %v3437 = vpack.c.b16 %v3197, %v3193
          %v3438 = vpack.c.b16 %v3198, %v3194
          %v3439 = vpack.c.b16 %v3203, %v3199
          %v3440 = vpack.c.b16 %v3204, %v3200
          %v3441 = vpack.c.b16 %v3205, %v3201
          %v3442 = vpack.c.b16 %v3206, %v3202
          %v3443 = vpack.c.b16 %v3211, %v3207
          %v3444 = vpack.c.b16 %v3212, %v3208
          %v3445 = vpack.c.b16 %v3213, %v3209
          %v3446 = vpack.c.b16 %v3214, %v3210
          %v3447 = vpack.c.b16 %v3219, %v3215
          %v3448 = vpack.c.b16 %v3220, %v3216
          %v3449 = vpack.c.b16 %v3221, %v3217
          %v3450 = vpack.c.b16 %v3222, %v3218
          %v3451 = vpack.c.b16 %v3227, %v3223
          %v3452 = vpack.c.b16 %v3228, %v3224
          %v3453 = vpack.c.b16 %v3229, %v3225
          %v3454 = vpack.c.b16 %v3230, %v3226
          %v3455 = vpack.c.b16 %v3235, %v3231
          %v3456 = vpack.c.b16 %v3236, %v3232
          %v3457 = vpack.c.b16 %v3237, %v3233
          %v3458 = vpack.c.b16 %v3238, %v3234
          %v3459 = vpack.c.b16 %v3243, %v3239
          %v3460 = vpack.c.b16 %v3244, %v3240
          %v3461 = vpack.c.b16 %v3245, %v3241
          %v3462 = vpack.c.b16 %v3246, %v3242
          %v3463 = vpack.c.b16 %v3251, %v3247
          %v3464 = vpack.c.b16 %v3252, %v3248
          %v3465 = vpack.c.b16 %v3253, %v3249
          %v3466 = vpack.c.b16 %v3254, %v3250
          %v3467 = vpack.c.b16 %v3259, %v3255
          %v3468 = vpack.c.b16 %v3260, %v3256
          %v3469 = vpack.c.b16 %v3261, %v3257
          %v3470 = vpack.c.b16 %v3262, %v3258
          %v3471 = vpack.c.b16 %v3267, %v3263
          %v3472 = vpack.c.b16 %v3268, %v3264
          %v3473 = vpack.c.b16 %v3269, %v3265
          %v3474 = vpack.c.b16 %v3270, %v3266
          %v3475 = vpack.c.b16 %v3275, %v3271
          %v3476 = vpack.c.b16 %v3276, %v3272
          %v3477 = vpack.c.b16 %v3277, %v3273
          %v3478 = vpack.c.b16 %v3278, %v3274
          %v3479 = vpack.c.b16 %v3283, %v3279
          %v3480 = vpack.c.b16 %v3284, %v3280
          %v3481 = vpack.c.b16 %v3285, %v3281
          %v3482 = vpack.c.b16 %v3286, %v3282
          %v3483 = vpack.c.b16 %v3291, %v3287
          %v3484 = vpack.c.b16 %v3292, %v3288
          %v3485 = vpack.c.b16 %v3293, %v3289
          %v3486 = vpack.c.b16 %v3294, %v3290
          %v3487 = vpack.c.b16 %v3299, %v3295
          %v3488 = vpack.c.b16 %v3300, %v3296
          %v3489 = vpack.c.b16 %v3301, %v3297
          %v3490 = vpack.c.b16 %v3302, %v3298
          %v3491 = vpack.c.b16 %v3307, %v3303
          %v3492 = vpack.c.b16 %v3308, %v3304
          %v3493 = vpack.c.b16 %v3309, %v3305
          %v3494 = vpack.c.b16 %v3310, %v3306
          %v3495 = vpack.c.b16 %v3315, %v3311
          %v3496 = vpack.c.b16 %v3316, %v3312
          %v3497 = vpack.c.b16 %v3317, %v3313
          %v3498 = vpack.c.b16 %v3318, %v3314
          %v3499 = vpack.c.b16 %v3323, %v3319
          %v3500 = vpack.c.b16 %v3324, %v3320
          %v3501 = vpack.c.b16 %v3325, %v3321
          %v3502 = vpack.c.b16 %v3326, %v3322
          %v3503 = vpack.c.b16 %v3331, %v3327
          %v3504 = vpack.c.b16 %v3332, %v3328
          %v3505 = vpack.c.b16 %v3333, %v3329
          %v3506 = vpack.c.b16 %v3334, %v3330
          %v3507 = vpack.c.b16 %v3339, %v3335
          %v3508 = vpack.c.b16 %v3340, %v3336
          %v3509 = vpack.c.b16 %v3341, %v3337
          %v3510 = vpack.c.b16 %v3342, %v3338
          %v3511 = vpack.c.b16 %v3347, %v3343
          %v3512 = vpack.c.b16 %v3348, %v3344
          %v3513 = vpack.c.b16 %v3349, %v3345
          %v3514 = vpack.c.b16 %v3350, %v3346
          %v3515 = vpack.c.b16 %v3355, %v3351
          %v3516 = vpack.c.b16 %v3356, %v3352
          %v3517 = vpack.c.b16 %v3357, %v3353
          %v3518 = vpack.c.b16 %v3358, %v3354
          %v3519 = vpack.c.b16 %v3363, %v3359
          %v3520 = vpack.c.b16 %v3364, %v3360
          %v3521 = vpack.c.b16 %v3365, %v3361
          %v3522 = vpack.c.b16 %v3366, %v3362
          %v3523 = vpack.c.b16 %v3371, %v3367
          %v3524 = vpack.c.b16 %v3372, %v3368
          %v3525 = vpack.c.b16 %v3373, %v3369
          %v3526 = vpack.c.b16 %v3374, %v3370
          %v3527 = vpack.c.b16 %v3379, %v3375
          %v3528 = vpack.c.b16 %v3380, %v3376
          %v3529 = vpack.c.b16 %v3381, %v3377
          %v3530 = vpack.c.b16 %v3382, %v3378
          %v3531 = vpack.c.b16 %v3387, %v3383
          %v3532 = vpack.c.b16 %v3388, %v3384
          %v3533 = vpack.c.b16 %v3389, %v3385
          %v3534 = vpack.c.b16 %v3390, %v3386
          %v3535 = vpack.c.b16 %v3395, %v3391
          %v3536 = vpack.c.b16 %v3396, %v3392
          %v3537 = vpack.c.b16 %v3397, %v3393
          %v3538 = vpack.c.b16 %v3398, %v3394
          %v3539 = vpack.c.b16 %v3403, %v3399
          %v3540 = vpack.c.b16 %v3404, %v3400
          %v3541 = vpack.c.b16 %v3405, %v3401
          %v3542 = vpack.c.b16 %v3406, %v3402
          %v3543 = vpack.c.b16 %v3411, %v3407
          %v3544 = vpack.c.b16 %v3412, %v3408
          %v3545 = vpack.c.b16 %v3413, %v3409
          %v3546 = vpack.c.b16 %v3414, %v3410
          %v3547 = vpack.c.b16 %v3419, %v3415
          %v3548 = vpack.c.b16 %v3420, %v3416
          %v3549 = vpack.c.b16 %v3421, %v3417
          %v3550 = vpack.c.b16 %v3422, %v3418
          %3679 = vmatprep.subr.bf16.mxu0 %v3452
          %3680 = vmatpush1.bf16.msra.mxu0 %v3451
          %3681 = vmatprep.subr.bf16.mxu0 %v3448
          %3682 = vmatpush1.bf16.msra.mxu0 %v3447
          %3683 = vmatprep.subr.bf16.mxu0 %v3444
          %3684 = vmatpush1.bf16.msra.mxu0 %v3443
          %3685 = vmatprep.subr.bf16.mxu0 %v3440
          %3686 = vmatpush1.bf16.msra.mxu0 %v3439
          %3687 = vmatprep.subr.bf16.mxu0 %v3436
          %3688 = vmatpush1.bf16.msra.mxu0 %v3435
          %3689 = vmatprep.subr.bf16.mxu0 %v3432
          %3690 = vmatpush1.bf16.msra.mxu0 %v3431
          %3691 = vmatprep.subr.bf16.mxu0 %v3428
          %3692 = vmatpush1.bf16.msra.mxu0 %v3427
          %3693 = vmatprep.subr.bf16.mxu0 %v3424
          %3694 = vmatpush1.bf16.msra.mxu0 %v3423
          %3695 = vmatprep.subr.bf16.mxu0 %v3484
          %3696 = vmatpush2.bf16.msra.mxu0 %v3483
          %3697 = vmatprep.subr.bf16.mxu0 %v3480
          %3698 = vmatpush2.bf16.msra.mxu0 %v3479
          %3699 = vmatprep.subr.bf16.mxu0 %v3476
          %3700 = vmatpush2.bf16.msra.mxu0 %v3475
          %3701 = vmatprep.subr.bf16.mxu0 %v3472
          %3702 = vmatpush2.bf16.msra.mxu0 %v3471
          %3703 = vmatprep.subr.bf16.mxu0 %v3468
          %3704 = vmatpush2.bf16.msra.mxu0 %v3467
          %3705 = vmatprep.subr.bf16.mxu0 %v3464
          %3706 = vmatpush2.bf16.msra.mxu0 %v3463
          %3707 = vmatprep.subr.bf16.mxu0 %v3460
          %3708 = vmatpush2.bf16.msra.mxu0 %v3459
          %3709 = vmatprep.subr.bf16.mxu0 %v3456
          %3710 = vmatpush2.bf16.msra.mxu0 %v3455
          %3711 = vmatprep.mubr.bf16.mxu0 %v2908
          %3712 = vmatmul.mubr.bf16.gmra.mxu0 %v2907
          %v3713 = vpop.f32.mrf.mxu0
          %v3714 = vadd.f32 0.0, %v3713
          %v3715 = vpop.f32.mrf.mxu0
          %v3716 = vadd.f32 0.0, %v3715
          %v3717 = vpop.f32.mrf.mxu0
          %v3718 = vpop.f32.mrf.mxu0
          %3719 = vdwg.mxu0
          %3720 = vmatprep.subr.bf16.mxu0 %v3516
          %3721 = vmatpush1.bf16.msra.mxu0 %v3515
          %3722 = vmatprep.subr.bf16.mxu0 %v3512
          %3723 = vmatpush1.bf16.msra.mxu0 %v3511
          %3724 = vmatprep.subr.bf16.mxu0 %v3508
          %3725 = vmatpush1.bf16.msra.mxu0 %v3507
          %3726 = vmatprep.subr.bf16.mxu0 %v3504
          %3727 = vmatpush1.bf16.msra.mxu0 %v3503
          %3728 = vmatprep.subr.bf16.mxu0 %v3500
          %3729 = vmatpush1.bf16.msra.mxu0 %v3499
          %3730 = vmatprep.subr.bf16.mxu0 %v3496
          %3731 = vmatpush1.bf16.msra.mxu0 %v3495
          %3732 = vmatprep.subr.bf16.mxu0 %v3492
          %3733 = vmatpush1.bf16.msra.mxu0 %v3491
          %3734 = vmatprep.subr.bf16.mxu0 %v3488
          %3735 = vmatpush1.bf16.msra.mxu0 %v3487
          %3736 = vmatprep.subr.bf16.mxu0 %v3548
          %3737 = vmatpush2.bf16.msra.mxu0 %v3547
          %3738 = vmatprep.subr.bf16.mxu0 %v3544
          %3739 = vmatpush2.bf16.msra.mxu0 %v3543
          %3740 = vmatprep.subr.bf16.mxu0 %v3540
          %3741 = vmatpush2.bf16.msra.mxu0 %v3539
          %3742 = vmatprep.subr.bf16.mxu0 %v3536
          %3743 = vmatpush2.bf16.msra.mxu0 %v3535
          %3744 = vmatprep.subr.bf16.mxu0 %v3532
          %3745 = vmatpush2.bf16.msra.mxu0 %v3531
          %3746 = vmatprep.subr.bf16.mxu0 %v3528
          %3747 = vmatpush2.bf16.msra.mxu0 %v3527
          %3748 = vmatprep.subr.bf16.mxu0 %v3524
          %3749 = vmatpush2.bf16.msra.mxu0 %v3523
          %3750 = vmatprep.subr.bf16.mxu0 %v3520
          %3751 = vmatpush2.bf16.msra.mxu0 %v3519
          %3752 = vmatprep.mubr.bf16.mxu0 %v2910
          %3753 = vmatmul.mubr.bf16.gmra.mxu0 %v2909
          %v3754 = vpop.f32.mrf.mxu0
          %v3755 = vadd.f32 %v3714, %v3754
          %v3756 = vpop.f32.mrf.mxu0
          %v3757 = vadd.f32 %v3716, %v3756
          %v3758 = vpop.f32.mrf.mxu0
          %v3759 = vpop.f32.mrf.mxu0
          %3760 = vdwg.mxu0
          %3761 = vmatprep.subr.bf16.mxu0 %v3454
          %3762 = vmatpush1.bf16.msra.mxu0 %v3453
          %3763 = vmatprep.subr.bf16.mxu0 %v3450
          %3764 = vmatpush1.bf16.msra.mxu0 %v3449
          %3765 = vmatprep.subr.bf16.mxu0 %v3446
          %3766 = vmatpush1.bf16.msra.mxu0 %v3445
          %3767 = vmatprep.subr.bf16.mxu0 %v3442
          %3768 = vmatpush1.bf16.msra.mxu0 %v3441
          %3769 = vmatprep.subr.bf16.mxu0 %v3438
          %3770 = vmatpush1.bf16.msra.mxu0 %v3437
          %3771 = vmatprep.subr.bf16.mxu0 %v3434
          %3772 = vmatpush1.bf16.msra.mxu0 %v3433
          %3773 = vmatprep.subr.bf16.mxu0 %v3430
          %3774 = vmatpush1.bf16.msra.mxu0 %v3429
          %3775 = vmatprep.subr.bf16.mxu0 %v3426
          %3776 = vmatpush1.bf16.msra.mxu0 %v3425
          %3777 = vmatprep.subr.bf16.mxu0 %v3486
          %3778 = vmatpush2.bf16.msra.mxu0 %v3485
          %3779 = vmatprep.subr.bf16.mxu0 %v3482
          %3780 = vmatpush2.bf16.msra.mxu0 %v3481
          %3781 = vmatprep.subr.bf16.mxu0 %v3478
          %3782 = vmatpush2.bf16.msra.mxu0 %v3477
          %3783 = vmatprep.subr.bf16.mxu0 %v3474
          %3784 = vmatpush2.bf16.msra.mxu0 %v3473
          %3785 = vmatprep.subr.bf16.mxu0 %v3470
          %3786 = vmatpush2.bf16.msra.mxu0 %v3469
          %3787 = vmatprep.subr.bf16.mxu0 %v3466
          %3788 = vmatpush2.bf16.msra.mxu0 %v3465
          %3789 = vmatprep.subr.bf16.mxu0 %v3462
          %3790 = vmatpush2.bf16.msra.mxu0 %v3461
          %3791 = vmatprep.subr.bf16.mxu0 %v3458
          %3792 = vmatpush2.bf16.msra.mxu0 %v3457
          %3793 = vmatprep.mubr.bf16.mxu0 %v2908
          %3794 = vmatmul.mubr.bf16.gmra.mxu0 %v2907
          %v3795 = vpop.f32.mrf.mxu0
          %v3796 = vadd.f32 0.0, %v3795
          %v3797 = vpop.f32.mrf.mxu0
          %v3798 = vadd.f32 0.0, %v3797
          %v3799 = vpop.f32.mrf.mxu0
          %v3800 = vpop.f32.mrf.mxu0
          %3801 = vdwg.mxu0
          %3802 = vmatprep.subr.bf16.mxu0 %v3518
          %3803 = vmatpush1.bf16.msra.mxu0 %v3517
          %3804 = vmatprep.subr.bf16.mxu0 %v3514
          %3805 = vmatpush1.bf16.msra.mxu0 %v3513
          %3806 = vmatprep.subr.bf16.mxu0 %v3510
          %3807 = vmatpush1.bf16.msra.mxu0 %v3509
          %3808 = vmatprep.subr.bf16.mxu0 %v3506
          %3809 = vmatpush1.bf16.msra.mxu0 %v3505
          %3810 = vmatprep.subr.bf16.mxu0 %v3502
          %3811 = vmatpush1.bf16.msra.mxu0 %v3501
          %3812 = vmatprep.subr.bf16.mxu0 %v3498
          %3813 = vmatpush1.bf16.msra.mxu0 %v3497
          %3814 = vmatprep.subr.bf16.mxu0 %v3494
          %3815 = vmatpush1.bf16.msra.mxu0 %v3493
          %3816 = vmatprep.subr.bf16.mxu0 %v3490
          %3817 = vmatpush1.bf16.msra.mxu0 %v3489
          %3818 = vmatprep.subr.bf16.mxu0 %v3550
          %3819 = vmatpush2.bf16.msra.mxu0 %v3549
          %3820 = vmatprep.subr.bf16.mxu0 %v3546
          %3821 = vmatpush2.bf16.msra.mxu0 %v3545
          %3822 = vmatprep.subr.bf16.mxu0 %v3542
          %3823 = vmatpush2.bf16.msra.mxu0 %v3541
          %3824 = vmatprep.subr.bf16.mxu0 %v3538
          %3825 = vmatpush2.bf16.msra.mxu0 %v3537
          %3826 = vmatprep.subr.bf16.mxu0 %v3534
          %3827 = vmatpush2.bf16.msra.mxu0 %v3533
          %3828 = vmatprep.subr.bf16.mxu0 %v3530
          %3829 = vmatpush2.bf16.msra.mxu0 %v3529
          %3830 = vmatprep.subr.bf16.mxu0 %v3526
          %3831 = vmatpush2.bf16.msra.mxu0 %v3525
          %3832 = vmatprep.subr.bf16.mxu0 %v3522
          %3833 = vmatpush2.bf16.msra.mxu0 %v3521
          %3834 = vmatprep.mubr.bf16.mxu0 %v2910
          %3835 = vmatmul.mubr.bf16.gmra.mxu0 %v2909
          %v3836 = vpop.f32.mrf.mxu0
          %v3837 = vadd.f32 %v3796, %v3836
          %v3838 = vpop.f32.mrf.mxu0
          %v3839 = vadd.f32 %v3798, %v3838
          %v3840 = vpop.f32.mrf.mxu0
          %v3841 = vpop.f32.mrf.mxu0
          %3842 = vdwg.mxu0
          %v3843 = vrot.slane %v3755, 4
          %v3844 = vadd.f32 %v3755, %v3843
          %v3845 = vrot.slane %v3844, 2
          %v3846 = vadd.f32 %v3844, %v3845
          %v3847 = vrot.slane %v3846, 1
          %v3848 = vadd.f32 %v3846, %v3847
          %v3849 = vrot.slane %v3757, 4
          %v3850 = vadd.f32 %v3757, %v3849
          %v3851 = vrot.slane %v3850, 2
          %v3852 = vadd.f32 %v3850, %v3851
          %v3853 = vrot.slane %v3852, 1
          %v3854 = vadd.f32 %v3852, %v3853
          %v3855 = vrot.slane %v3837, 4
          %v3856 = vadd.f32 %v3837, %v3855
          %v3857 = vrot.slane %v3856, 2
          %v3858 = vadd.f32 %v3856, %v3857
          %v3859 = vrot.slane %v3858, 1
          %v3860 = vadd.f32 %v3858, %v3859
          %v3861 = vrot.slane %v3839, 4
          %v3862 = vadd.f32 %v3839, %v3861
          %v3863 = vrot.slane %v3862, 2
          %v3864 = vadd.f32 %v3862, %v3863
          %v3865 = vrot.slane %v3864, 1
          %v3866 = vadd.f32 %v3864, %v3865
          %v3867 = vmul.f32 %v3848, %v879
          %v3868 = vmul.f32 %v3854, %v879
          %v3869 = vmul.f32 %v3860, %v879
          %v3870 = vmul.f32 %v3866, %v879
          %v3871 = vmul.f32 %v3755, %v3755
          %v3872 = vmul.f32 %v3757, %v3757
          %v3873 = vmul.f32 %v3837, %v3837
          %v3874 = vmul.f32 %v3839, %v3839
          %v3875 = vrot.slane %v3871, 4
          %v3876 = vadd.f32 %v3871, %v3875
          %v3877 = vrot.slane %v3876, 2
          %v3878 = vadd.f32 %v3876, %v3877
          %v3879 = vrot.slane %v3878, 1
          %v3880 = vadd.f32 %v3878, %v3879
          %v3881 = vrot.slane %v3872, 4
          %v3882 = vadd.f32 %v3872, %v3881
          %v3883 = vrot.slane %v3882, 2
          %v3884 = vadd.f32 %v3882, %v3883
          %v3885 = vrot.slane %v3884, 1
          %v3886 = vadd.f32 %v3884, %v3885
          %v3887 = vrot.slane %v3873, 4
          %v3888 = vadd.f32 %v3873, %v3887
          %v3889 = vrot.slane %v3888, 2
          %v3890 = vadd.f32 %v3888, %v3889
          %v3891 = vrot.slane %v3890, 1
          %v3892 = vadd.f32 %v3890, %v3891
          %v3893 = vrot.slane %v3874, 4
          %v3894 = vadd.f32 %v3874, %v3893
          %v3895 = vrot.slane %v3894, 2
          %v3896 = vadd.f32 %v3894, %v3895
          %v3897 = vrot.slane %v3896, 1
          %v3898 = vadd.f32 %v3896, %v3897
          %v3899 = vmul.f32 %v3880, %v879
          %v3900 = vmul.f32 %v3886, %v879
          %v3901 = vmul.f32 %v3892, %v879
          %v3902 = vmul.f32 %v3898, %v879
          %v3903 = vmul.f32 %v3867, %v3867
          %v3904 = vmul.f32 %v3868, %v3868
          %v3905 = vmul.f32 %v3869, %v3869
          %v3906 = vmul.f32 %v3870, %v3870
          %v3907 = vsub.f32 %v3899, %v3903
          %v3908 = vsub.f32 %v3900, %v3904
          %v3909 = vsub.f32 %v3901, %v3905
          %v3910 = vsub.f32 %v3902, %v3906
          %v3911 = vmax.f32 %v3907, 0.0
          %v3912 = vmax.f32 %v3908, 0.0
          %v3913 = vmax.f32 %v3909, 0.0
          %v3914 = vmax.f32 %v3910, 0.0
          %v3915 = vsub.f32 %v3755, %v3867
          %v3916 = vsub.f32 %v3757, %v3868
          %v3917 = vsub.f32 %v3837, %v3869
          %v3918 = vsub.f32 %v3839, %v3870
          %v3919 = vadd.f32 %v3911, 1e-05
          %v3920 = vadd.f32 %v3912, 1e-05
          %v3921 = vadd.f32 %v3913, 1e-05
          %v3922 = vadd.f32 %v3914, 1e-05
          %v3923 = vrsqrt.pop %v3919
          %v3924 = vrsqrt.pop %v3920
          %v3925 = vrsqrt.pop %v3921
          %v3926 = vrsqrt.pop %v3922
          %v3927 = vmul.f32 %v3915, %v3923
          %v3928 = vmul.f32 %v3916, %v3924
          %v3929 = vmul.f32 %v3917, %v3925
          %v3930 = vmul.f32 %v3918, %v3926
          %v3931 = vlaneseq
          %v3932 = vshrl.u32 %v3931, 7
          %v3933 = vsub.s32 2, %v3932
          %v3934 = vrot.slane %v2501, %v3933
          %v3935 = vlaneseq
          %v3936 = vshrl.u32 %v3935, 7
          %v3937 = vsub.s32 6, %v3936
          %v3938 = vrot.slane %v2501, %v3937
          %v3939 = vlaneseq
          %v3940 = vshrl.u32 %v3939, 7
          %v3941 = vsub.s32 2, %v3940
          %v3942 = vrot.slane %v2502, %v3941
          %v3943 = vlaneseq
          %v3944 = vshrl.u32 %v3943, 7
          %v3945 = vsub.s32 6, %v3944
          %v3946 = vrot.slane %v2502, %v3945
          %v3951 = vlaneseq
          %v3952 = vshrl.u32 %v3951, 7
          %v3953 = vsub.s32 2, %v3952
          %v3954 = vrot.slane %v3934, %v3953
          %v3955 = vlaneseq
          %v3956 = vshrl.u32 %v3955, 7
          %v3957 = vsub.s32 2, %v3956
          %v3958 = vrot.slane %v3938, %v3957
          %v3959 = vlaneseq
          %v3960 = vshrl.u32 %v3959, 7
          %v3961 = vsub.s32 2, %v3960
          %v3962 = vrot.slane %v3942, %v3961
          %v3963 = vlaneseq
          %v3964 = vshrl.u32 %v3963, 7
          %v3965 = vsub.s32 2, %v3964
          %v3966 = vrot.slane %v3946, %v3965
          %v3967 = vmul.f32 %v3927, %v3954
          %v3968 = vmul.f32 %v3928, %v3958
          %v3969 = vmul.f32 %v3929, %v3962
          %v3970 = vmul.f32 %v3930, %v3966
          %v3971 = vlaneseq
          %v3972 = vshrl.u32 %v3971, 7
          %v3973 = vsub.s32 3, %v3972
          %v3974 = vrot.slane %v2501, %v3973
          %v3975 = vlaneseq
          %v3976 = vshrl.u32 %v3975, 7
          %v3977 = vsub.s32 7, %v3976
          %v3978 = vrot.slane %v2501, %v3977
          %v3979 = vlaneseq
          %v3980 = vshrl.u32 %v3979, 7
          %v3981 = vsub.s32 3, %v3980
          %v3982 = vrot.slane %v2502, %v3981
          %v3983 = vlaneseq
          %v3984 = vshrl.u32 %v3983, 7
          %v3985 = vsub.s32 7, %v3984
          %v3986 = vrot.slane %v2502, %v3985
          %v3991 = vlaneseq
          %v3992 = vshrl.u32 %v3991, 7
          %v3993 = vsub.s32 3, %v3992
          %v3994 = vrot.slane %v3974, %v3993
          %v3995 = vlaneseq
          %v3996 = vshrl.u32 %v3995, 7
          %v3997 = vsub.s32 3, %v3996
          %v3998 = vrot.slane %v3978, %v3997
          %v3999 = vlaneseq
          %v4000 = vshrl.u32 %v3999, 7
          %v4001 = vsub.s32 3, %v4000
          %v4002 = vrot.slane %v3982, %v4001
          %v4003 = vlaneseq
          %v4004 = vshrl.u32 %v4003, 7
          %v4005 = vsub.s32 3, %v4004
          %v4006 = vrot.slane %v3986, %v4005
          %v4007 = vadd.f32 %v3967, %v3994
          %v4008 = vadd.f32 %v3968, %v3998
          %v4009 = vadd.f32 %v3969, %v4002
          %v4010 = vadd.f32 %v3970, %v4006
          %v4011 = vmax.f32 %v4007, 0.0
          %v4012 = vmax.f32 %v4008, 0.0
          %v4013 = vmax.f32 %v4009, 0.0
          %v4014 = vmax.f32 %v4010, 0.0
          %v4015 = vpack.c.bf16 %v4011, %v4011
          %v4016 = vpack.c.bf16 %v4012, %v4012
          %v4017 = vpack.c.bf16 %v4013, %v4013
          %v4018 = vpack.c.bf16 %v4014, %v4014
          %v4019 = vld [vmem:[#allocation10] sm:$0xf]
          %v4020 = vld [vmem:[#allocation10 + $0x4] sm:$0xf]
          %v4021 = vld [vmem:[#allocation10 + $0x8] sm:$0xf]
          %v4022 = vld [vmem:[#allocation10 + $0xc] sm:$0xf]
          %v4023 = vld [vmem:[#allocation10 + $0x10] sm:$0xf]
          %v4024 = vld [vmem:[#allocation10 + $0x14] sm:$0xf]
          %v4025 = vld [vmem:[#allocation10 + $0x18] sm:$0xf]
          %v4026 = vld [vmem:[#allocation10 + $0x1c] sm:$0xf]
          %v4027 = vld [vmem:[#allocation10 + $0x20] sm:$0xf]
          %v4028 = vld [vmem:[#allocation10 + $0x24] sm:$0xf]
          %v4029 = vld [vmem:[#allocation10 + $0x28] sm:$0xf]
          %v4030 = vld [vmem:[#allocation10 + $0x2c] sm:$0xf]
          %v4031 = vld [vmem:[#allocation10 + $0x30] sm:$0xf]
          %v4032 = vld [vmem:[#allocation10 + $0x34] sm:$0xf]
          %v4033 = vld [vmem:[#allocation10 + $0x38] sm:$0xf]
          %v4034 = vld [vmem:[#allocation10 + $0x3c] sm:$0xf]
          %v4035 = vld [vmem:[#allocation10 + $0x40] sm:$0xf]
          %v4036 = vld [vmem:[#allocation10 + $0x44] sm:$0xf]
          %v4037 = vld [vmem:[#allocation10 + $0x48] sm:$0xf]
          %v4038 = vld [vmem:[#allocation10 + $0x4c] sm:$0xf]
          %v4039 = vld [vmem:[#allocation10 + $0x50] sm:$0xf]
          %v4040 = vld [vmem:[#allocation10 + $0x54] sm:$0xf]
          %v4041 = vld [vmem:[#allocation10 + $0x58] sm:$0xf]
          %v4042 = vld [vmem:[#allocation10 + $0x5c] sm:$0xf]
          %v4043 = vld [vmem:[#allocation10 + $0x60] sm:$0xf]
          %v4044 = vld [vmem:[#allocation10 + $0x64] sm:$0xf]
          %v4045 = vld [vmem:[#allocation10 + $0x68] sm:$0xf]
          %v4046 = vld [vmem:[#allocation10 + $0x6c] sm:$0xf]
          %v4047 = vld [vmem:[#allocation10 + $0x70] sm:$0xf]
          %v4048 = vld [vmem:[#allocation10 + $0x74] sm:$0xf]
          %v4049 = vld [vmem:[#allocation10 + $0x78] sm:$0xf]
          %v4050 = vld [vmem:[#allocation10 + $0x7c] sm:$0xf]
          %v4051 = vld [vmem:[#allocation10 + $0x80] sm:$0xf]
          %v4052 = vld [vmem:[#allocation10 + $0x84] sm:$0xf]
          %v4053 = vld [vmem:[#allocation10 + $0x88] sm:$0xf]
          %v4054 = vld [vmem:[#allocation10 + $0x8c] sm:$0xf]
          %v4055 = vld [vmem:[#allocation10 + $0x90] sm:$0xf]
          %v4056 = vld [vmem:[#allocation10 + $0x94] sm:$0xf]
          %v4057 = vld [vmem:[#allocation10 + $0x98] sm:$0xf]
          %v4058 = vld [vmem:[#allocation10 + $0x9c] sm:$0xf]
          %v4059 = vld [vmem:[#allocation10 + $0xa0] sm:$0xf]
          %v4060 = vld [vmem:[#allocation10 + $0xa4] sm:$0xf]
          %v4061 = vld [vmem:[#allocation10 + $0xa8] sm:$0xf]
          %v4062 = vld [vmem:[#allocation10 + $0xac] sm:$0xf]
          %v4063 = vld [vmem:[#allocation10 + $0xb0] sm:$0xf]
          %v4064 = vld [vmem:[#allocation10 + $0xb4] sm:$0xf]
          %v4065 = vld [vmem:[#allocation10 + $0xb8] sm:$0xf]
          %v4066 = vld [vmem:[#allocation10 + $0xbc] sm:$0xf]
          %v4067 = vld [vmem:[#allocation10 + $0xc0] sm:$0xf]
          %v4068 = vld [vmem:[#allocation10 + $0xc4] sm:$0xf]
          %v4069 = vld [vmem:[#allocation10 + $0xc8] sm:$0xf]
          %v4070 = vld [vmem:[#allocation10 + $0xcc] sm:$0xf]
          %v4071 = vld [vmem:[#allocation10 + $0xd0] sm:$0xf]
          %v4072 = vld [vmem:[#allocation10 + $0xd4] sm:$0xf]
          %v4073 = vld [vmem:[#allocation10 + $0xd8] sm:$0xf]
          %v4074 = vld [vmem:[#allocation10 + $0xdc] sm:$0xf]
          %v4075 = vld [vmem:[#allocation10 + $0xe0] sm:$0xf]
          %v4076 = vld [vmem:[#allocation10 + $0xe4] sm:$0xf]
          %v4077 = vld [vmem:[#allocation10 + $0xe8] sm:$0xf]
          %v4078 = vld [vmem:[#allocation10 + $0xec] sm:$0xf]
          %v4079 = vld [vmem:[#allocation10 + $0xf0] sm:$0xf]
          %v4080 = vld [vmem:[#allocation10 + $0xf4] sm:$0xf]
          %v4081 = vld [vmem:[#allocation10 + $0xf8] sm:$0xf]
          %v4082 = vld [vmem:[#allocation10 + $0xfc] sm:$0xf]
          %v4147 = vunpack.c.l.b16 %v4019
          %v4148 = vunpack.c.l.b16 %v4020
          %v4149 = vunpack.c.l.b16 %v4021
          %v4150 = vunpack.c.l.b16 %v4022
          %v4151 = vunpack.c.l.b16 %v4023
          %v4152 = vunpack.c.l.b16 %v4024
          %v4153 = vunpack.c.l.b16 %v4025
          %v4154 = vunpack.c.l.b16 %v4026
          %v4155 = vunpack.c.l.b16 %v4027
          %v4156 = vunpack.c.l.b16 %v4028
          %v4157 = vunpack.c.l.b16 %v4029
          %v4158 = vunpack.c.l.b16 %v4030
          %v4159 = vunpack.c.l.b16 %v4031
          %v4160 = vunpack.c.l.b16 %v4032
          %v4161 = vunpack.c.l.b16 %v4033
          %v4162 = vunpack.c.l.b16 %v4034
          %v4163 = vunpack.c.l.b16 %v4035
          %v4164 = vunpack.c.l.b16 %v4036
          %v4165 = vunpack.c.l.b16 %v4037
          %v4166 = vunpack.c.l.b16 %v4038
          %v4167 = vunpack.c.l.b16 %v4039
          %v4168 = vunpack.c.l.b16 %v4040
          %v4169 = vunpack.c.l.b16 %v4041
          %v4170 = vunpack.c.l.b16 %v4042
          %v4171 = vunpack.c.l.b16 %v4043
          %v4172 = vunpack.c.l.b16 %v4044
          %v4173 = vunpack.c.l.b16 %v4045
          %v4174 = vunpack.c.l.b16 %v4046
          %v4175 = vunpack.c.l.b16 %v4047
          %v4176 = vunpack.c.l.b16 %v4048
          %v4177 = vunpack.c.l.b16 %v4049
          %v4178 = vunpack.c.l.b16 %v4050
          %v4179 = vunpack.c.l.b16 %v4051
          %v4180 = vunpack.c.l.b16 %v4052
          %v4181 = vunpack.c.l.b16 %v4053
          %v4182 = vunpack.c.l.b16 %v4054
          %v4183 = vunpack.c.l.b16 %v4055
          %v4184 = vunpack.c.l.b16 %v4056
          %v4185 = vunpack.c.l.b16 %v4057
          %v4186 = vunpack.c.l.b16 %v4058
          %v4187 = vunpack.c.l.b16 %v4059
          %v4188 = vunpack.c.l.b16 %v4060
          %v4189 = vunpack.c.l.b16 %v4061
          %v4190 = vunpack.c.l.b16 %v4062
          %v4191 = vunpack.c.l.b16 %v4063
          %v4192 = vunpack.c.l.b16 %v4064
          %v4193 = vunpack.c.l.b16 %v4065
          %v4194 = vunpack.c.l.b16 %v4066
          %v4195 = vunpack.c.l.b16 %v4067
          %v4196 = vunpack.c.l.b16 %v4068
          %v4197 = vunpack.c.l.b16 %v4069
          %v4198 = vunpack.c.l.b16 %v4070
          %v4199 = vunpack.c.l.b16 %v4071
          %v4200 = vunpack.c.l.b16 %v4072
          %v4201 = vunpack.c.l.b16 %v4073
          %v4202 = vunpack.c.l.b16 %v4074
          %v4203 = vunpack.c.l.b16 %v4075
          %v4204 = vunpack.c.l.b16 %v4076
          %v4205 = vunpack.c.l.b16 %v4077
          %v4206 = vunpack.c.l.b16 %v4078
          %v4207 = vunpack.c.l.b16 %v4079
          %v4208 = vunpack.c.l.b16 %v4080
          %v4209 = vunpack.c.l.b16 %v4081
          %v4210 = vunpack.c.l.b16 %v4082
          %v4211 = vpack.c.b16 %v4148, %v4147
          %v4212 = vpack.c.b16 %v4150, %v4149
          %v4213 = vpack.c.b16 %v4152, %v4151
          %v4214 = vpack.c.b16 %v4154, %v4153
          %v4215 = vpack.c.b16 %v4156, %v4155
          %v4216 = vpack.c.b16 %v4158, %v4157
          %v4217 = vpack.c.b16 %v4160, %v4159
          %v4218 = vpack.c.b16 %v4162, %v4161
          %v4219 = vpack.c.b16 %v4164, %v4163
          %v4220 = vpack.c.b16 %v4166, %v4165
          %v4221 = vpack.c.b16 %v4168, %v4167
          %v4222 = vpack.c.b16 %v4170, %v4169
          %v4223 = vpack.c.b16 %v4172, %v4171
          %v4224 = vpack.c.b16 %v4174, %v4173
          %v4225 = vpack.c.b16 %v4176, %v4175
          %v4226 = vpack.c.b16 %v4178, %v4177
          %v4227 = vpack.c.b16 %v4180, %v4179
          %v4228 = vpack.c.b16 %v4182, %v4181
          %v4229 = vpack.c.b16 %v4184, %v4183
          %v4230 = vpack.c.b16 %v4186, %v4185
          %v4231 = vpack.c.b16 %v4188, %v4187
          %v4232 = vpack.c.b16 %v4190, %v4189
          %v4233 = vpack.c.b16 %v4192, %v4191
          %v4234 = vpack.c.b16 %v4194, %v4193
          %v4235 = vpack.c.b16 %v4196, %v4195
          %v4236 = vpack.c.b16 %v4198, %v4197
          %v4237 = vpack.c.b16 %v4200, %v4199
          %v4238 = vpack.c.b16 %v4202, %v4201
          %v4239 = vpack.c.b16 %v4204, %v4203
          %v4240 = vpack.c.b16 %v4206, %v4205
          %v4241 = vpack.c.b16 %v4208, %v4207
          %v4242 = vpack.c.b16 %v4210, %v4209
          %4275 = vmatprep.subr.bf16.mxu0 0
          %4276 = vmatpush1.bf16.msra.mxu0 %v4218
          %4277 = vmatprep.subr.bf16.mxu0 0
          %4278 = vmatpush1.bf16.msra.mxu0 %v4217
          %4279 = vmatprep.subr.bf16.mxu0 0
          %4280 = vmatpush1.bf16.msra.mxu0 %v4216
          %4281 = vmatprep.subr.bf16.mxu0 0
          %4282 = vmatpush1.bf16.msra.mxu0 %v4215
          %4283 = vmatprep.subr.bf16.mxu0 0
          %4284 = vmatpush1.bf16.msra.mxu0 %v4214
          %4285 = vmatprep.subr.bf16.mxu0 0
          %4286 = vmatpush1.bf16.msra.mxu0 %v4213
          %4287 = vmatprep.subr.bf16.mxu0 0
          %4288 = vmatpush1.bf16.msra.mxu0 %v4212
          %4289 = vmatprep.subr.bf16.mxu0 0
          %4290 = vmatpush1.bf16.msra.mxu0 %v4211
          %4291 = vmatprep.subr.bf16.mxu0 0
          %4292 = vmatpush2.bf16.msra.mxu0 %v4226
          %4293 = vmatprep.subr.bf16.mxu0 0
          %4294 = vmatpush2.bf16.msra.mxu0 %v4225
          %4295 = vmatprep.subr.bf16.mxu0 0
          %4296 = vmatpush2.bf16.msra.mxu0 %v4224
          %4297 = vmatprep.subr.bf16.mxu0 0
          %4298 = vmatpush2.bf16.msra.mxu0 %v4223
          %4299 = vmatprep.subr.bf16.mxu0 0
          %4300 = vmatpush2.bf16.msra.mxu0 %v4222
          %4301 = vmatprep.subr.bf16.mxu0 0
          %4302 = vmatpush2.bf16.msra.mxu0 %v4221
          %4303 = vmatprep.subr.bf16.mxu0 0
          %4304 = vmatpush2.bf16.msra.mxu0 %v4220
          %4305 = vmatprep.subr.bf16.mxu0 0
          %4306 = vmatpush2.bf16.msra.mxu0 %v4219
          %4307 = vmatprep.mubr.bf16.mxu0 %v4016
          %4308 = vmatmul.mubr.bf16.gmra.mxu0 %v4015
          %v4309 = vpop.f32.mrf.mxu0
          %v4310 = vadd.f32 0.0, %v4309
          %v4311 = vpop.f32.mrf.mxu0
          %v4312 = vpop.f32.mrf.mxu0
          %v4313 = vpop.f32.mrf.mxu0
          %4314 = vdwg.mxu0
          %4315 = vmatprep.subr.bf16.mxu0 0
          %4316 = vmatpush1.bf16.msra.mxu0 %v4234
          %4317 = vmatprep.subr.bf16.mxu0 0
          %4318 = vmatpush1.bf16.msra.mxu0 %v4233
          %4319 = vmatprep.subr.bf16.mxu0 0
          %4320 = vmatpush1.bf16.msra.mxu0 %v4232
          %4321 = vmatprep.subr.bf16.mxu0 0
          %4322 = vmatpush1.bf16.msra.mxu0 %v4231
          %4323 = vmatprep.subr.bf16.mxu0 0
          %4324 = vmatpush1.bf16.msra.mxu0 %v4230
          %4325 = vmatprep.subr.bf16.mxu0 0
          %4326 = vmatpush1.bf16.msra.mxu0 %v4229
          %4327 = vmatprep.subr.bf16.mxu0 0
          %4328 = vmatpush1.bf16.msra.mxu0 %v4228
          %4329 = vmatprep.subr.bf16.mxu0 0
          %4330 = vmatpush1.bf16.msra.mxu0 %v4227
          %4331 = vmatprep.subr.bf16.mxu0 0
          %4332 = vmatpush2.bf16.msra.mxu0 %v4242
          %4333 = vmatprep.subr.bf16.mxu0 0
          %4334 = vmatpush2.bf16.msra.mxu0 %v4241
          %4335 = vmatprep.subr.bf16.mxu0 0
          %4336 = vmatpush2.bf16.msra.mxu0 %v4240
          %4337 = vmatprep.subr.bf16.mxu0 0
          %4338 = vmatpush2.bf16.msra.mxu0 %v4239
          %4339 = vmatprep.subr.bf16.mxu0 0
          %4340 = vmatpush2.bf16.msra.mxu0 %v4238
          %4341 = vmatprep.subr.bf16.mxu0 0
          %4342 = vmatpush2.bf16.msra.mxu0 %v4237
          %4343 = vmatprep.subr.bf16.mxu0 0
          %4344 = vmatpush2.bf16.msra.mxu0 %v4236
          %4345 = vmatprep.subr.bf16.mxu0 0
          %4346 = vmatpush2.bf16.msra.mxu0 %v4235
          %4347 = vmatprep.mubr.bf16.mxu0 %v4018
          %4348 = vmatmul.mubr.bf16.gmra.mxu0 %v4017
          %v4349 = vpop.f32.mrf.mxu0
          %v4350 = vadd.f32 %v4310, %v4349
          %v4351 = vpop.f32.mrf.mxu0
          %v4352 = vpop.f32.mrf.mxu0
          %v4353 = vpop.f32.mrf.mxu0
          %4354 = vdwg.mxu0
          %v4355 = vrot.slane %v4350, 4
          %v4356 = vadd.f32 %v4350, %v4355
          %v4357 = vrot.slane %v4356, 2
          %v4358 = vadd.f32 %v4356, %v4357
          %v4359 = vrot.slane %v4358, 1
          %v4360 = vadd.f32 %v4358, %v4359
          %v4361 = vmul.f32 %v4360, %v879
          %v4362 = vmul.f32 %v4350, %v4350
          %v4363 = vrot.slane %v4362, 4
          %v4364 = vadd.f32 %v4362, %v4363
          %v4365 = vrot.slane %v4364, 2
          %v4366 = vadd.f32 %v4364, %v4365
          %v4367 = vrot.slane %v4366, 1
          %v4368 = vadd.f32 %v4366, %v4367
          %v4369 = vmul.f32 %v4368, %v879
          %v4370 = vmul.f32 %v4361, %v4361
          %v4371 = vsub.f32 %v4369, %v4370
          %v4372 = vmax.f32 %v4371, 0.0
          %v4373 = vsub.f32 %v4350, %v4361
          %v4374 = vadd.f32 %v4372, 1e-05
          %v4375 = vrsqrt.pop %v4374
          %v4376 = vmul.f32 %v4373, %v4375
          %v4377 = vld [vmem:[#allocation16] sm:$0xff]
          %v4378 = vld [vmem:[#allocation16 + $0x8] sm:$0xff]
          %v4379 = vpack.c.bf16 %v4376, %v2499
          %v4380 = vld [vmem:[#allocation13] sm:$0xff]
          %v4381 = vld [vmem:[#allocation13 + $0x8] sm:$0xff]
          %v4382 = vld [vmem:[#allocation13 + $0x10] sm:$0xff]
          %v4383 = vld [vmem:[#allocation13 + $0x18] sm:$0xff]
          %v4384 = vld [vmem:[#allocation13 + $0x20] sm:$0xff]
          %v4385 = vld [vmem:[#allocation13 + $0x28] sm:$0xff]
          %v4386 = vld [vmem:[#allocation13 + $0x30] sm:$0xff]
          %v4387 = vld [vmem:[#allocation13 + $0x38] sm:$0xff]
          %v4388 = vld [vmem:[#allocation13 + $0x40] sm:$0xff]
          %v4389 = vld [vmem:[#allocation13 + $0x48] sm:$0xff]
          %v4390 = vld [vmem:[#allocation13 + $0x50] sm:$0xff]
          %v4391 = vld [vmem:[#allocation13 + $0x58] sm:$0xff]
          %v4392 = vld [vmem:[#allocation13 + $0x60] sm:$0xff]
          %v4393 = vld [vmem:[#allocation13 + $0x68] sm:$0xff]
          %v4394 = vld [vmem:[#allocation13 + $0x70] sm:$0xff]
          %v4395 = vld [vmem:[#allocation13 + $0x78] sm:$0xff]
          %v4396 = vld [vmem:[#allocation13 + $0x80] sm:$0xff]
          %v4397 = vld [vmem:[#allocation13 + $0x88] sm:$0xff]
          %v4398 = vld [vmem:[#allocation13 + $0x90] sm:$0xff]
          %v4399 = vld [vmem:[#allocation13 + $0x98] sm:$0xff]
          %v4400 = vld [vmem:[#allocation13 + $0xa0] sm:$0xff]
          %v4401 = vld [vmem:[#allocation13 + $0xa8] sm:$0xff]
          %v4402 = vld [vmem:[#allocation13 + $0xb0] sm:$0xff]
          %v4403 = vld [vmem:[#allocation13 + $0xb8] sm:$0xff]
          %v4404 = vld [vmem:[#allocation13 + $0xc0] sm:$0xff]
          %v4405 = vld [vmem:[#allocation13 + $0xc8] sm:$0xff]
          %v4406 = vld [vmem:[#allocation13 + $0xd0] sm:$0xff]
          %v4407 = vld [vmem:[#allocation13 + $0xd8] sm:$0xff]
          %v4408 = vld [vmem:[#allocation13 + $0xe0] sm:$0xff]
          %v4409 = vld [vmem:[#allocation13 + $0xe8] sm:$0xff]
          %v4410 = vld [vmem:[#allocation13 + $0xf0] sm:$0xff]
          %v4411 = vld [vmem:[#allocation13 + $0xf8] sm:$0xff]
          %v4414 = vlaneseq
          %v4415 = vshrl.u32 %v4414, 7
          %v4416 = vsub.s32 0, %v4415
          %v4417 = vrot.slane %v4377, %v4416
          %v4418 = vlaneseq
          %v4419 = vshrl.u32 %v4418, 7
          %v4420 = vsub.s32 4, %v4419
          %v4421 = vrot.slane %v4377, %v4420
          %v4422 = vlaneseq
          %v4423 = vshrl.u32 %v4422, 7
          %v4424 = vsub.s32 0, %v4423
          %v4425 = vrot.slane %v4378, %v4424
          %v4426 = vlaneseq
          %v4427 = vshrl.u32 %v4426, 7
          %v4428 = vsub.s32 4, %v4427
          %v4429 = vrot.slane %v4378, %v4428
          %v4434 = vlaneseq
          %v4435 = vshrl.u32 %v4434, 7
          %v4436 = vsub.s32 0, %v4435
          %v4437 = vrot.slane %v4417, %v4436
          %v4438 = vlaneseq
          %v4439 = vshrl.u32 %v4438, 7
          %v4440 = vsub.s32 0, %v4439
          %v4441 = vrot.slane %v4421, %v4440
          %v4442 = vlaneseq
          %v4443 = vshrl.u32 %v4442, 7
          %v4444 = vsub.s32 0, %v4443
          %v4445 = vrot.slane %v4425, %v4444
          %v4446 = vlaneseq
          %v4447 = vshrl.u32 %v4446, 7
          %v4448 = vsub.s32 0, %v4447
          %v4449 = vrot.slane %v4429, %v4448
          %v4482 = vunpack.c.l.b16 %v4380
          %v4483 = vunpack.c.h.b16 %v4380
          %v4484 = vunpack.c.l.b16 %v4381
          %v4485 = vunpack.c.h.b16 %v4381
          %v4486 = vunpack.c.l.b16 %v4382
          %v4487 = vunpack.c.h.b16 %v4382
          %v4488 = vunpack.c.l.b16 %v4383
          %v4489 = vunpack.c.h.b16 %v4383
          %v4490 = vunpack.c.l.b16 %v4384
          %v4491 = vunpack.c.h.b16 %v4384
          %v4492 = vunpack.c.l.b16 %v4385
          %v4493 = vunpack.c.h.b16 %v4385
          %v4494 = vunpack.c.l.b16 %v4386
          %v4495 = vunpack.c.h.b16 %v4386
          %v4496 = vunpack.c.l.b16 %v4387
          %v4497 = vunpack.c.h.b16 %v4387
          %v4498 = vunpack.c.l.b16 %v4388
          %v4499 = vunpack.c.h.b16 %v4388
          %v4500 = vunpack.c.l.b16 %v4389
          %v4501 = vunpack.c.h.b16 %v4389
          %v4502 = vunpack.c.l.b16 %v4390
          %v4503 = vunpack.c.h.b16 %v4390
          %v4504 = vunpack.c.l.b16 %v4391
          %v4505 = vunpack.c.h.b16 %v4391
          %v4506 = vunpack.c.l.b16 %v4392
          %v4507 = vunpack.c.h.b16 %v4392
          %v4508 = vunpack.c.l.b16 %v4393
          %v4509 = vunpack.c.h.b16 %v4393
          %v4510 = vunpack.c.l.b16 %v4394
          %v4511 = vunpack.c.h.b16 %v4394
          %v4512 = vunpack.c.l.b16 %v4395
          %v4513 = vunpack.c.h.b16 %v4395
          %v4514 = vunpack.c.l.b16 %v4396
          %v4515 = vunpack.c.h.b16 %v4396
          %v4516 = vunpack.c.l.b16 %v4397
          %v4517 = vunpack.c.h.b16 %v4397
          %v4518 = vunpack.c.l.b16 %v4398
          %v4519 = vunpack.c.h.b16 %v4398
          %v4520 = vunpack.c.l.b16 %v4399
          %v4521 = vunpack.c.h.b16 %v4399
          %v4522 = vunpack.c.l.b16 %v4400
          %v4523 = vunpack.c.h.b16 %v4400
          %v4524 = vunpack.c.l.b16 %v4401
          %v4525 = vunpack.c.h.b16 %v4401
          %v4526 = vunpack.c.l.b16 %v4402
          %v4527 = vunpack.c.h.b16 %v4402
          %v4528 = vunpack.c.l.b16 %v4403
          %v4529 = vunpack.c.h.b16 %v4403
          %v4530 = vunpack.c.l.b16 %v4404
          %v4531 = vunpack.c.h.b16 %v4404
          %v4532 = vunpack.c.l.b16 %v4405
          %v4533 = vunpack.c.h.b16 %v4405
          %v4534 = vunpack.c.l.b16 %v4406
          %v4535 = vunpack.c.h.b16 %v4406
          %v4536 = vunpack.c.l.b16 %v4407
          %v4537 = vunpack.c.h.b16 %v4407
          %v4538 = vunpack.c.l.b16 %v4408
          %v4539 = vunpack.c.h.b16 %v4408
          %v4540 = vunpack.c.l.b16 %v4409
          %v4541 = vunpack.c.h.b16 %v4409
          %v4542 = vunpack.c.l.b16 %v4410
          %v4543 = vunpack.c.h.b16 %v4410
          %v4544 = vunpack.c.l.b16 %v4411
          %v4545 = vunpack.c.h.b16 %v4411
          %v4546 = vpack.c.b16 %v4486, %v4482
          %v4547 = vpack.c.b16 %v4487, %v4483
          %v4548 = vpack.c.b16 %v4488, %v4484
          %v4549 = vpack.c.b16 %v4489, %v4485
          %v4550 = vpack.c.b16 %v4494, %v4490
          %v4551 = vpack.c.b16 %v4495, %v4491
          %v4552 = vpack.c.b16 %v4496, %v4492
          %v4553 = vpack.c.b16 %v4497, %v4493
          %v4554 = vpack.c.b16 %v4502, %v4498
          %v4555 = vpack.c.b16 %v4503, %v4499
          %v4556 = vpack.c.b16 %v4504, %v4500
          %v4557 = vpack.c.b16 %v4505, %v4501
          %v4558 = vpack.c.b16 %v4510, %v4506
          %v4559 = vpack.c.b16 %v4511, %v4507
          %v4560 = vpack.c.b16 %v4512, %v4508
          %v4561 = vpack.c.b16 %v4513, %v4509
          %v4562 = vpack.c.b16 %v4518, %v4514
          %v4563 = vpack.c.b16 %v4519, %v4515
          %v4564 = vpack.c.b16 %v4520, %v4516
          %v4565 = vpack.c.b16 %v4521, %v4517
          %v4566 = vpack.c.b16 %v4526, %v4522
          %v4567 = vpack.c.b16 %v4527, %v4523
          %v4568 = vpack.c.b16 %v4528, %v4524
          %v4569 = vpack.c.b16 %v4529, %v4525
          %v4570 = vpack.c.b16 %v4534, %v4530
          %v4571 = vpack.c.b16 %v4535, %v4531
          %v4572 = vpack.c.b16 %v4536, %v4532
          %v4573 = vpack.c.b16 %v4537, %v4533
          %v4574 = vpack.c.b16 %v4542, %v4538
          %v4575 = vpack.c.b16 %v4543, %v4539
          %v4576 = vpack.c.b16 %v4544, %v4540
          %v4577 = vpack.c.b16 %v4545, %v4541
          %4610 = vmatprep.subr.bf16.mxu0 %v4575
          %4611 = vmatpush1.bf16.msra.mxu0 %v4574
          %4612 = vmatprep.subr.bf16.mxu0 %v4571
          %4613 = vmatpush1.bf16.msra.mxu0 %v4570
          %4614 = vmatprep.subr.bf16.mxu0 %v4567
          %4615 = vmatpush1.bf16.msra.mxu0 %v4566
          %4616 = vmatprep.subr.bf16.mxu0 %v4563
          %4617 = vmatpush1.bf16.msra.mxu0 %v4562
          %4618 = vmatprep.subr.bf16.mxu0 %v4559
          %4619 = vmatpush1.bf16.msra.mxu0 %v4558
          %4620 = vmatprep.subr.bf16.mxu0 %v4555
          %4621 = vmatpush1.bf16.msra.mxu0 %v4554
          %4622 = vmatprep.subr.bf16.mxu0 %v4551
          %4623 = vmatpush1.bf16.msra.mxu0 %v4550
          %4624 = vmatprep.subr.bf16.mxu0 %v4547
          %4625 = vmatpush1.bf16.msra.mxu0 %v4546
          %4626 = vmatprep.subr.bf16.mxu0 0
          %4627 = vmatpush2.bf16.msra.mxu0 0
          %4628 = vmatprep.subr.bf16.mxu0 0
          %4629 = vmatpush2.bf16.msra.mxu0 0
          %4630 = vmatprep.subr.bf16.mxu0 0
          %4631 = vmatpush2.bf16.msra.mxu0 0
          %4632 = vmatprep.subr.bf16.mxu0 0
          %4633 = vmatpush2.bf16.msra.mxu0 0
          %4634 = vmatprep.subr.bf16.mxu0 0
          %4635 = vmatpush2.bf16.msra.mxu0 0
          %4636 = vmatprep.subr.bf16.mxu0 0
          %4637 = vmatpush2.bf16.msra.mxu0 0
          %4638 = vmatprep.subr.bf16.mxu0 0
          %4639 = vmatpush2.bf16.msra.mxu0 0
          %4640 = vmatprep.subr.bf16.mxu0 0
          %4641 = vmatpush2.bf16.msra.mxu0 0
          %4642 = vmatprep.mubr.bf16.mxu0 0
          %4643 = vmatmul.mubr.bf16.gmra.mxu0 %v4379
          %v4644 = vpop.f32.mrf.mxu0
          %v4645 = vadd.f32 %v4437, %v4644
          %v4646 = vpop.f32.mrf.mxu0
          %v4647 = vadd.f32 %v4441, %v4646
          %v4648 = vpop.f32.mrf.mxu0
          %v4649 = vadd.f32 %v4437, %v4648
          %v4650 = vpop.f32.mrf.mxu0
          %v4651 = vadd.f32 %v4441, %v4650
          %4652 = vdwg.mxu0
          %4653 = vmatprep.subr.bf16.mxu0 %v4577
          %4654 = vmatpush1.bf16.msra.mxu0 %v4576
          %4655 = vmatprep.subr.bf16.mxu0 %v4573
          %4656 = vmatpush1.bf16.msra.mxu0 %v4572
          %4657 = vmatprep.subr.bf16.mxu0 %v4569
          %4658 = vmatpush1.bf16.msra.mxu0 %v4568
          %4659 = vmatprep.subr.bf16.mxu0 %v4565
          %4660 = vmatpush1.bf16.msra.mxu0 %v4564
          %4661 = vmatprep.subr.bf16.mxu0 %v4561
          %4662 = vmatpush1.bf16.msra.mxu0 %v4560
          %4663 = vmatprep.subr.bf16.mxu0 %v4557
          %4664 = vmatpush1.bf16.msra.mxu0 %v4556
          %4665 = vmatprep.subr.bf16.mxu0 %v4553
          %4666 = vmatpush1.bf16.msra.mxu0 %v4552
          %4667 = vmatprep.subr.bf16.mxu0 %v4549
          %4668 = vmatpush1.bf16.msra.mxu0 %v4548
          %4669 = vmatprep.subr.bf16.mxu0 0
          %4670 = vmatpush2.bf16.msra.mxu0 0
          %4671 = vmatprep.subr.bf16.mxu0 0
          %4672 = vmatpush2.bf16.msra.mxu0 0
          %4673 = vmatprep.subr.bf16.mxu0 0
          %4674 = vmatpush2.bf16.msra.mxu0 0
          %4675 = vmatprep.subr.bf16.mxu0 0
          %4676 = vmatpush2.bf16.msra.mxu0 0
          %4677 = vmatprep.subr.bf16.mxu0 0
          %4678 = vmatpush2.bf16.msra.mxu0 0
          %4679 = vmatprep.subr.bf16.mxu0 0
          %4680 = vmatpush2.bf16.msra.mxu0 0
          %4681 = vmatprep.subr.bf16.mxu0 0
          %4682 = vmatpush2.bf16.msra.mxu0 0
          %4683 = vmatprep.subr.bf16.mxu0 0
          %4684 = vmatpush2.bf16.msra.mxu0 0
          %4685 = vmatprep.mubr.bf16.mxu0 0
          %4686 = vmatmul.mubr.bf16.gmra.mxu0 %v4379
          %v4687 = vpop.f32.mrf.mxu0
          %v4688 = vadd.f32 %v4445, %v4687
          %v4689 = vpop.f32.mrf.mxu0
          %v4690 = vadd.f32 %v4449, %v4689
          %v4691 = vpop.f32.mrf.mxu0
          %v4692 = vadd.f32 %v4445, %v4691
          %v4693 = vpop.f32.mrf.mxu0
          %v4694 = vadd.f32 %v4449, %v4693
          %4695 = vdwg.mxu0
          %v4696 = vrot.slane %v4645, 4
          %v4697 = vadd.f32 %v4645, %v4696
          %v4698 = vrot.slane %v4697, 2
          %v4699 = vadd.f32 %v4697, %v4698
          %v4700 = vrot.slane %v4699, 1
          %v4701 = vadd.f32 %v4699, %v4700
          %v4702 = vrot.slane %v4647, 4
          %v4703 = vadd.f32 %v4647, %v4702
          %v4704 = vrot.slane %v4703, 2
          %v4705 = vadd.f32 %v4703, %v4704
          %v4706 = vrot.slane %v4705, 1
          %v4707 = vadd.f32 %v4705, %v4706
          %v4708 = vrot.slane %v4688, 4
          %v4709 = vadd.f32 %v4688, %v4708
          %v4710 = vrot.slane %v4709, 2
          %v4711 = vadd.f32 %v4709, %v4710
          %v4712 = vrot.slane %v4711, 1
          %v4713 = vadd.f32 %v4711, %v4712
          %v4714 = vrot.slane %v4690, 4
          %v4715 = vadd.f32 %v4690, %v4714
          %v4716 = vrot.slane %v4715, 2
          %v4717 = vadd.f32 %v4715, %v4716
          %v4718 = vrot.slane %v4717, 1
          %v4719 = vadd.f32 %v4717, %v4718
          %v4720 = vmul.f32 %v4701, %v879
          %v4721 = vmul.f32 %v4707, %v879
          %v4722 = vmul.f32 %v4713, %v879
          %v4723 = vmul.f32 %v4719, %v879
          %v4724 = vmul.f32 %v4645, %v4645
          %v4725 = vmul.f32 %v4647, %v4647
          %v4726 = vmul.f32 %v4688, %v4688
          %v4727 = vmul.f32 %v4690, %v4690
          %v4728 = vrot.slane %v4724, 4
          %v4729 = vadd.f32 %v4724, %v4728
          %v4730 = vrot.slane %v4729, 2
          %v4731 = vadd.f32 %v4729, %v4730
          %v4732 = vrot.slane %v4731, 1
          %v4733 = vadd.f32 %v4731, %v4732
          %v4734 = vrot.slane %v4725, 4
          %v4735 = vadd.f32 %v4725, %v4734
          %v4736 = vrot.slane %v4735, 2
          %v4737 = vadd.f32 %v4735, %v4736
          %v4738 = vrot.slane %v4737, 1
          %v4739 = vadd.f32 %v4737, %v4738
          %v4740 = vrot.slane %v4726, 4
          %v4741 = vadd.f32 %v4726, %v4740
          %v4742 = vrot.slane %v4741, 2
          %v4743 = vadd.f32 %v4741, %v4742
          %v4744 = vrot.slane %v4743, 1
          %v4745 = vadd.f32 %v4743, %v4744
          %v4746 = vrot.slane %v4727, 4
          %v4747 = vadd.f32 %v4727, %v4746
          %v4748 = vrot.slane %v4747, 2
          %v4749 = vadd.f32 %v4747, %v4748
          %v4750 = vrot.slane %v4749, 1
          %v4751 = vadd.f32 %v4749, %v4750
          %v4752 = vmul.f32 %v4733, %v879
          %v4753 = vmul.f32 %v4739, %v879
          %v4754 = vmul.f32 %v4745, %v879
          %v4755 = vmul.f32 %v4751, %v879
          %v4756 = vmul.f32 %v4720, %v4720
          %v4757 = vmul.f32 %v4721, %v4721
          %v4758 = vmul.f32 %v4722, %v4722
          %v4759 = vmul.f32 %v4723, %v4723
          %v4760 = vsub.f32 %v4752, %v4756
          %v4761 = vsub.f32 %v4753, %v4757
          %v4762 = vsub.f32 %v4754, %v4758
          %v4763 = vsub.f32 %v4755, %v4759
          %v4764 = vmax.f32 %v4760, 0.0
          %v4765 = vmax.f32 %v4761, 0.0
          %v4766 = vmax.f32 %v4762, 0.0
          %v4767 = vmax.f32 %v4763, 0.0
          %v4768 = vsub.f32 %v4645, %v4720
          %v4769 = vsub.f32 %v4647, %v4721
          %v4770 = vsub.f32 %v4688, %v4722
          %v4771 = vsub.f32 %v4690, %v4723
          %v4772 = vadd.f32 %v4764, 1e-05
          %v4773 = vadd.f32 %v4765, 1e-05
          %v4774 = vadd.f32 %v4766, 1e-05
          %v4775 = vadd.f32 %v4767, 1e-05
          %v4776 = vrsqrt.pop %v4772
          %v4777 = vrsqrt.pop %v4773
          %v4778 = vrsqrt.pop %v4774
          %v4779 = vrsqrt.pop %v4775
          %v4780 = vmul.f32 %v4768, %v4776
          %v4781 = vmul.f32 %v4769, %v4777
          %v4782 = vmul.f32 %v4770, %v4778
          %v4783 = vmul.f32 %v4771, %v4779
          %v4784 = vlaneseq
          %v4785 = vshrl.u32 %v4784, 7
          %v4786 = vsub.s32 1, %v4785
          %v4787 = vrot.slane %v4377, %v4786
          %v4788 = vlaneseq
          %v4789 = vshrl.u32 %v4788, 7
          %v4790 = vsub.s32 5, %v4789
          %v4791 = vrot.slane %v4377, %v4790
          %v4792 = vlaneseq
          %v4793 = vshrl.u32 %v4792, 7
          %v4794 = vsub.s32 1, %v4793
          %v4795 = vrot.slane %v4378, %v4794
          %v4796 = vlaneseq
          %v4797 = vshrl.u32 %v4796, 7
          %v4798 = vsub.s32 5, %v4797
          %v4799 = vrot.slane %v4378, %v4798
          %v4804 = vlaneseq
          %v4805 = vshrl.u32 %v4804, 7
          %v4806 = vsub.s32 1, %v4805
          %v4807 = vrot.slane %v4787, %v4806
          %v4808 = vlaneseq
          %v4809 = vshrl.u32 %v4808, 7
          %v4810 = vsub.s32 1, %v4809
          %v4811 = vrot.slane %v4791, %v4810
          %v4812 = vlaneseq
          %v4813 = vshrl.u32 %v4812, 7
          %v4814 = vsub.s32 1, %v4813
          %v4815 = vrot.slane %v4795, %v4814
          %v4816 = vlaneseq
          %v4817 = vshrl.u32 %v4816, 7
          %v4818 = vsub.s32 1, %v4817
          %v4819 = vrot.slane %v4799, %v4818
          %v4820 = vmul.f32 %v4780, %v4807
          %v4821 = vmul.f32 %v4781, %v4811
          %v4822 = vmul.f32 %v4782, %v4815
          %v4823 = vmul.f32 %v4783, %v4819
          %v4824 = vlaneseq
          %v4825 = vshrl.u32 %v4824, 7
          %v4826 = vsub.s32 2, %v4825
          %v4827 = vrot.slane %v4377, %v4826
          %v4828 = vlaneseq
          %v4829 = vshrl.u32 %v4828, 7
          %v4830 = vsub.s32 6, %v4829
          %v4831 = vrot.slane %v4377, %v4830
          %v4832 = vlaneseq
          %v4833 = vshrl.u32 %v4832, 7
          %v4834 = vsub.s32 2, %v4833
          %v4835 = vrot.slane %v4378, %v4834
          %v4836 = vlaneseq
          %v4837 = vshrl.u32 %v4836, 7
          %v4838 = vsub.s32 6, %v4837
          %v4839 = vrot.slane %v4378, %v4838
          %v4844 = vlaneseq
          %v4845 = vshrl.u32 %v4844, 7
          %v4846 = vsub.s32 2, %v4845
          %v4847 = vrot.slane %v4827, %v4846
          %v4848 = vlaneseq
          %v4849 = vshrl.u32 %v4848, 7
          %v4850 = vsub.s32 2, %v4849
          %v4851 = vrot.slane %v4831, %v4850
          %v4852 = vlaneseq
          %v4853 = vshrl.u32 %v4852, 7
          %v4854 = vsub.s32 2, %v4853
          %v4855 = vrot.slane %v4835, %v4854
          %v4856 = vlaneseq
          %v4857 = vshrl.u32 %v4856, 7
          %v4858 = vsub.s32 2, %v4857
          %v4859 = vrot.slane %v4839, %v4858
          %v4860 = vadd.f32 %v4820, %v4847
          %v4861 = vadd.f32 %v4821, %v4851
          %v4862 = vadd.f32 %v4822, %v4855
          %v4863 = vadd.f32 %v4823, %v4859
          %v4864 = vmax.f32 %v4860, 0.0
          %v4865 = vmax.f32 %v4861, 0.0
          %v4866 = vmax.f32 %v4862, 0.0
          %v4867 = vmax.f32 %v4863, 0.0
          %v4868 = vrot.slane %v4649, 4
          %v4869 = vadd.f32 %v4649, %v4868
          %v4870 = vrot.slane %v4869, 2
          %v4871 = vadd.f32 %v4869, %v4870
          %v4872 = vrot.slane %v4871, 1
          %v4873 = vadd.f32 %v4871, %v4872
          %v4874 = vrot.slane %v4651, 4
          %v4875 = vadd.f32 %v4651, %v4874
          %v4876 = vrot.slane %v4875, 2
          %v4877 = vadd.f32 %v4875, %v4876
          %v4878 = vrot.slane %v4877, 1
          %v4879 = vadd.f32 %v4877, %v4878
          %v4880 = vrot.slane %v4692, 4
          %v4881 = vadd.f32 %v4692, %v4880
          %v4882 = vrot.slane %v4881, 2
          %v4883 = vadd.f32 %v4881, %v4882
          %v4884 = vrot.slane %v4883, 1
          %v4885 = vadd.f32 %v4883, %v4884
          %v4886 = vrot.slane %v4694, 4
          %v4887 = vadd.f32 %v4694, %v4886
          %v4888 = vrot.slane %v4887, 2
          %v4889 = vadd.f32 %v4887, %v4888
          %v4890 = vrot.slane %v4889, 1
          %v4891 = vadd.f32 %v4889, %v4890
          %v4892 = vmul.f32 %v4873, %v879
          %v4893 = vmul.f32 %v4879, %v879
          %v4894 = vmul.f32 %v4885, %v879
          %v4895 = vmul.f32 %v4891, %v879
          %v4896 = vmul.f32 %v4649, %v4649
          %v4897 = vmul.f32 %v4651, %v4651
          %v4898 = vmul.f32 %v4692, %v4692
          %v4899 = vmul.f32 %v4694, %v4694
          %v4900 = vrot.slane %v4896, 4
          %v4901 = vadd.f32 %v4896, %v4900
          %v4902 = vrot.slane %v4901, 2
          %v4903 = vadd.f32 %v4901, %v4902
          %v4904 = vrot.slane %v4903, 1
          %v4905 = vadd.f32 %v4903, %v4904
          %v4906 = vrot.slane %v4897, 4
          %v4907 = vadd.f32 %v4897, %v4906
          %v4908 = vrot.slane %v4907, 2
          %v4909 = vadd.f32 %v4907, %v4908
          %v4910 = vrot.slane %v4909, 1
          %v4911 = vadd.f32 %v4909, %v4910
          %v4912 = vrot.slane %v4898, 4
          %v4913 = vadd.f32 %v4898, %v4912
          %v4914 = vrot.slane %v4913, 2
          %v4915 = vadd.f32 %v4913, %v4914
          %v4916 = vrot.slane %v4915, 1
          %v4917 = vadd.f32 %v4915, %v4916
          %v4918 = vrot.slane %v4899, 4
          %v4919 = vadd.f32 %v4899, %v4918
          %v4920 = vrot.slane %v4919, 2
          %v4921 = vadd.f32 %v4919, %v4920
          %v4922 = vrot.slane %v4921, 1
          %v4923 = vadd.f32 %v4921, %v4922
          %v4924 = vmul.f32 %v4905, %v879
          %v4925 = vmul.f32 %v4911, %v879
          %v4926 = vmul.f32 %v4917, %v879
          %v4927 = vmul.f32 %v4923, %v879
          %v4928 = vmul.f32 %v4892, %v4892
          %v4929 = vmul.f32 %v4893, %v4893
          %v4930 = vmul.f32 %v4894, %v4894
          %v4931 = vmul.f32 %v4895, %v4895
          %v4932 = vsub.f32 %v4924, %v4928
          %v4933 = vsub.f32 %v4925, %v4929
          %v4934 = vsub.f32 %v4926, %v4930
          %v4935 = vsub.f32 %v4927, %v4931
          %v4936 = vmax.f32 %v4932, 0.0
          %v4937 = vmax.f32 %v4933, 0.0
          %v4938 = vmax.f32 %v4934, 0.0
          %v4939 = vmax.f32 %v4935, 0.0
          %v4940 = vsub.f32 %v4649, %v4892
          %v4941 = vsub.f32 %v4651, %v4893
          %v4942 = vsub.f32 %v4692, %v4894
          %v4943 = vsub.f32 %v4694, %v4895
          %v4944 = vadd.f32 %v4936, 1e-05
          %v4945 = vadd.f32 %v4937, 1e-05
          %v4946 = vadd.f32 %v4938, 1e-05
          %v4947 = vadd.f32 %v4939, 1e-05
          %v4948 = vrsqrt.pop %v4944
          %v4949 = vrsqrt.pop %v4945
          %v4950 = vrsqrt.pop %v4946
          %v4951 = vrsqrt.pop %v4947
          %v4952 = vmul.f32 %v4940, %v4948
          %v4953 = vmul.f32 %v4941, %v4949
          %v4954 = vmul.f32 %v4942, %v4950
          %v4955 = vmul.f32 %v4943, %v4951
          %v4956 = vmul.f32 %v4952, %v4807
          %v4957 = vmul.f32 %v4953, %v4811
          %v4958 = vmul.f32 %v4954, %v4815
          %v4959 = vmul.f32 %v4955, %v4819
          %v4960 = vadd.f32 %v4956, %v4847
          %v4961 = vadd.f32 %v4957, %v4851
          %v4962 = vadd.f32 %v4958, %v4855
          %v4963 = vadd.f32 %v4959, %v4859
          %v4964 = vmax.f32 %v4960, 0.0
          %v4965 = vmax.f32 %v4961, 0.0
          %v4966 = vmax.f32 %v4962, 0.0
          %v4967 = vmax.f32 %v4963, 0.0
          %v4968 = vpack.c.bf16 %v4964, %v4864
          %v4969 = vpack.c.bf16 %v4965, %v4865
          %v4970 = vpack.c.bf16 %v4966, %v4866
          %v4971 = vpack.c.bf16 %v4967, %v4867
          %v4972 = vld [vmem:[#allocation15] sm:$0xf]
          %v4973 = vld [vmem:[#allocation15 + $0x4] sm:$0xf]
          %v4974 = vld [vmem:[#allocation15 + $0x8] sm:$0xf]
          %v4975 = vld [vmem:[#allocation15 + $0xc] sm:$0xf]
          %v4976 = vld [vmem:[#allocation15 + $0x10] sm:$0xf]
          %v4977 = vld [vmem:[#allocation15 + $0x14] sm:$0xf]
          %v4978 = vld [vmem:[#allocation15 + $0x18] sm:$0xf]
          %v4979 = vld [vmem:[#allocation15 + $0x1c] sm:$0xf]
          %v4980 = vld [vmem:[#allocation15 + $0x20] sm:$0xf]
          %v4981 = vld [vmem:[#allocation15 + $0x24] sm:$0xf]
          %v4982 = vld [vmem:[#allocation15 + $0x28] sm:$0xf]
          %v4983 = vld [vmem:[#allocation15 + $0x2c] sm:$0xf]
          %v4984 = vld [vmem:[#allocation15 + $0x30] sm:$0xf]
          %v4985 = vld [vmem:[#allocation15 + $0x34] sm:$0xf]
          %v4986 = vld [vmem:[#allocation15 + $0x38] sm:$0xf]
          %v4987 = vld [vmem:[#allocation15 + $0x3c] sm:$0xf]
          %v4988 = vld [vmem:[#allocation15 + $0x40] sm:$0xf]
          %v4989 = vld [vmem:[#allocation15 + $0x44] sm:$0xf]
          %v4990 = vld [vmem:[#allocation15 + $0x48] sm:$0xf]
          %v4991 = vld [vmem:[#allocation15 + $0x4c] sm:$0xf]
          %v4992 = vld [vmem:[#allocation15 + $0x50] sm:$0xf]
          %v4993 = vld [vmem:[#allocation15 + $0x54] sm:$0xf]
          %v4994 = vld [vmem:[#allocation15 + $0x58] sm:$0xf]
          %v4995 = vld [vmem:[#allocation15 + $0x5c] sm:$0xf]
          %v4996 = vld [vmem:[#allocation15 + $0x60] sm:$0xf]
          %v4997 = vld [vmem:[#allocation15 + $0x64] sm:$0xf]
          %v4998 = vld [vmem:[#allocation15 + $0x68] sm:$0xf]
          %v4999 = vld [vmem:[#allocation15 + $0x6c] sm:$0xf]
          %v5000 = vld [vmem:[#allocation15 + $0x70] sm:$0xf]
          %v5001 = vld [vmem:[#allocation15 + $0x74] sm:$0xf]
          %v5002 = vld [vmem:[#allocation15 + $0x78] sm:$0xf]
          %v5003 = vld [vmem:[#allocation15 + $0x7c] sm:$0xf]
          %v5004 = vld [vmem:[#allocation15 + $0x80] sm:$0xf]
          %v5005 = vld [vmem:[#allocation15 + $0x84] sm:$0xf]
          %v5006 = vld [vmem:[#allocation15 + $0x88] sm:$0xf]
          %v5007 = vld [vmem:[#allocation15 + $0x8c] sm:$0xf]
          %v5008 = vld [vmem:[#allocation15 + $0x90] sm:$0xf]
          %v5009 = vld [vmem:[#allocation15 + $0x94] sm:$0xf]
          %v5010 = vld [vmem:[#allocation15 + $0x98] sm:$0xf]
          %v5011 = vld [vmem:[#allocation15 + $0x9c] sm:$0xf]
          %v5012 = vld [vmem:[#allocation15 + $0xa0] sm:$0xf]
          %v5013 = vld [vmem:[#allocation15 + $0xa4] sm:$0xf]
          %v5014 = vld [vmem:[#allocation15 + $0xa8] sm:$0xf]
          %v5015 = vld [vmem:[#allocation15 + $0xac] sm:$0xf]
          %v5016 = vld [vmem:[#allocation15 + $0xb0] sm:$0xf]
          %v5017 = vld [vmem:[#allocation15 + $0xb4] sm:$0xf]
          %v5018 = vld [vmem:[#allocation15 + $0xb8] sm:$0xf]
          %v5019 = vld [vmem:[#allocation15 + $0xbc] sm:$0xf]
          %v5020 = vld [vmem:[#allocation15 + $0xc0] sm:$0xf]
          %v5021 = vld [vmem:[#allocation15 + $0xc4] sm:$0xf]
          %v5022 = vld [vmem:[#allocation15 + $0xc8] sm:$0xf]
          %v5023 = vld [vmem:[#allocation15 + $0xcc] sm:$0xf]
          %v5024 = vld [vmem:[#allocation15 + $0xd0] sm:$0xf]
          %v5025 = vld [vmem:[#allocation15 + $0xd4] sm:$0xf]
          %v5026 = vld [vmem:[#allocation15 + $0xd8] sm:$0xf]
          %v5027 = vld [vmem:[#allocation15 + $0xdc] sm:$0xf]
          %v5028 = vld [vmem:[#allocation15 + $0xe0] sm:$0xf]
          %v5029 = vld [vmem:[#allocation15 + $0xe4] sm:$0xf]
          %v5030 = vld [vmem:[#allocation15 + $0xe8] sm:$0xf]
          %v5031 = vld [vmem:[#allocation15 + $0xec] sm:$0xf]
          %v5032 = vld [vmem:[#allocation15 + $0xf0] sm:$0xf]
          %v5033 = vld [vmem:[#allocation15 + $0xf4] sm:$0xf]
          %v5034 = vld [vmem:[#allocation15 + $0xf8] sm:$0xf]
          %v5035 = vld [vmem:[#allocation15 + $0xfc] sm:$0xf]
          %v5036 = vlaneseq
          %v5037 = vshrl.u32 %v5036, 7
          %v5038 = vsub.s32 3, %v5037
          %v5039 = vrot.slane %v4377, %v5038
          %v5104 = vunpack.c.l.b16 %v4972
          %v5105 = vunpack.c.l.b16 %v4973
          %v5106 = vunpack.c.l.b16 %v4974
          %v5107 = vunpack.c.l.b16 %v4975
          %v5108 = vunpack.c.l.b16 %v4976
          %v5109 = vunpack.c.l.b16 %v4977
          %v5110 = vunpack.c.l.b16 %v4978
          %v5111 = vunpack.c.l.b16 %v4979
          %v5112 = vunpack.c.l.b16 %v4980
          %v5113 = vunpack.c.l.b16 %v4981
          %v5114 = vunpack.c.l.b16 %v4982
          %v5115 = vunpack.c.l.b16 %v4983
          %v5116 = vunpack.c.l.b16 %v4984
          %v5117 = vunpack.c.l.b16 %v4985
          %v5118 = vunpack.c.l.b16 %v4986
          %v5119 = vunpack.c.l.b16 %v4987
          %v5120 = vunpack.c.l.b16 %v4988
          %v5121 = vunpack.c.l.b16 %v4989
          %v5122 = vunpack.c.l.b16 %v4990
          %v5123 = vunpack.c.l.b16 %v4991
          %v5124 = vunpack.c.l.b16 %v4992
          %v5125 = vunpack.c.l.b16 %v4993
          %v5126 = vunpack.c.l.b16 %v4994
          %v5127 = vunpack.c.l.b16 %v4995
          %v5128 = vunpack.c.l.b16 %v4996
          %v5129 = vunpack.c.l.b16 %v4997
          %v5130 = vunpack.c.l.b16 %v4998
          %v5131 = vunpack.c.l.b16 %v4999
          %v5132 = vunpack.c.l.b16 %v5000
          %v5133 = vunpack.c.l.b16 %v5001
          %v5134 = vunpack.c.l.b16 %v5002
          %v5135 = vunpack.c.l.b16 %v5003
          %v5136 = vunpack.c.l.b16 %v5004
          %v5137 = vunpack.c.l.b16 %v5005
          %v5138 = vunpack.c.l.b16 %v5006
          %v5139 = vunpack.c.l.b16 %v5007
          %v5140 = vunpack.c.l.b16 %v5008
          %v5141 = vunpack.c.l.b16 %v5009
          %v5142 = vunpack.c.l.b16 %v5010
          %v5143 = vunpack.c.l.b16 %v5011
          %v5144 = vunpack.c.l.b16 %v5012
          %v5145 = vunpack.c.l.b16 %v5013
          %v5146 = vunpack.c.l.b16 %v5014
          %v5147 = vunpack.c.l.b16 %v5015
          %v5148 = vunpack.c.l.b16 %v5016
          %v5149 = vunpack.c.l.b16 %v5017
          %v5150 = vunpack.c.l.b16 %v5018
          %v5151 = vunpack.c.l.b16 %v5019
          %v5152 = vunpack.c.l.b16 %v5020
          %v5153 = vunpack.c.l.b16 %v5021
          %v5154 = vunpack.c.l.b16 %v5022
          %v5155 = vunpack.c.l.b16 %v5023
          %v5156 = vunpack.c.l.b16 %v5024
          %v5157 = vunpack.c.l.b16 %v5025
          %v5158 = vunpack.c.l.b16 %v5026
          %v5159 = vunpack.c.l.b16 %v5027
          %v5160 = vunpack.c.l.b16 %v5028
          %v5161 = vunpack.c.l.b16 %v5029
          %v5162 = vunpack.c.l.b16 %v5030
          %v5163 = vunpack.c.l.b16 %v5031
          %v5164 = vunpack.c.l.b16 %v5032
          %v5165 = vunpack.c.l.b16 %v5033
          %v5166 = vunpack.c.l.b16 %v5034
          %v5167 = vunpack.c.l.b16 %v5035
          %v5168 = vpack.c.b16 %v5105, %v5104
          %v5169 = vpack.c.b16 %v5107, %v5106
          %v5170 = vpack.c.b16 %v5109, %v5108
          %v5171 = vpack.c.b16 %v5111, %v5110
          %v5172 = vpack.c.b16 %v5113, %v5112
          %v5173 = vpack.c.b16 %v5115, %v5114
          %v5174 = vpack.c.b16 %v5117, %v5116
          %v5175 = vpack.c.b16 %v5119, %v5118
          %v5176 = vpack.c.b16 %v5121, %v5120
          %v5177 = vpack.c.b16 %v5123, %v5122
          %v5178 = vpack.c.b16 %v5125, %v5124
          %v5179 = vpack.c.b16 %v5127, %v5126
          %v5180 = vpack.c.b16 %v5129, %v5128
          %v5181 = vpack.c.b16 %v5131, %v5130
          %v5182 = vpack.c.b16 %v5133, %v5132
          %v5183 = vpack.c.b16 %v5135, %v5134
          %v5184 = vpack.c.b16 %v5137, %v5136
          %v5185 = vpack.c.b16 %v5139, %v5138
          %v5186 = vpack.c.b16 %v5141, %v5140
          %v5187 = vpack.c.b16 %v5143, %v5142
          %v5188 = vpack.c.b16 %v5145, %v5144
          %v5189 = vpack.c.b16 %v5147, %v5146
          %v5190 = vpack.c.b16 %v5149, %v5148
          %v5191 = vpack.c.b16 %v5151, %v5150
          %v5192 = vpack.c.b16 %v5153, %v5152
          %v5193 = vpack.c.b16 %v5155, %v5154
          %v5194 = vpack.c.b16 %v5157, %v5156
          %v5195 = vpack.c.b16 %v5159, %v5158
          %v5196 = vpack.c.b16 %v5161, %v5160
          %v5197 = vpack.c.b16 %v5163, %v5162
          %v5198 = vpack.c.b16 %v5165, %v5164
          %v5199 = vpack.c.b16 %v5167, %v5166
          %5232 = vmatprep.subr.bf16.mxu0 0
          %5233 = vmatpush1.bf16.msra.mxu0 %v5175
          %5234 = vmatprep.subr.bf16.mxu0 0
          %5235 = vmatpush1.bf16.msra.mxu0 %v5174
          %5236 = vmatprep.subr.bf16.mxu0 0
          %5237 = vmatpush1.bf16.msra.mxu0 %v5173
          %5238 = vmatprep.subr.bf16.mxu0 0
          %5239 = vmatpush1.bf16.msra.mxu0 %v5172
          %5240 = vmatprep.subr.bf16.mxu0 0
          %5241 = vmatpush1.bf16.msra.mxu0 %v5171
          %5242 = vmatprep.subr.bf16.mxu0 0
          %5243 = vmatpush1.bf16.msra.mxu0 %v5170
          %5244 = vmatprep.subr.bf16.mxu0 0
          %5245 = vmatpush1.bf16.msra.mxu0 %v5169
          %5246 = vmatprep.subr.bf16.mxu0 0
          %5247 = vmatpush1.bf16.msra.mxu0 %v5168
          %5248 = vmatprep.subr.bf16.mxu0 0
          %5249 = vmatpush2.bf16.msra.mxu0 %v5183
          %5250 = vmatprep.subr.bf16.mxu0 0
          %5251 = vmatpush2.bf16.msra.mxu0 %v5182
          %5252 = vmatprep.subr.bf16.mxu0 0
          %5253 = vmatpush2.bf16.msra.mxu0 %v5181
          %5254 = vmatprep.subr.bf16.mxu0 0
          %5255 = vmatpush2.bf16.msra.mxu0 %v5180
          %5256 = vmatprep.subr.bf16.mxu0 0
          %5257 = vmatpush2.bf16.msra.mxu0 %v5179
          %5258 = vmatprep.subr.bf16.mxu0 0
          %5259 = vmatpush2.bf16.msra.mxu0 %v5178
          %5260 = vmatprep.subr.bf16.mxu0 0
          %5261 = vmatpush2.bf16.msra.mxu0 %v5177
          %5262 = vmatprep.subr.bf16.mxu0 0
          %5263 = vmatpush2.bf16.msra.mxu0 %v5176
          %5264 = vmatprep.mubr.bf16.mxu0 %v4969
          %5265 = vmatmul.mubr.bf16.gmra.mxu0 %v4968
          %v5266 = vpop.f32.mrf.mxu0
          %v5267 = vadd.f32 %v5039, %v5266
          %v5268 = vpop.f32.mrf.mxu0
          %v5269 = vpop.f32.mrf.mxu0
          %v5270 = vadd.f32 %v5039, %v5269
          %v5271 = vpop.f32.mrf.mxu0
          %5272 = vdwg.mxu0
          %5273 = vmatprep.subr.bf16.mxu0 0
          %5274 = vmatpush1.bf16.msra.mxu0 %v5191
          %5275 = vmatprep.subr.bf16.mxu0 0
          %5276 = vmatpush1.bf16.msra.mxu0 %v5190
          %5277 = vmatprep.subr.bf16.mxu0 0
          %5278 = vmatpush1.bf16.msra.mxu0 %v5189
          %5279 = vmatprep.subr.bf16.mxu0 0
          %5280 = vmatpush1.bf16.msra.mxu0 %v5188
          %5281 = vmatprep.subr.bf16.mxu0 0
          %5282 = vmatpush1.bf16.msra.mxu0 %v5187
          %5283 = vmatprep.subr.bf16.mxu0 0
          %5284 = vmatpush1.bf16.msra.mxu0 %v5186
          %5285 = vmatprep.subr.bf16.mxu0 0
          %5286 = vmatpush1.bf16.msra.mxu0 %v5185
          %5287 = vmatprep.subr.bf16.mxu0 0
          %5288 = vmatpush1.bf16.msra.mxu0 %v5184
          %5289 = vmatprep.subr.bf16.mxu0 0
          %5290 = vmatpush2.bf16.msra.mxu0 %v5199
          %5291 = vmatprep.subr.bf16.mxu0 0
          %5292 = vmatpush2.bf16.msra.mxu0 %v5198
          %5293 = vmatprep.subr.bf16.mxu0 0
          %5294 = vmatpush2.bf16.msra.mxu0 %v5197
          %5295 = vmatprep.subr.bf16.mxu0 0
          %5296 = vmatpush2.bf16.msra.mxu0 %v5196
          %5297 = vmatprep.subr.bf16.mxu0 0
          %5298 = vmatpush2.bf16.msra.mxu0 %v5195
          %5299 = vmatprep.subr.bf16.mxu0 0
          %5300 = vmatpush2.bf16.msra.mxu0 %v5194
          %5301 = vmatprep.subr.bf16.mxu0 0
          %5302 = vmatpush2.bf16.msra.mxu0 %v5193
          %5303 = vmatprep.subr.bf16.mxu0 0
          %5304 = vmatpush2.bf16.msra.mxu0 %v5192
          %5305 = vmatprep.mubr.bf16.mxu0 %v4971
          %5306 = vmatmul.mubr.bf16.gmra.mxu0 %v4970
          %v5307 = vpop.f32.mrf.mxu0
          %v5308 = vadd.f32 %v5267, %v5307
          %v5309 = vpop.f32.mrf.mxu0
          %v5310 = vpop.f32.mrf.mxu0
          %v5311 = vadd.f32 %v5270, %v5310
          %v5312 = vpop.f32.mrf.mxu0
          %5313 = vdwg.mxu0
          %v5314 = vmul.f32 %v5308, %v5308
          %5315 = vadd.xlane.f32.xlu0 %v5314
          %v5316 = vpop.xlane.xlu0 %5315
          %v5317 = vmax.f32 %v5316, 1e-24
          %v5318 = vrsqrt.pop %v5317
          %v5319 = vmul.f32 %v5308, %v5318
          %v5320 = vmul.f32 %v4376, %v4376
          %5321 = vadd.xlane.f32.xlu0 %v5320
          %v5322 = vpop.xlane.xlu0 %5321
          %v5323 = vmax.f32 %v5322, 1e-24
          %v5324 = vrsqrt.pop %v5323
          %v5325 = vmul.f32 %v4376, %v5324
          %v5326 = vmul.f32 %v5319, %v5325
          %5327 = vadd.xlane.f32.xlu0 %v5326
          %v5328 = vpop.xlane.xlu0 %5327
          %v5329 = vmul.f32 %v5328, 2.0
          %v5330 = vsub.f32 2.0, %v5329
          %v5331 = vmul.f32 %v5311, %v5311
          %5332 = vadd.xlane.f32.xlu0 %v5331
          %v5333 = vpop.xlane.xlu0 %5332
          %v5334 = vmax.f32 %v5333, 1e-24
          %v5335 = vrsqrt.pop %v5334
          %v5336 = vmul.f32 %v5311, %v5335
          %v5337 = vmul.f32 %v2499, %v2499
          %5338 = vadd.xlane.f32.xlu0 %v5337
          %v5339 = vpop.xlane.xlu0 %5338
          %v5340 = vmax.f32 %v5339, 1e-24
          %v5341 = vrsqrt.pop %v5340
          %v5342 = vmul.f32 %v2499, %v5341
          %v5343 = vmul.f32 %v5336, %v5342
          %5344 = vadd.xlane.f32.xlu0 %v5343
          %v5345 = vpop.xlane.xlu0 %5344
          %v5346 = vmul.f32 %v5345, 2.0
          %v5347 = vsub.f32 2.0, %v5346
          %v5348 = vadd.f32 %v5330, %v5347
          %vm5349 = vcmask 7168
          %v5350 = vsel %vm5349, %v5348, 0.0
          %5351 = vadd.xlane.f32.xlu0 %v5350
          %v5352 = vpop.xlane.xlu0 %5351
          %v5353 = vrot.slane %v5352, 4
          %v5354 = vadd.f32 %v5352, %v5353
          %v5355 = vrot.slane %v5354, 2
          %v5356 = vadd.f32 %v5354, %v5355
          %v5357 = vrot.slane %v5356, 1
          %v5358 = vadd.f32 %v5356, %v5357
          %s5359 = vtos %v5358
          %v5360 = vrcp.pop 8.0
          %s5361 = vtos %v5360
          %s5362 = smul.f32 %s5359, %s5361
          %v5363 = vstv %s5362
          %5364 = vst [vmem:[%s664] sm:$0xff] %v5363
        $region132: #{ssl_forward.1} parent=87 // pred_fallthru
          _
        %p5365 = scmp.eq.s32.totalorder %s34, 1
        // Predicated region
        $region133: #{ssl_forward.1} parent=87 // pred_check
          %p5366 = pneg %p5365
        $region134: #{ssl_forward.1} parent=87 // pred_check_branch
          %5368 = sbr.rel (%p5366) target = $region136
        $region135: #{ssl_forward.1} parent=87 // pred_region
          %v5369 = vld [vmem:[%s0] sm:$0xf]
          %v5370 = vld [vmem:[%s0 + $0x4] sm:$0xf]
          %v5371 = vld [vmem:[%s0 + $0x8] sm:$0xf]
          %v5372 = vld [vmem:[%s0 + $0xc] sm:$0xf]
          %v5373 = vld [vmem:[#allocation2] sm:$0xf]
          %v5374 = vld [vmem:[#allocation2 + $0x4] sm:$0xf]
          %v5375 = vld [vmem:[#allocation2 + $0x8] sm:$0xf]
          %v5376 = vld [vmem:[#allocation2 + $0xc] sm:$0xf]
          %v5377 = vld [vmem:[#allocation2 + $0x10] sm:$0x1]
          %v5378 = vld [vmem:[#allocation4] sm:$0x1]
          %v5380 = vlaneseq
          %v5381 = vshrl.u32 %v5380, 7
          %v5382 = vsub.s32 0, %v5381
          %v5383 = vrot.slane %v5378, %v5382
          %v5389 = vunpack.c.l.b16 %v5369
          %v5390 = vunpack.c.l.b16 %v5370
          %v5391 = vunpack.c.l.b16 %v5371
          %v5392 = vunpack.c.l.b16 %v5372
          %v5393 = vpack.c.b16 %v5390, %v5389
          %v5394 = vpack.c.b16 %v5392, %v5391
          %v5400 = vunpack.c.l.b16 %v5373
          %v5401 = vunpack.c.l.b16 %v5374
          %v5402 = vunpack.c.l.b16 %v5375
          %v5403 = vunpack.c.l.b16 %v5376
          %v5404 = vunpack.c.l.b16 %v5377
          %v5405 = vpack.c.b16 %v5401, %v5400
          %v5406 = vpack.c.b16 %v5403, %v5402
          %v5407 = vpack.c.b16 %v5404, %v5404
          %vm5410 = vcmask 269312
          %v5412 = vsel %vm5410, %v5393, 0
          %v5415 = vsel %vm5410, %v5394, 0
          %vm5417 = vcmask 1040384
          %v5418 = vsel 0, 4294967295, 65535
          %v5419 = vsel %vm5417, %v5418, 0
          %v5421 = vand.u32 %v5407, %v5419
          %5423 = vmatprep.subr.bf16.mxu0 0
          %5424 = vmatpush1.bf16.msra.mxu0 0
          %5425 = vmatprep.subr.bf16.mxu0 0
          %5426 = vmatpush1.bf16.msra.mxu0 0
          %5427 = vmatprep.subr.bf16.mxu0 0
          %5428 = vmatpush1.bf16.msra.mxu0 0
          %5429 = vmatprep.subr.bf16.mxu0 0
          %5430 = vmatpush1.bf16.msra.mxu0 0
          %5431 = vmatprep.subr.bf16.mxu0 0
          %5432 = vmatpush1.bf16.msra.mxu0 0
          %5433 = vmatprep.subr.bf16.mxu0 0
          %5434 = vmatpush1.bf16.msra.mxu0 %v5421
          %5435 = vmatprep.subr.bf16.mxu0 0
          %5436 = vmatpush1.bf16.msra.mxu0 %v5406
          %5437 = vmatprep.subr.bf16.mxu0 0
          %5438 = vmatpush1.bf16.msra.mxu0 %v5405
          %5439 = vmatprep.subr.bf16.mxu0 0
          %5440 = vmatpush2.bf16.msra.mxu0 0
          %5441 = vmatprep.subr.bf16.mxu0 0
          %5442 = vmatpush2.bf16.msra.mxu0 0
          %5443 = vmatprep.subr.bf16.mxu0 0
          %5444 = vmatpush2.bf16.msra.mxu0 0
          %5445 = vmatprep.subr.bf16.mxu0 0
          %5446 = vmatpush2.bf16.msra.mxu0 0
          %5447 = vmatprep.subr.bf16.mxu0 0
          %5448 = vmatpush2.bf16.msra.mxu0 0
          %5449 = vmatprep.subr.bf16.mxu0 0
          %5450 = vmatpush2.bf16.msra.mxu0 0
          %5451 = vmatprep.subr.bf16.mxu0 0
          %5452 = vmatpush2.bf16.msra.mxu0 0
          %5453 = vmatprep.subr.bf16.mxu0 0
          %5454 = vmatpush2.bf16.msra.mxu0 0
          %5455 = vmatprep.mubr.bf16.mxu0 0
          %5456 = vmatmul.mubr.bf16.gmra.mxu0 %v5412
          %v5457 = vpop.f32.mrf.mxu0
          %v5458 = vadd.f32 %v5383, %v5457
          %v5459 = vpop.f32.mrf.mxu0
          %v5460 = vpop.f32.mrf.mxu0
          %v5461 = vadd.f32 %v5383, %v5460
          %v5462 = vpop.f32.mrf.mxu0
          %5463 = vmatprep.mubr.bf16.mxu0 0
          %5464 = vmatmul.mubr.bf16.gmra.mxu0 %v5415
          %v5465 = vpop.f32.mrf.mxu0
          %v5466 = vadd.f32 %v5383, %v5465
          %v5467 = vpop.f32.mrf.mxu0
          %v5468 = vpop.f32.mrf.mxu0
          %v5469 = vadd.f32 %v5383, %v5468
          %v5470 = vpop.f32.mrf.mxu0
          %5471 = vdwg.mxu0
          %v5472 = vld [vmem:[%s1] sm:$0xff]
          %v5473 = vld [vmem:[%s1 + $0x8] sm:$0xff]
          %v5474 = vld [vmem:[%s1 + $0x10] sm:$0xff]
          %v5475 = vld [vmem:[%s1 + $0x18] sm:$0xff]
          %5476 = vmax.xlane.f32.xlu0 %v5458
          %v5477 = vpop.xlane.xlu0 %5476
          %5478 = vmax.xlane.f32.xlu0 %v5461
          %v5479 = vpop.xlane.xlu0 %5478
          %5480 = vmax.xlane.f32.xlu0 %v5466
          %v5481 = vpop.xlane.xlu0 %5480
          %5482 = vmax.xlane.f32.xlu0 %v5469
          %v5483 = vpop.xlane.xlu0 %5482
          %v5484 = vsub.f32 %v5458, %v5477
          %v5485 = vsub.f32 %v5461, %v5479
          %v5486 = vsub.f32 %v5466, %v5481
          %v5487 = vsub.f32 %v5469, %v5483
          %v5488 = vmul.f32 %v5484, 1.442695
          %v5489 = vpow.pop %v5488
          %v5490 = vmul.f32 %v5485, 1.442695
          %v5491 = vpow.pop %v5490
          %v5492 = vmul.f32 %v5486, 1.442695
          %v5493 = vpow.pop %v5492
          %v5494 = vmul.f32 %v5487, 1.442695
          %v5495 = vpow.pop %v5494
          %5496 = vadd.xlane.f32.xlu0 %v5489
          %v5497 = vpop.xlane.xlu0 %5496
          %5498 = vadd.xlane.f32.xlu0 %v5491
          %v5499 = vpop.xlane.xlu0 %5498
          %5500 = vadd.xlane.f32.xlu0 %v5493
          %v5501 = vpop.xlane.xlu0 %5500
          %5502 = vadd.xlane.f32.xlu0 %v5495
          %v5503 = vpop.xlane.xlu0 %5502
          %v5504 = vlog2.pop %v5497
          %v5505 = vmul.f32 %v5504, 0.6931472
          %v5506 = vlog2.pop %v5499
          %v5507 = vmul.f32 %v5506, 0.6931472
          %v5508 = vlog2.pop %v5501
          %v5509 = vmul.f32 %v5508, 0.6931472
          %v5510 = vlog2.pop %v5503
          %v5511 = vmul.f32 %v5510, 0.6931472
          %v5512 = vadd.f32 %v5477, %v5505
          %v5513 = vadd.f32 %v5479, %v5507
          %v5514 = vadd.f32 %v5481, %v5509
          %v5515 = vadd.f32 %v5483, %v5511
          %v5516 = vlaneseq
          %v5517 = vand.u32 %v5516, 127
          %5518 = vset.pattern.permute.xlu0 0
          %5519 = vperm.xlu0 %5518, %v5472
          %v5520 = vpop.permute.xlu0 %5519
          %5521 = vset.pattern.permute.xlu0 0
          %5522 = vperm.xlu0 %5521, %v5473
          %v5523 = vpop.permute.xlu0 %5522
          %5524 = vset.pattern.permute.xlu0 0
          %5525 = vperm.xlu0 %5524, %v5474
          %v5526 = vpop.permute.xlu0 %5525
          %5527 = vset.pattern.permute.xlu0 0
          %5528 = vperm.xlu0 %5527, %v5475
          %v5529 = vpop.permute.xlu0 %5528
          %vm5530 = vcmp.eq.s32.totalorder %v5517, %v5520
          %vm5531 = vcmp.eq.s32.totalorder %v5517, %v5523
          %vm5532 = vcmp.eq.s32.totalorder %v5517, %v5526
          %vm5533 = vcmp.eq.s32.totalorder %v5517, %v5529
          %v5534 = vsel %vm5530, 1, 0
          %v5535 = vsel %vm5531, 1, 0
          %v5536 = vsel %vm5532, 1, 0
          %v5537 = vsel %vm5533, 1, 0
          %v5538 = vcvt.s32.f32 %v5534
          %v5539 = vcvt.s32.f32 %v5535
          %v5540 = vcvt.s32.f32 %v5536
          %v5541 = vcvt.s32.f32 %v5537
          %v5542 = vmul.f32 %v5538, %v5458
          %v5543 = vmul.f32 %v5539, %v5461
          %v5544 = vmul.f32 %v5540, %v5466
          %v5545 = vmul.f32 %v5541, %v5469
          %5546 = vadd.xlane.f32.xlu0 %v5542
          %v5547 = vpop.xlane.xlu0 %5546
          %5548 = vadd.xlane.f32.xlu0 %v5543
          %v5549 = vpop.xlane.xlu0 %5548
          %5550 = vadd.xlane.f32.xlu0 %v5544
          %v5551 = vpop.xlane.xlu0 %5550
          %5552 = vadd.xlane.f32.xlu0 %v5545
          %v5553 = vpop.xlane.xlu0 %5552
          %v5554 = vsub.f32 %v5512, %v5547
          %v5555 = vsub.f32 %v5513, %v5549
          %v5556 = vsub.f32 %v5514, %v5551
          %v5557 = vsub.f32 %v5515, %v5553
          %vm5558 = vcmp.ne.s32.totalorder %v5472, 0
          %vm5559 = vcmp.ne.s32.totalorder %v5473, 0
          %vm5560 = vcmp.ne.s32.totalorder %v5474, 0
          %vm5561 = vcmp.ne.s32.totalorder %v5475, 0
          %v5562 = vsel %vm5558, 1, 0
          %v5563 = vsel %vm5559, 1, 0
          %v5564 = vsel %vm5560, 1, 0
          %v5565 = vsel %vm5561, 1, 0
          %v5566 = vcvt.s32.f32 %v5562
          %v5567 = vcvt.s32.f32 %v5563
          %v5568 = vcvt.s32.f32 %v5564
          %v5569 = vcvt.s32.f32 %v5565
          %v5570 = vmul.f32 %v5554, %v5566
          %v5571 = vmul.f32 %v5555, %v5567
          %v5572 = vmul.f32 %v5556, %v5568
          %v5573 = vmul.f32 %v5557, %v5569
          %vm5574 = vcmask 7168
          %v5575 = vsel %vm5574, %v5570, 0.0
          %v5576 = vsel %vm5574, %v5571, 0.0
          %v5577 = vadd.f32 %v5575, %v5576
          %v5578 = vsel %vm5574, %v5572, 0.0
          %v5579 = vadd.f32 %v5577, %v5578
          %v5580 = vsel %vm5574, %v5573, 0.0
          %v5581 = vadd.f32 %v5579, %v5580
          %5582 = vadd.xlane.f32.xlu0 %v5581
          %v5583 = vpop.xlane.xlu0 %5582
          %v5584 = vrot.slane %v5583, 4
          %v5585 = vadd.f32 %v5583, %v5584
          %v5586 = vrot.slane %v5585, 2
          %v5587 = vadd.f32 %v5585, %v5586
          %v5588 = vrot.slane %v5587, 1
          %v5589 = vadd.f32 %v5587, %v5588
          %s5590 = vtos %v5589
          %v5591 = vsel %vm5574, %v5566, 0.0
          %v5592 = vsel %vm5574, %v5567, 0.0
          %v5593 = vadd.f32 %v5591, %v5592
          %v5594 = vsel %vm5574, %v5568, 0.0
          %v5595 = vadd.f32 %v5593, %v5594
          %v5596 = vsel %vm5574, %v5569, 0.0
          %v5597 = vadd.f32 %v5595, %v5596
          %5598 = vadd.xlane.f32.xlu0 %v5597
          %v5599 = vpop.xlane.xlu0 %5598
          %v5600 = vrot.slane %v5599, 4
          %v5601 = vadd.f32 %v5599, %v5600
          %v5602 = vrot.slane %v5601, 2
          %v5603 = vadd.f32 %v5601, %v5602
          %v5604 = vrot.slane %v5603, 1
          %v5605 = vadd.f32 %v5603, %v5604
          %s5606 = vtos %v5605
          %s5607 = smax.f32 %s5606, 1.0
          %v5608 = vstv %s5607
          %v5609 = vrcp.pop %v5608
          %s5610 = vtos %v5609
          %s5611 = smul.f32 %s5590, %s5610
          %v5612 = vstv %s5611
          %5613 = vst [vmem:[%s664] sm:$0xff] %v5612
        $region136: #{ssl_forward.1} parent=87 // pred_fallthru
          _
        %p5614 = scmp.lt.s32.totalorder %s34, 1
        %s5615 = scalar_select %p5614, %s34, 1
        %s5616 = smul.addr %s5615, 8
        %s5617 = scalar_lea.vmem %s17, %s5616
        // Predicated region
        $region137: #{ssl_forward.1} parent=87 // pred_check
          %p5618 = pneg %p409
        $region138: #{ssl_forward.1} parent=87 // pred_check_branch
          %5620 = sbr.rel (%p5618) target = $region140
        $region139: #{ssl_forward.1} parent=87 // pred_region
          _
        $region140: #{ssl_forward.1} parent=87 // pred_fallthru
          _
      $region88: #{ssl_forward.1} parent=5 // pred_fallthru
        _
      %p5621 = scmp.le.s32.totalorder 2, %s29
      // Predicated region
      $region141: #{ssl_forward.1} parent=5 // pred_check
        %p5622 = pneg %p5621
      $region142: #{ssl_forward.1} parent=5 // pred_check_branch
        %5624 = sbr.rel (%p5622) target = $region144
      $region143: #{ssl_forward.1} parent=5 // pred_region
        %s5625 = ssub.s32 %s29, 2
        // Predicated region
        $region145: #{ssl_forward.1} parent=143 // pred_check
          %p5626 = pneg %p415
        $region146: #{ssl_forward.1} parent=143 // pred_check_branch
          %5628 = sbr.rel (%p5626) target = $region148
        $region147: #{ssl_forward.1} parent=143 // pred_region
          %p5629 = scmp.lt.s32.totalorder %s35, 1
          %s5630 = scalar_select %p5629, %s35, 1
          %s5631 = smul.addr %s5630, 8
          %s5632 = scalar_lea.vmem %s17, %s5631
        $region148: #{ssl_forward.1} parent=143 // pred_fallthru
          _
      $region144: #{ssl_forward.1} parent=5 // pred_fallthru
        _
    $region6: #{ssl_forward.1} parent=1 // loop_footer
      %s33 = sadd.s32 1, %s29
    $region7: #{ssl_forward.1} parent=1 // loop_footer_branch
      %28 = sbr.rel target = $region3
    $region8: #{ssl_forward.1} parent=1 // loop_exit
      _
    %5633 = vsyncpa [#allocation3], 1
    %s5634 = scalar_lea.sflag [#allocation3], 1
    %5635 = vsyncpa %s5634, 1
    %5636 = vsyncpa [#allocation5], 1
    %5637 = vsyncpa [#allocation8], 1
    %5638 = vsyncpa [#allocation11], 1
    %5639 = vsyncpa [#allocation14], 1
    %5640 = vsyncpa [#allocation17], 1

</llo_original>
